<compile_context>
chip_gen: v7x
topology: tpu7x:2x2x1
jax: 0.10.0
libtpu: 0.0.40
codegen_flags: <defaults>
</compile_context>

<pallas_src>
import numpy as np
import jax
import jax.numpy as jnp
from jax.experimental import pallas as pl
from jax.experimental.pallas import tpu as pltpu

_VMEM_LIMIT = 48 * 1024 * 1024   # comfortably below v7x's 64 MiB per-core VMEM


# --------------------------------------------------------------------------
# Host-side (static numpy) helpers: bilinear coefficients, packing, masks
# --------------------------------------------------------------------------
def _bilinear_matrix(out_size, in_size, align_corners):
    """(out_size, in_size) row-interpolation matrix matching F.interpolate(bilinear)."""
    if align_corners:
        if out_size == 1:
            src = np.zeros((1,), np.float64)
        else:
            src = np.arange(out_size, dtype=np.float64) * (in_size - 1) / (out_size - 1)
    else:
        scale = in_size / out_size
        src = (np.arange(out_size, dtype=np.float64) + 0.5) * scale - 0.5
    src = np.clip(src, 0.0, in_size - 1)
    i0 = np.floor(src).astype(np.int64)
    i1 = np.minimum(i0 + 1, in_size - 1)
    frac = (src - i0).astype(np.float32)
    M = np.zeros((out_size, in_size), np.float32)
    M[np.arange(out_size), i0] += (1.0 - frac)
    M[np.arange(out_size), i1] += frac
    return M


def _bilinear_taps(out_size, in_size, align_corners):
    """Per output row: list of (input_row, weight) with weight != 0 (<= 2 taps)."""
    M = _bilinear_matrix(out_size, in_size, align_corners)
    taps = []
    for o in range(out_size):
        nz = np.nonzero(M[o])[0]
        taps.append([(int(i), float(M[o, i])) for i in nz])
    return taps


def _pack_conv_weight(w_oihw, b):
    """(Cout,Cin,3,3)+(Cout,) -> (Cout, 9*Cin+1): tap-major weight cols + bias col."""
    Cout, Cin = int(w_oihw.shape[0]), int(w_oihw.shape[1])
    w2 = jnp.transpose(w_oihw.astype(jnp.float32), (0, 2, 3, 1)).reshape(Cout, 9 * Cin)
    return jnp.concatenate([w2, b.astype(jnp.float32).reshape(Cout, 1)], axis=1)


def _edge_masks(H, W):
    """(2, H*W): row 0 valid for dx=-1 taps (w>=1), row 1 for dx=+1 taps (w<=W-2)."""
    col = np.tile(np.arange(W, dtype=np.float32), H)
    return np.stack([(col >= 1.0).astype(np.float32),
                     (col <= W - 2.0).astype(np.float32)], axis=0)


# --------------------------------------------------------------------------
# Fused FPNHead forward (one pallas_call)
# --------------------------------------------------------------------------
def fpn_head_forward(params, xs_nchw, feature_strides, spec_size, align_corners=False):
    """Returns (N, 2, spec_H, spec_W) sigmoid probabilities."""
    assert len(xs_nchw) == len(feature_strides)
    N = int(xs_nchw[0].shape[0])
    spec_hw = (int(spec_size[0]), int(spec_size[1]))

    # ---------------- static plan + host-side operands ----------------------
    xs_flat = []
    wb_list, rw_list, mask_list = [], [], []
    mask_keys = []

    def add_mask(hw):
        if hw not in mask_keys:
            mask_keys.append(hw)
            mask_list.append(jnp.asarray(_edge_masks(*hw)))
        return mask_keys.index(hw)

    def add_resize(in_hw, out_hw):
        Hi, Wi = in_hw
        Ho, Wo = out_hw
        rw_list.append(jnp.asarray(_bilinear_matrix(Wo, Wi, align_corners).T))  # (Wi, Wo)
        return len(rw_list) - 1, _bilinear_taps(Ho, Hi, align_corners)

    level_plans = []                       # per level: (steps, final_hw)
    for i, stride in enumerate(feature_strides):
        x = xs_nchw[i].astype(jnp.float32)
        _, Cin, H, W = (int(s) for s in x.shape)
        assert H >= 2 and W >= 2, "flat-tap 3x3 conv assumes H, W >= 2"
        xs_flat.append(x.reshape(N, Cin, H * W))
        hw = (H, W)
        upsample = stride != feature_strides[0]
        steps = []
        for (w, b) in params["scale_heads"][i]:
            wb_idx = len(wb_list)
            wb_list.append(_pack_conv_weight(w, b))
            m_idx = add_mask(hw)
            if upsample:
                out_hw = (2 * hw[0], 2 * hw[1])
                rw_idx, h_taps = add_resize(hw, out_hw)
                steps.append(("conv_up", wb_idx, m_idx, hw, rw_idx, h_taps, out_hw))
                hw = out_hw
            else:
                steps.append(("conv", wb_idx, m_idx, hw))
        level_plans.append((steps, hw))

    out_hw = level_plans[0][1]
    cross_plans = []                       # per level i>0: None (plain add) or resize info
    for i in range(1, len(feature_strides)):
        hwi = level_plans[i][1]
        if hwi == out_hw:
            cross_plans.append(None)       # already at target resolution -> fused add only
        else:
            rw_idx, h_taps = add_resize(hwi, out_hw)
            cross_plans.append((rw_idx, h_taps, hwi))

    if out_hw != spec_hw:
        final_rw_idx, final_h_taps = add_resize(out_hw, spec_hw)
    else:
        final_rw_idx, final_h_taps = None, None

    w_out, b_out = params["out_layer"]
    n_cls = int(w_out.shape[0])
    wb_out_idx = len(wb_list)
    wb_list.append(_pack_conv_weight(w_out, b_out))
    mask_out_idx = add_mask(spec_hw)

    HW_spec = spec_hw[0] * spec_hw[1]
    n_x, n_wb, n_rw = len(xs_flat), len(wb_list), len(rw_list)

    # ---------------- the fused kernel (one sample per grid step) -----------
    def kernel(*refs):
        x_refs = refs[:n_x]
        wb_refs = refs[n_x:n_x + n_wb]
        rw_refs = refs[n_x + n_wb:n_x + n_wb + n_rw]
        mask_refs = refs[n_x + n_wb + n_rw:-1]
        o_ref = refs[-1]

        def conv3x3(x, wb_ref, mask_ref, hw, relu=True):
            # x: (Cin, HW) lane-dense.  One (Cout,9Cin+1)@(9Cin+1,HW) MXU matmul
            # over shifted flat taps + ones row (bias folded into the weight).
            H, W = hw
            HW = H * W
            Cin = x.shape[0]
            zpad = jnp.zeros((Cin, W + 1), jnp.float32)
            xp = jnp.concatenate([zpad, x, zpad], axis=1)    # vertical OOB -> zeros
            mask_l = mask_ref[0:1, :]                        # dx=-1 row-wrap kill
            mask_r = mask_ref[1:2, :]                        # dx=+1 row-wrap kill
            taps = []
            for ky in range(3):
                for kx in range(3):
                    s = (ky - 1) * W + (kx - 1) + W + 1      # static slice start
                    t = xp[:, s:s + HW]
                    if kx == 0:
                        t = t * mask_l
                    elif kx == 2:
                        t = t * mask_r
                    taps.append(t)
            taps.append(jnp.ones((1, HW), jnp.float32))      # bias row
            p = jnp.concatenate(taps, axis=0)                # (9*Cin+1, HW)
            acc = jnp.dot(wb_ref[...], p, preferred_element_type=jnp.float32)
            if relu:
                acc = jnp.maximum(acc, 0.0)                  # ConvModule ReLU
            return acc                                       # (Cout, HW)

        def resize_sep(x, in_hw, to_hw, rw_ref, h_taps):
            # Separable bilinear resize of a flat (C, Hi*Wi) slab -> (C, Ho*Wo).
            Hi, Wi = in_hw
            C = x.shape[0]
            # width stage: stack the Hi row-blocks on sublanes, one MXU matmul
            xb = jnp.concatenate([x[:, h * Wi:(h + 1) * Wi] for h in range(Hi)], axis=0)
            yb = jnp.dot(xb, rw_ref[...], preferred_element_type=jnp.float32)  # (Hi*C, Wo)
            # height stage: <=2-tap weighted sums of row-blocks (host constants)
            out_blocks = []
            for taps in h_taps:
                h0, w0 = taps[0]
                blk = yb[h0 * C:(h0 + 1) * C, :]
                if w0 != 1.0:
                    blk = blk * np.float32(w0)
                for h1, w1 in taps[1:]:
                    blk = blk + yb[h1 * C:(h1 + 1) * C, :] * np.float32(w1)
                out_blocks.append(blk)
            return jnp.concatenate(out_blocks, axis=1)       # (C, Ho*Wo)

        # ---- scale heads ----
        head_outs = []
        for i, (steps, _) in enumerate(level_plans):
            h = x_refs[i][0]                                 # (Cin_i, HW_i)
            for st in steps:
                if st[0] == "conv":
                    _, wb_idx, m_idx, hw = st
                    h = conv3x3(h, wb_refs[wb_idx], mask_refs[m_idx], hw)
                else:                                        # "conv_up": conv + x2 upsample
                    _, wb_idx, m_idx, hw, rw_idx, h_taps, ohw = st
                    h = conv3x3(h, wb_refs[wb_idx], mask_refs[m_idx], hw)
                    h = resize_sep(h, hw, ohw, rw_refs[rw_idx], h_taps)
            head_outs.append(h)

        # ---- cross-scale accumulation (resize skipped when already at out_hw)
        out = head_outs[0]
        for i in range(1, len(head_outs)):
            cp = cross_plans[i - 1]
            if cp is None:
                out = out + head_outs[i]
            else:
                rw_idx, h_taps, hwi = cp
                out = out + resize_sep(head_outs[i], hwi, out_hw,
                                       rw_refs[rw_idx], h_taps)

        # ---- final bilinear resize to spec_size ----
        if final_rw_idx is not None:
            out = resize_sep(out, out_hw, spec_hw, rw_refs[final_rw_idx], final_h_taps)

        # ---- out_layer: ConvModule(channels -> 2, act=ReLU), then sigmoid ----
        out = conv3x3(out, wb_refs[wb_out_idx], mask_refs[mask_out_idx], spec_hw)
        out = jax.nn.sigmoid(out)
        o_ref[0] = out.astype(o_ref.dtype)

    # ---------------- pallas_call wiring ------------------------------------
    in_specs, args = [], []
    for xf in xs_flat:                                       # per-sample blocks
        in_specs.append(pl.BlockSpec((1,) + tuple(xf.shape[1:]), lambda n: (n, 0, 0)))
        args.append(xf)
    for arr in wb_list + rw_list + mask_list:                # constant (resident) blocks
        in_specs.append(pl.BlockSpec(tuple(arr.shape), lambda n: (0, 0)))
        args.append(arr)

    out = pl.pallas_call(
        kernel,
        out_shape=jax.ShapeDtypeStruct((N, n_cls, HW_spec), jnp.float32),
        grid=(N,),
        in_specs=in_specs,
        out_specs=pl.BlockSpec((1, n_cls, HW_spec), lambda n: (n, 0, 0)),
        compiler_params=pltpu.CompilerParams(
            dimension_semantics=("parallel",),     # v7x: one sample per TensorCore
            vmem_limit_bytes=_VMEM_LIMIT),
    )(*args)
    return out.reshape(N, n_cls, spec_hw[0], spec_hw[1])


# --------------------------------------------------------------------------
# Parameters (matches FPNHead: ConvModule(3x3, pad=1, act=ReLU) stacks + out_layer)
# --------------------------------------------------------------------------
def init_fpn_head_params(key, feature_strides, in_channels, channels, num_classes=2):
    params = {"scale_heads": [], "out_layer": None}
    keys = iter(jax.random.split(key, 128))
    for i, stride in enumerate(feature_strides):
        head_length = max(1, int(np.log2(stride) - np.log2(feature_strides[0])))
        convs = []
        for k in range(head_length):
            cin = in_channels[i] if k == 0 else channels
            w = 0.1 * jax.random.normal(next(keys), (channels, cin, 3, 3), jnp.float32)
            b = 0.1 * jax.random.normal(next(keys), (channels,), jnp.float32)
            convs.append((w, b))
        params["scale_heads"].append(convs)
    w = 0.1 * jax.random.normal(next(keys), (num_classes, channels, 3, 3), jnp.float32)
    b = 0.1 * jax.random.normal(next(keys), (num_classes,), jnp.float32)
    params["out_layer"] = (w, b)
    return params


# --------------------------------------------------------------------------
if __name__ == "__main__":
    feature_strides = (4, 8)
    in_channels = (4, 4)
    channels = 8
    spec_size = (32, 32)
    batch = 2

    key = jax.random.PRNGKey(0)
    k0, k1, kp = jax.random.split(key, 3)
    x0 = jax.random.normal(k0, (batch, in_channels[0], 16, 16), jnp.float32)  # stride 4
    x1 = jax.random.normal(k1, (batch, in_channels[1], 8, 8), jnp.float32)    # stride 8

    params = init_fpn_head_params(kp, feature_strides, in_channels, channels)

    out = fpn_head_forward(params, [x0, x1], feature_strides, spec_size,
                           align_corners=False)
    out = jax.block_until_ready(out)

    assert out.shape == (batch, 2, spec_size[0], spec_size[1]), out.shape
    assert bool(jnp.all(jnp.isfinite(out)))
    assert bool(jnp.all((out >= 0.0) & (out <= 1.0)))   # sigmoid output range
    print("KERNEL_OK")
</pallas_src>

<mosaic_0001>
module attributes {stable_mosaic.version = 11 : i64} {
  func.func @kernel(%arg0: i32, %arg1: memref<1x4x256xf32, #tpu.memory_space<vmem>>, %arg2: memref<1x4x64xf32, #tpu.memory_space<vmem>>, %arg3: memref<8x37xf32, #tpu.memory_space<vmem>>, %arg4: memref<8x37xf32, #tpu.memory_space<vmem>>, %arg5: memref<2x73xf32, #tpu.memory_space<vmem>>, %arg6: memref<8x16xf32, #tpu.memory_space<vmem>>, %arg7: memref<16x32xf32, #tpu.memory_space<vmem>>, %arg8: memref<2x256xf32, #tpu.memory_space<vmem>>, %arg9: memref<2x64xf32, #tpu.memory_space<vmem>>, %arg10: memref<2x1024xf32, #tpu.memory_space<vmem>>, %arg11: memref<1x2x1024xf32, #tpu.memory_space<vmem>>) attributes {dimension_semantics = [#tpu.dimension_semantics<parallel>], iteration_bounds = array<i64: 2>, scalar_prefetch = 0 : i64, scratch_operands = 0 : i64, tpu.core_type = #tpu.core_type<tc>, window_params = [{transform_indices = @transform_0, window_bounds = array<i64: 1, 4, 256>}, {transform_indices = @transform_1, window_bounds = array<i64: 1, 4, 64>}, {pipeline_mode = #tpu.pipeline_mode<synchronous>, transform_indices = @transform_2, window_bounds = array<i64: 8, 37>}, {pipeline_mode = #tpu.pipeline_mode<synchronous>, transform_indices = @transform_3, window_bounds = array<i64: 8, 37>}, {pipeline_mode = #tpu.pipeline_mode<synchronous>, transform_indices = @transform_4, window_bounds = array<i64: 2, 73>}, {pipeline_mode = #tpu.pipeline_mode<synchronous>, transform_indices = @transform_5, window_bounds = array<i64: 8, 16>}, {pipeline_mode = #tpu.pipeline_mode<synchronous>, transform_indices = @transform_6, window_bounds = array<i64: 16, 32>}, {pipeline_mode = #tpu.pipeline_mode<synchronous>, transform_indices = @transform_7, window_bounds = array<i64: 2, 256>}, {pipeline_mode = #tpu.pipeline_mode<synchronous>, transform_indices = @transform_8, window_bounds = array<i64: 2, 64>}, {pipeline_mode = #tpu.pipeline_mode<synchronous>, transform_indices = @transform_9, window_bounds = array<i64: 2, 1024>}, {transform_indices = @transform_10, window_bounds = array<i64: 1, 2, 1024>}]} {
    %c0 = arith.constant 0 : index
    %c0_0 = arith.constant 0 : index
    %c0_1 = arith.constant 0 : index
    %0 = vector.load %arg1[%c0, %c0_0, %c0_1] : memref<1x4x256xf32, #tpu.memory_space<vmem>>, vector<1x4x256xf32>
    %1 = vector.shape_cast %0 : vector<1x4x256xf32> to vector<4x256xf32>
    %cst = arith.constant 0.000000e+00 : f32
    %2 = vector.broadcast %cst : f32 to vector<4x17xf32>
    %3 = tpu.concatenate %2, %1, %2 in 1 : vector<4x17xf32>, vector<4x256xf32>, vector<4x17xf32> -> vector<4x290xf32>
    %c0_2 = arith.constant 0 : index
    %c0_3 = arith.constant 0 : index
    %4 = vector.load %arg8[%c0_2, %c0_3] : memref<2x256xf32, #tpu.memory_space<vmem>>, vector<1x256xf32>
    %c1 = arith.constant 1 : index
    %c0_4 = arith.constant 0 : index
    %5 = vector.load %arg8[%c1, %c0_4] : memref<2x256xf32, #tpu.memory_space<vmem>>, vector<1x256xf32>
    %6 = vector.extract_strided_slice %3 {offsets = [0, 0], sizes = [4, 256], strides = [1, 1]} : vector<4x290xf32> to vector<4x256xf32>
    %7 = vector.broadcast %4 : vector<1x256xf32> to vector<4x256xf32>
    %8 = arith.mulf %6, %7 : vector<4x256xf32>
    %9 = vector.extract_strided_slice %3 {offsets = [0, 1], sizes = [4, 256], strides = [1, 1]} : vector<4x290xf32> to vector<4x256xf32>
    %10 = vector.extract_strided_slice %3 {offsets = [0, 2], sizes = [4, 256], strides = [1, 1]} : vector<4x290xf32> to vector<4x256xf32>
    %11 = vector.broadcast %5 : vector<1x256xf32> to vector<4x256xf32>
    %12 = arith.mulf %10, %11 : vector<4x256xf32>
    %13 = vector.extract_strided_slice %3 {offsets = [0, 16], sizes = [4, 256], strides = [1, 1]} : vector<4x290xf32> to vector<4x256xf32>
    %14 = vector.broadcast %4 : vector<1x256xf32> to vector<4x256xf32>
    %15 = arith.mulf %13, %14 : vector<4x256xf32>
    %16 = vector.extract_strided_slice %3 {offsets = [0, 17], sizes = [4, 256], strides = [1, 1]} : vector<4x290xf32> to vector<4x256xf32>
    %17 = vector.extract_strided_slice %3 {offsets = [0, 18], sizes = [4, 256], strides = [1, 1]} : vector<4x290xf32> to vector<4x256xf32>
    %18 = vector.broadcast %5 : vector<1x256xf32> to vector<4x256xf32>
    %19 = arith.mulf %17, %18 : vector<4x256xf32>
    %20 = vector.extract_strided_slice %3 {offsets = [0, 32], sizes = [4, 256], strides = [1, 1]} : vector<4x290xf32> to vector<4x256xf32>
    %21 = vector.broadcast %4 : vector<1x256xf32> to vector<4x256xf32>
    %22 = arith.mulf %20, %21 : vector<4x256xf32>
    %23 = vector.extract_strided_slice %3 {offsets = [0, 33], sizes = [4, 256], strides = [1, 1]} : vector<4x290xf32> to vector<4x256xf32>
    %24 = vector.extract_strided_slice %3 {offsets = [0, 34], sizes = [4, 256], strides = [1, 1]} : vector<4x290xf32> to vector<4x256xf32>
    %25 = vector.broadcast %5 : vector<1x256xf32> to vector<4x256xf32>
    %26 = arith.mulf %24, %25 : vector<4x256xf32>
    %cst_5 = arith.constant 1.000000e+00 : f32
    %27 = vector.broadcast %cst_5 : f32 to vector<1x256xf32>
    %28 = tpu.concatenate %8, %9, %12, %15, %16, %19, %22, %23, %26, %27 in 0 : vector<4x256xf32>, vector<4x256xf32>, vector<4x256xf32>, vector<4x256xf32>, vector<4x256xf32>, vector<4x256xf32>, vector<4x256xf32>, vector<4x256xf32>, vector<4x256xf32>, vector<1x256xf32> -> vector<37x256xf32>
    %c0_6 = arith.constant 0 : index
    %c0_7 = arith.constant 0 : index
    %29 = vector.load %arg3[%c0_6, %c0_7] : memref<8x37xf32, #tpu.memory_space<vmem>>, vector<8x37xf32>
    %cst_8 = arith.constant dense<0.000000e+00> : vector<8x256xf32>
    %30 = tpu.matmul %29, %28, %cst_8 {dimension_numbers = #tpu.dot_dimension_numbers<[1], [0], [0], [1], [0, 0, 1, 1], [], []>} : vector<8x37xf32>, vector<37x256xf32>, vector<8x256xf32> -> vector<8x256xf32>
    %cst_9 = arith.constant 0.000000e+00 : f32
    %31 = vector.broadcast %cst_9 : f32 to vector<8x256xf32>
    %32 = arith.maximumf %30, %31 : vector<8x256xf32>
    %c0_10 = arith.constant 0 : index
    %c0_11 = arith.constant 0 : index
    %c0_12 = arith.constant 0 : index
    %33 = vector.load %arg2[%c0_10, %c0_11, %c0_12] : memref<1x4x64xf32, #tpu.memory_space<vmem>>, vector<1x4x64xf32>
    %34 = vector.shape_cast %33 : vector<1x4x64xf32> to vector<4x64xf32>
    %cst_13 = arith.constant 0.000000e+00 : f32
    %35 = vector.broadcast %cst_13 : f32 to vector<4x9xf32>
    %36 = tpu.concatenate %35, %34, %35 in 1 : vector<4x9xf32>, vector<4x64xf32>, vector<4x9xf32> -> vector<4x82xf32>
    %c0_14 = arith.constant 0 : index
    %c0_15 = arith.constant 0 : index
    %37 = vector.load %arg9[%c0_14, %c0_15] : memref<2x64xf32, #tpu.memory_space<vmem>>, vector<1x64xf32>
    %c1_16 = arith.constant 1 : index
    %c0_17 = arith.constant 0 : index
    %38 = vector.load %arg9[%c1_16, %c0_17] : memref<2x64xf32, #tpu.memory_space<vmem>>, vector<1x64xf32>
    %39 = vector.extract_strided_slice %36 {offsets = [0, 0], sizes = [4, 64], strides = [1, 1]} : vector<4x82xf32> to vector<4x64xf32>
    %40 = vector.broadcast %37 : vector<1x64xf32> to vector<4x64xf32>
    %41 = arith.mulf %39, %40 : vector<4x64xf32>
    %42 = vector.extract_strided_slice %36 {offsets = [0, 1], sizes = [4, 64], strides = [1, 1]} : vector<4x82xf32> to vector<4x64xf32>
    %43 = vector.extract_strided_slice %36 {offsets = [0, 2], sizes = [4, 64], strides = [1, 1]} : vector<4x82xf32> to vector<4x64xf32>
    %44 = vector.broadcast %38 : vector<1x64xf32> to vector<4x64xf32>
    %45 = arith.mulf %43, %44 : vector<4x64xf32>
    %46 = vector.extract_strided_slice %36 {offsets = [0, 8], sizes = [4, 64], strides = [1, 1]} : vector<4x82xf32> to vector<4x64xf32>
    %47 = vector.broadcast %37 : vector<1x64xf32> to vector<4x64xf32>
    %48 = arith.mulf %46, %47 : vector<4x64xf32>
    %49 = vector.extract_strided_slice %36 {offsets = [0, 9], sizes = [4, 64], strides = [1, 1]} : vector<4x82xf32> to vector<4x64xf32>
    %50 = vector.extract_strided_slice %36 {offsets = [0, 10], sizes = [4, 64], strides = [1, 1]} : vector<4x82xf32> to vector<4x64xf32>
    %51 = vector.broadcast %38 : vector<1x64xf32> to vector<4x64xf32>
    %52 = arith.mulf %50, %51 : vector<4x64xf32>
    %53 = vector.extract_strided_slice %36 {offsets = [0, 16], sizes = [4, 64], strides = [1, 1]} : vector<4x82xf32> to vector<4x64xf32>
    %54 = vector.broadcast %37 : vector<1x64xf32> to vector<4x64xf32>
    %55 = arith.mulf %53, %54 : vector<4x64xf32>
    %56 = vector.extract_strided_slice %36 {offsets = [0, 17], sizes = [4, 64], strides = [1, 1]} : vector<4x82xf32> to vector<4x64xf32>
    %57 = vector.extract_strided_slice %36 {offsets = [0, 18], sizes = [4, 64], strides = [1, 1]} : vector<4x82xf32> to vector<4x64xf32>
    %58 = vector.broadcast %38 : vector<1x64xf32> to vector<4x64xf32>
    %59 = arith.mulf %57, %58 : vector<4x64xf32>
    %cst_18 = arith.constant 1.000000e+00 : f32
    %60 = vector.broadcast %cst_18 : f32 to vector<1x64xf32>
    %61 = tpu.concatenate %41, %42, %45, %48, %49, %52, %55, %56, %59, %60 in 0 : vector<4x64xf32>, vector<4x64xf32>, vector<4x64xf32>, vector<4x64xf32>, vector<4x64xf32>, vector<4x64xf32>, vector<4x64xf32>, vector<4x64xf32>, vector<4x64xf32>, vector<1x64xf32> -> vector<37x64xf32>
    %c0_19 = arith.constant 0 : index
    %c0_20 = arith.constant 0 : index
    %62 = vector.load %arg4[%c0_19, %c0_20] : memref<8x37xf32, #tpu.memory_space<vmem>>, vector<8x37xf32>
    %cst_21 = arith.constant dense<0.000000e+00> : vector<8x64xf32>
    %63 = tpu.matmul %62, %61, %cst_21 {dimension_numbers = #tpu.dot_dimension_numbers<[1], [0], [0], [1], [0, 0, 1, 1], [], []>} : vector<8x37xf32>, vector<37x64xf32>, vector<8x64xf32> -> vector<8x64xf32>
    %cst_22 = arith.constant 0.000000e+00 : f32
    %64 = vector.broadcast %cst_22 : f32 to vector<8x64xf32>
    %65 = arith.maximumf %63, %64 : vector<8x64xf32>
    %66 = vector.extract_strided_slice %65 {offsets = [0, 0], sizes = [8, 8], strides = [1, 1]} : vector<8x64xf32> to vector<8x8xf32>
    %67 = vector.extract_strided_slice %65 {offsets = [0, 8], sizes = [8, 8], strides = [1, 1]} : vector<8x64xf32> to vector<8x8xf32>
    %68 = vector.extract_strided_slice %65 {offsets = [0, 16], sizes = [8, 8], strides = [1, 1]} : vector<8x64xf32> to vector<8x8xf32>
    %69 = vector.extract_strided_slice %65 {offsets = [0, 24], sizes = [8, 8], strides = [1, 1]} : vector<8x64xf32> to vector<8x8xf32>
    %70 = vector.extract_strided_slice %65 {offsets = [0, 32], sizes = [8, 8], strides = [1, 1]} : vector<8x64xf32> to vector<8x8xf32>
    %71 = vector.extract_strided_slice %65 {offsets = [0, 40], sizes = [8, 8], strides = [1, 1]} : vector<8x64xf32> to vector<8x8xf32>
    %72 = vector.extract_strided_slice %65 {offsets = [0, 48], sizes = [8, 8], strides = [1, 1]} : vector<8x64xf32> to vector<8x8xf32>
    %73 = vector.extract_strided_slice %65 {offsets = [0, 56], sizes = [8, 8], strides = [1, 1]} : vector<8x64xf32> to vector<8x8xf32>
    %74 = tpu.concatenate %66, %67, %68, %69, %70, %71, %72, %73 in 0 : vector<8x8xf32>, vector<8x8xf32>, vector<8x8xf32>, vector<8x8xf32>, vector<8x8xf32>, vector<8x8xf32>, vector<8x8xf32>, vector<8x8xf32> -> vector<64x8xf32>
    %c0_23 = arith.constant 0 : index
    %c0_24 = arith.constant 0 : index
    %75 = vector.load %arg6[%c0_23, %c0_24] : memref<8x16xf32, #tpu.memory_space<vmem>>, vector<8x16xf32>
    %cst_25 = arith.constant dense<0.000000e+00> : vector<64x16xf32>
    %76 = tpu.matmul %74, %75, %cst_25 {dimension_numbers = #tpu.dot_dimension_numbers<[1], [0], [0], [1], [0, 0, 1, 1], [], []>} : vector<64x8xf32>, vector<8x16xf32>, vector<64x16xf32> -> vector<64x16xf32>
    %77 = vector.extract_strided_slice %76 {offsets = [0, 0], sizes = [8, 16], strides = [1, 1]} : vector<64x16xf32> to vector<8x16xf32>
    %78 = vector.extract_strided_slice %76 {offsets = [0, 0], sizes = [8, 16], strides = [1, 1]} : vector<64x16xf32> to vector<8x16xf32>
    %cst_26 = arith.constant 7.500000e-01 : f32
    %79 = vector.broadcast %cst_26 : f32 to vector<8x16xf32>
    %80 = arith.mulf %78, %79 : vector<8x16xf32>
    %81 = vector.extract_strided_slice %76 {offsets = [8, 0], sizes = [8, 16], strides = [1, 1]} : vector<64x16xf32> to vector<8x16xf32>
    %cst_27 = arith.constant 2.500000e-01 : f32
    %82 = vector.broadcast %cst_27 : f32 to vector<8x16xf32>
    %83 = arith.mulf %81, %82 : vector<8x16xf32>
    %84 = arith.addf %80, %83 : vector<8x16xf32>
    %85 = vector.extract_strided_slice %76 {offsets = [0, 0], sizes = [8, 16], strides = [1, 1]} : vector<64x16xf32> to vector<8x16xf32>
    %cst_28 = arith.constant 2.500000e-01 : f32
    %86 = vector.broadcast %cst_28 : f32 to vector<8x16xf32>
    %87 = arith.mulf %85, %86 : vector<8x16xf32>
    %88 = vector.extract_strided_slice %76 {offsets = [8, 0], sizes = [8, 16], strides = [1, 1]} : vector<64x16xf32> to vector<8x16xf32>
    %cst_29 = arith.constant 7.500000e-01 : f32
    %89 = vector.broadcast %cst_29 : f32 to vector<8x16xf32>
    %90 = arith.mulf %88, %89 : vector<8x16xf32>
    %91 = arith.addf %87, %90 : vector<8x16xf32>
    %92 = vector.extract_strided_slice %76 {offsets = [8, 0], sizes = [8, 16], strides = [1, 1]} : vector<64x16xf32> to vector<8x16xf32>
    %cst_30 = arith.constant 7.500000e-01 : f32
    %93 = vector.broadcast %cst_30 : f32 to vector<8x16xf32>
    %94 = arith.mulf %92, %93 : vector<8x16xf32>
    %95 = vector.extract_strided_slice %76 {offsets = [16, 0], sizes = [8, 16], strides = [1, 1]} : vector<64x16xf32> to vector<8x16xf32>
    %cst_31 = arith.constant 2.500000e-01 : f32
    %96 = vector.broadcast %cst_31 : f32 to vector<8x16xf32>
    %97 = arith.mulf %95, %96 : vector<8x16xf32>
    %98 = arith.addf %94, %97 : vector<8x16xf32>
    %99 = vector.extract_strided_slice %76 {offsets = [8, 0], sizes = [8, 16], strides = [1, 1]} : vector<64x16xf32> to vector<8x16xf32>
    %cst_32 = arith.constant 2.500000e-01 : f32
    %100 = vector.broadcast %cst_32 : f32 to vector<8x16xf32>
    %101 = arith.mulf %99, %100 : vector<8x16xf32>
    %102 = vector.extract_strided_slice %76 {offsets = [16, 0], sizes = [8, 16], strides = [1, 1]} : vector<64x16xf32> to vector<8x16xf32>
    %cst_33 = arith.constant 7.500000e-01 : f32
    %103 = vector.broadcast %cst_33 : f32 to vector<8x16xf32>
    %104 = arith.mulf %102, %103 : vector<8x16xf32>
    %105 = arith.addf %101, %104 : vector<8x16xf32>
    %106 = vector.extract_strided_slice %76 {offsets = [16, 0], sizes = [8, 16], strides = [1, 1]} : vector<64x16xf32> to vector<8x16xf32>
    %cst_34 = arith.constant 7.500000e-01 : f32
    %107 = vector.broadcast %cst_34 : f32 to vector<8x16xf32>
    %108 = arith.mulf %106, %107 : vector<8x16xf32>
    %109 = vector.extract_strided_slice %76 {offsets = [24, 0], sizes = [8, 16], strides = [1, 1]} : vector<64x16xf32> to vector<8x16xf32>
    %cst_35 = arith.constant 2.500000e-01 : f32
    %110 = vector.broadcast %cst_35 : f32 to vector<8x16xf32>
    %111 = arith.mulf %109, %110 : vector<8x16xf32>
    %112 = arith.addf %108, %111 : vector<8x16xf32>
    %113 = vector.extract_strided_slice %76 {offsets = [16, 0], sizes = [8, 16], strides = [1, 1]} : vector<64x16xf32> to vector<8x16xf32>
    %cst_36 = arith.constant 2.500000e-01 : f32
    %114 = vector.broadcast %cst_36 : f32 to vector<8x16xf32>
    %115 = arith.mulf %113, %114 : vector<8x16xf32>
    %116 = vector.extract_strided_slice %76 {offsets = [24, 0], sizes = [8, 16], strides = [1, 1]} : vector<64x16xf32> to vector<8x16xf32>
    %cst_37 = arith.constant 7.500000e-01 : f32
    %117 = vector.broadcast %cst_37 : f32 to vector<8x16xf32>
    %118 = arith.mulf %116, %117 : vector<8x16xf32>
    %119 = arith.addf %115, %118 : vector<8x16xf32>
    %120 = vector.extract_strided_slice %76 {offsets = [24, 0], sizes = [8, 16], strides = [1, 1]} : vector<64x16xf32> to vector<8x16xf32>
    %cst_38 = arith.constant 7.500000e-01 : f32
    %121 = vector.broadcast %cst_38 : f32 to vector<8x16xf32>
    %122 = arith.mulf %120, %121 : vector<8x16xf32>
    %123 = vector.extract_strided_slice %76 {offsets = [32, 0], sizes = [8, 16], strides = [1, 1]} : vector<64x16xf32> to vector<8x16xf32>
    %cst_39 = arith.constant 2.500000e-01 : f32
    %124 = vector.broadcast %cst_39 : f32 to vector<8x16xf32>
    %125 = arith.mulf %123, %124 : vector<8x16xf32>
    %126 = arith.addf %122, %125 : vector<8x16xf32>
    %127 = vector.extract_strided_slice %76 {offsets = [24, 0], sizes = [8, 16], strides = [1, 1]} : vector<64x16xf32> to vector<8x16xf32>
    %cst_40 = arith.constant 2.500000e-01 : f32
    %128 = vector.broadcast %cst_40 : f32 to vector<8x16xf32>
    %129 = arith.mulf %127, %128 : vector<8x16xf32>
    %130 = vector.extract_strided_slice %76 {offsets = [32, 0], sizes = [8, 16], strides = [1, 1]} : vector<64x16xf32> to vector<8x16xf32>
    %cst_41 = arith.constant 7.500000e-01 : f32
    %131 = vector.broadcast %cst_41 : f32 to vector<8x16xf32>
    %132 = arith.mulf %130, %131 : vector<8x16xf32>
    %133 = arith.addf %129, %132 : vector<8x16xf32>
    %134 = vector.extract_strided_slice %76 {offsets = [32, 0], sizes = [8, 16], strides = [1, 1]} : vector<64x16xf32> to vector<8x16xf32>
    %cst_42 = arith.constant 7.500000e-01 : f32
    %135 = vector.broadcast %cst_42 : f32 to vector<8x16xf32>
    %136 = arith.mulf %134, %135 : vector<8x16xf32>
    %137 = vector.extract_strided_slice %76 {offsets = [40, 0], sizes = [8, 16], strides = [1, 1]} : vector<64x16xf32> to vector<8x16xf32>
    %cst_43 = arith.constant 2.500000e-01 : f32
    %138 = vector.broadcast %cst_43 : f32 to vector<8x16xf32>
    %139 = arith.mulf %137, %138 : vector<8x16xf32>
    %140 = arith.addf %136, %139 : vector<8x16xf32>
    %141 = vector.extract_strided_slice %76 {offsets = [32, 0], sizes = [8, 16], strides = [1, 1]} : vector<64x16xf32> to vector<8x16xf32>
    %cst_44 = arith.constant 2.500000e-01 : f32
    %142 = vector.broadcast %cst_44 : f32 to vector<8x16xf32>
    %143 = arith.mulf %141, %142 : vector<8x16xf32>
    %144 = vector.extract_strided_slice %76 {offsets = [40, 0], sizes = [8, 16], strides = [1, 1]} : vector<64x16xf32> to vector<8x16xf32>
    %cst_45 = arith.constant 7.500000e-01 : f32
    %145 = vector.broadcast %cst_45 : f32 to vector<8x16xf32>
    %146 = arith.mulf %144, %145 : vector<8x16xf32>
    %147 = arith.addf %143, %146 : vector<8x16xf32>
    %148 = vector.extract_strided_slice %76 {offsets = [40, 0], sizes = [8, 16], strides = [1, 1]} : vector<64x16xf32> to vector<8x16xf32>
    %cst_46 = arith.constant 7.500000e-01 : f32
    %149 = vector.broadcast %cst_46 : f32 to vector<8x16xf32>
    %150 = arith.mulf %148, %149 : vector<8x16xf32>
    %151 = vector.extract_strided_slice %76 {offsets = [48, 0], sizes = [8, 16], strides = [1, 1]} : vector<64x16xf32> to vector<8x16xf32>
    %cst_47 = arith.constant 2.500000e-01 : f32
    %152 = vector.broadcast %cst_47 : f32 to vector<8x16xf32>
    %153 = arith.mulf %151, %152 : vector<8x16xf32>
    %154 = arith.addf %150, %153 : vector<8x16xf32>
    %155 = vector.extract_strided_slice %76 {offsets = [40, 0], sizes = [8, 16], strides = [1, 1]} : vector<64x16xf32> to vector<8x16xf32>
    %cst_48 = arith.constant 2.500000e-01 : f32
    %156 = vector.broadcast %cst_48 : f32 to vector<8x16xf32>
    %157 = arith.mulf %155, %156 : vector<8x16xf32>
    %158 = vector.extract_strided_slice %76 {offsets = [48, 0], sizes = [8, 16], strides = [1, 1]} : vector<64x16xf32> to vector<8x16xf32>
    %cst_49 = arith.constant 7.500000e-01 : f32
    %159 = vector.broadcast %cst_49 : f32 to vector<8x16xf32>
    %160 = arith.mulf %158, %159 : vector<8x16xf32>
    %161 = arith.addf %157, %160 : vector<8x16xf32>
    %162 = vector.extract_strided_slice %76 {offsets = [48, 0], sizes = [8, 16], strides = [1, 1]} : vector<64x16xf32> to vector<8x16xf32>
    %cst_50 = arith.constant 7.500000e-01 : f32
    %163 = vector.broadcast %cst_50 : f32 to vector<8x16xf32>
    %164 = arith.mulf %162, %163 : vector<8x16xf32>
    %165 = vector.extract_strided_slice %76 {offsets = [56, 0], sizes = [8, 16], strides = [1, 1]} : vector<64x16xf32> to vector<8x16xf32>
    %cst_51 = arith.constant 2.500000e-01 : f32
    %166 = vector.broadcast %cst_51 : f32 to vector<8x16xf32>
    %167 = arith.mulf %165, %166 : vector<8x16xf32>
    %168 = arith.addf %164, %167 : vector<8x16xf32>
    %169 = vector.extract_strided_slice %76 {offsets = [48, 0], sizes = [8, 16], strides = [1, 1]} : vector<64x16xf32> to vector<8x16xf32>
    %cst_52 = arith.constant 2.500000e-01 : f32
    %170 = vector.broadcast %cst_52 : f32 to vector<8x16xf32>
    %171 = arith.mulf %169, %170 : vector<8x16xf32>
    %172 = vector.extract_strided_slice %76 {offsets = [56, 0], sizes = [8, 16], strides = [1, 1]} : vector<64x16xf32> to vector<8x16xf32>
    %cst_53 = arith.constant 7.500000e-01 : f32
    %173 = vector.broadcast %cst_53 : f32 to vector<8x16xf32>
    %174 = arith.mulf %172, %173 : vector<8x16xf32>
    %175 = arith.addf %171, %174 : vector<8x16xf32>
    %176 = vector.extract_strided_slice %76 {offsets = [56, 0], sizes = [8, 16], strides = [1, 1]} : vector<64x16xf32> to vector<8x16xf32>
    %177 = tpu.concatenate %77, %84, %91, %98, %105, %112, %119, %126, %133, %140, %147, %154, %161, %168, %175, %176 in 1 : vector<8x16xf32>, vector<8x16xf32>, vector<8x16xf32>, vector<8x16xf32>, vector<8x16xf32>, vector<8x16xf32>, vector<8x16xf32>, vector<8x16xf32>, vector<8x16xf32>, vector<8x16xf32>, vector<8x16xf32>, vector<8x16xf32>, vector<8x16xf32>, vector<8x16xf32>, vector<8x16xf32>, vector<8x16xf32> -> vector<8x256xf32>
    %178 = arith.addf %32, %177 : vector<8x256xf32>
    %179 = vector.extract_strided_slice %178 {offsets = [0, 0], sizes = [8, 16], strides = [1, 1]} : vector<8x256xf32> to vector<8x16xf32>
    %180 = vector.extract_strided_slice %178 {offsets = [0, 16], sizes = [8, 16], strides = [1, 1]} : vector<8x256xf32> to vector<8x16xf32>
    %181 = vector.extract_strided_slice %178 {offsets = [0, 32], sizes = [8, 16], strides = [1, 1]} : vector<8x256xf32> to vector<8x16xf32>
    %182 = vector.extract_strided_slice %178 {offsets = [0, 48], sizes = [8, 16], strides = [1, 1]} : vector<8x256xf32> to vector<8x16xf32>
    %183 = vector.extract_strided_slice %178 {offsets = [0, 64], sizes = [8, 16], strides = [1, 1]} : vector<8x256xf32> to vector<8x16xf32>
    %184 = vector.extract_strided_slice %178 {offsets = [0, 80], sizes = [8, 16], strides = [1, 1]} : vector<8x256xf32> to vector<8x16xf32>
    %185 = vector.extract_strided_slice %178 {offsets = [0, 96], sizes = [8, 16], strides = [1, 1]} : vector<8x256xf32> to vector<8x16xf32>
    %186 = vector.extract_strided_slice %178 {offsets = [0, 112], sizes = [8, 16], strides = [1, 1]} : vector<8x256xf32> to vector<8x16xf32>
    %187 = vector.extract_strided_slice %178 {offsets = [0, 128], sizes = [8, 16], strides = [1, 1]} : vector<8x256xf32> to vector<8x16xf32>
    %188 = vector.extract_strided_slice %178 {offsets = [0, 144], sizes = [8, 16], strides = [1, 1]} : vector<8x256xf32> to vector<8x16xf32>
    %189 = vector.extract_strided_slice %178 {offsets = [0, 160], sizes = [8, 16], strides = [1, 1]} : vector<8x256xf32> to vector<8x16xf32>
    %190 = vector.extract_strided_slice %178 {offsets = [0, 176], sizes = [8, 16], strides = [1, 1]} : vector<8x256xf32> to vector<8x16xf32>
    %191 = vector.extract_strided_slice %178 {offsets = [0, 192], sizes = [8, 16], strides = [1, 1]} : vector<8x256xf32> to vector<8x16xf32>
    %192 = vector.extract_strided_slice %178 {offsets = [0, 208], sizes = [8, 16], strides = [1, 1]} : vector<8x256xf32> to vector<8x16xf32>
    %193 = vector.extract_strided_slice %178 {offsets = [0, 224], sizes = [8, 16], strides = [1, 1]} : vector<8x256xf32> to vector<8x16xf32>
    %194 = vector.extract_strided_slice %178 {offsets = [0, 240], sizes = [8, 16], strides = [1, 1]} : vector<8x256xf32> to vector<8x16xf32>
    %195 = tpu.concatenate %179, %180, %181, %182, %183, %184, %185, %186, %187, %188, %189, %190, %191, %192, %193, %194 in 0 : vector<8x16xf32>, vector<8x16xf32>, vector<8x16xf32>, vector<8x16xf32>, vector<8x16xf32>, vector<8x16xf32>, vector<8x16xf32>, vector<8x16xf32>, vector<8x16xf32>, vector<8x16xf32>, vector<8x16xf32>, vector<8x16xf32>, vector<8x16xf32>, vector<8x16xf32>, vector<8x16xf32>, vector<8x16xf32> -> vector<128x16xf32>
    %c0_54 = arith.constant 0 : index
    %c0_55 = arith.constant 0 : index
    %196 = vector.load %arg7[%c0_54, %c0_55] : memref<16x32xf32, #tpu.memory_space<vmem>>, vector<16x32xf32>
    %cst_56 = arith.constant dense<0.000000e+00> : vector<128x32xf32>
    %197 = tpu.matmul %195, %196, %cst_56 {dimension_numbers = #tpu.dot_dimension_numbers<[1], [0], [0], [1], [0, 0, 1, 1], [], []>} : vector<128x16xf32>, vector<16x32xf32>, vector<128x32xf32> -> vector<128x32xf32>
    %198 = vector.extract_strided_slice %197 {offsets = [0, 0], sizes = [8, 32], strides = [1, 1]} : vector<128x32xf32> to vector<8x32xf32>
    %199 = vector.extract_strided_slice %197 {offsets = [0, 0], sizes = [8, 32], strides = [1, 1]} : vector<128x32xf32> to vector<8x32xf32>
    %cst_57 = arith.constant 7.500000e-01 : f32
    %200 = vector.broadcast %cst_57 : f32 to vector<8x32xf32>
    %201 = arith.mulf %199, %200 : vector<8x32xf32>
    %202 = vector.extract_strided_slice %197 {offsets = [8, 0], sizes = [8, 32], strides = [1, 1]} : vector<128x32xf32> to vector<8x32xf32>
    %cst_58 = arith.constant 2.500000e-01 : f32
    %203 = vector.broadcast %cst_58 : f32 to vector<8x32xf32>
    %204 = arith.mulf %202, %203 : vector<8x32xf32>
    %205 = arith.addf %201, %204 : vector<8x32xf32>
    %206 = vector.extract_strided_slice %197 {offsets = [0, 0], sizes = [8, 32], strides = [1, 1]} : vector<128x32xf32> to vector<8x32xf32>
    %cst_59 = arith.constant 2.500000e-01 : f32
    %207 = vector.broadcast %cst_59 : f32 to vector<8x32xf32>
    %208 = arith.mulf %206, %207 : vector<8x32xf32>
    %209 = vector.extract_strided_slice %197 {offsets = [8, 0], sizes = [8, 32], strides = [1, 1]} : vector<128x32xf32> to vector<8x32xf32>
    %cst_60 = arith.constant 7.500000e-01 : f32
    %210 = vector.broadcast %cst_60 : f32 to vector<8x32xf32>
    %211 = arith.mulf %209, %210 : vector<8x32xf32>
    %212 = arith.addf %208, %211 : vector<8x32xf32>
    %213 = vector.extract_strided_slice %197 {offsets = [8, 0], sizes = [8, 32], strides = [1, 1]} : vector<128x32xf32> to vector<8x32xf32>
    %cst_61 = arith.constant 7.500000e-01 : f32
    %214 = vector.broadcast %cst_61 : f32 to vector<8x32xf32>
    %215 = arith.mulf %213, %214 : vector<8x32xf32>
    %216 = vector.extract_strided_slice %197 {offsets = [16, 0], sizes = [8, 32], strides = [1, 1]} : vector<128x32xf32> to vector<8x32xf32>
    %cst_62 = arith.constant 2.500000e-01 : f32
    %217 = vector.broadcast %cst_62 : f32 to vector<8x32xf32>
    %218 = arith.mulf %216, %217 : vector<8x32xf32>
    %219 = arith.addf %215, %218 : vector<8x32xf32>
    %220 = vector.extract_strided_slice %197 {offsets = [8, 0], sizes = [8, 32], strides = [1, 1]} : vector<128x32xf32> to vector<8x32xf32>
    %cst_63 = arith.constant 2.500000e-01 : f32
    %221 = vector.broadcast %cst_63 : f32 to vector<8x32xf32>
    %222 = arith.mulf %220, %221 : vector<8x32xf32>
    %223 = vector.extract_strided_slice %197 {offsets = [16, 0], sizes = [8, 32], strides = [1, 1]} : vector<128x32xf32> to vector<8x32xf32>
    %cst_64 = arith.constant 7.500000e-01 : f32
    %224 = vector.broadcast %cst_64 : f32 to vector<8x32xf32>
    %225 = arith.mulf %223, %224 : vector<8x32xf32>
    %226 = arith.addf %222, %225 : vector<8x32xf32>
    %227 = vector.extract_strided_slice %197 {offsets = [16, 0], sizes = [8, 32], strides = [1, 1]} : vector<128x32xf32> to vector<8x32xf32>
    %cst_65 = arith.constant 7.500000e-01 : f32
    %228 = vector.broadcast %cst_65 : f32 to vector<8x32xf32>
    %229 = arith.mulf %227, %228 : vector<8x32xf32>
    %230 = vector.extract_strided_slice %197 {offsets = [24, 0], sizes = [8, 32], strides = [1, 1]} : vector<128x32xf32> to vector<8x32xf32>
    %cst_66 = arith.constant 2.500000e-01 : f32
    %231 = vector.broadcast %cst_66 : f32 to vector<8x32xf32>
    %232 = arith.mulf %230, %231 : vector<8x32xf32>
    %233 = arith.addf %229, %232 : vector<8x32xf32>
    %234 = vector.extract_strided_slice %197 {offsets = [16, 0], sizes = [8, 32], strides = [1, 1]} : vector<128x32xf32> to vector<8x32xf32>
    %cst_67 = arith.constant 2.500000e-01 : f32
    %235 = vector.broadcast %cst_67 : f32 to vector<8x32xf32>
    %236 = arith.mulf %234, %235 : vector<8x32xf32>
    %237 = vector.extract_strided_slice %197 {offsets = [24, 0], sizes = [8, 32], strides = [1, 1]} : vector<128x32xf32> to vector<8x32xf32>
    %cst_68 = arith.constant 7.500000e-01 : f32
    %238 = vector.broadcast %cst_68 : f32 to vector<8x32xf32>
    %239 = arith.mulf %237, %238 : vector<8x32xf32>
    %240 = arith.addf %236, %239 : vector<8x32xf32>
    %241 = vector.extract_strided_slice %197 {offsets = [24, 0], sizes = [8, 32], strides = [1, 1]} : vector<128x32xf32> to vector<8x32xf32>
    %cst_69 = arith.constant 7.500000e-01 : f32
    %242 = vector.broadcast %cst_69 : f32 to vector<8x32xf32>
    %243 = arith.mulf %241, %242 : vector<8x32xf32>
    %244 = vector.extract_strided_slice %197 {offsets = [32, 0], sizes = [8, 32], strides = [1, 1]} : vector<128x32xf32> to vector<8x32xf32>
    %cst_70 = arith.constant 2.500000e-01 : f32
    %245 = vector.broadcast %cst_70 : f32 to vector<8x32xf32>
    %246 = arith.mulf %244, %245 : vector<8x32xf32>
    %247 = arith.addf %243, %246 : vector<8x32xf32>
    %248 = vector.extract_strided_slice %197 {offsets = [24, 0], sizes = [8, 32], strides = [1, 1]} : vector<128x32xf32> to vector<8x32xf32>
    %cst_71 = arith.constant 2.500000e-01 : f32
    %249 = vector.broadcast %cst_71 : f32 to vector<8x32xf32>
    %250 = arith.mulf %248, %249 : vector<8x32xf32>
    %251 = vector.extract_strided_slice %197 {offsets = [32, 0], sizes = [8, 32], strides = [1, 1]} : vector<128x32xf32> to vector<8x32xf32>
    %cst_72 = arith.constant 7.500000e-01 : f32
    %252 = vector.broadcast %cst_72 : f32 to vector<8x32xf32>
    %253 = arith.mulf %251, %252 : vector<8x32xf32>
    %254 = arith.addf %250, %253 : vector<8x32xf32>
    %255 = vector.extract_strided_slice %197 {offsets = [32, 0], sizes = [8, 32], strides = [1, 1]} : vector<128x32xf32> to vector<8x32xf32>
    %cst_73 = arith.constant 7.500000e-01 : f32
    %256 = vector.broadcast %cst_73 : f32 to vector<8x32xf32>
    %257 = arith.mulf %255, %256 : vector<8x32xf32>
    %258 = vector.extract_strided_slice %197 {offsets = [40, 0], sizes = [8, 32], strides = [1, 1]} : vector<128x32xf32> to vector<8x32xf32>
    %cst_74 = arith.constant 2.500000e-01 : f32
    %259 = vector.broadcast %cst_74 : f32 to vector<8x32xf32>
    %260 = arith.mulf %258, %259 : vector<8x32xf32>
    %261 = arith.addf %257, %260 : vector<8x32xf32>
    %262 = vector.extract_strided_slice %197 {offsets = [32, 0], sizes = [8, 32], strides = [1, 1]} : vector<128x32xf32> to vector<8x32xf32>
    %cst_75 = arith.constant 2.500000e-01 : f32
    %263 = vector.broadcast %cst_75 : f32 to vector<8x32xf32>
    %264 = arith.mulf %262, %263 : vector<8x32xf32>
    %265 = vector.extract_strided_slice %197 {offsets = [40, 0], sizes = [8, 32], strides = [1, 1]} : vector<128x32xf32> to vector<8x32xf32>
    %cst_76 = arith.constant 7.500000e-01 : f32
    %266 = vector.broadcast %cst_76 : f32 to vector<8x32xf32>
    %267 = arith.mulf %265, %266 : vector<8x32xf32>
    %268 = arith.addf %264, %267 : vector<8x32xf32>
    %269 = vector.extract_strided_slice %197 {offsets = [40, 0], sizes = [8, 32], strides = [1, 1]} : vector<128x32xf32> to vector<8x32xf32>
    %cst_77 = arith.constant 7.500000e-01 : f32
    %270 = vector.broadcast %cst_77 : f32 to vector<8x32xf32>
    %271 = arith.mulf %269, %270 : vector<8x32xf32>
    %272 = vector.extract_strided_slice %197 {offsets = [48, 0], sizes = [8, 32], strides = [1, 1]} : vector<128x32xf32> to vector<8x32xf32>
    %cst_78 = arith.constant 2.500000e-01 : f32
    %273 = vector.broadcast %cst_78 : f32 to vector<8x32xf32>
    %274 = arith.mulf %272, %273 : vector<8x32xf32>
    %275 = arith.addf %271, %274 : vector<8x32xf32>
    %276 = vector.extract_strided_slice %197 {offsets = [40, 0], sizes = [8, 32], strides = [1, 1]} : vector<128x32xf32> to vector<8x32xf32>
    %cst_79 = arith.constant 2.500000e-01 : f32
    %277 = vector.broadcast %cst_79 : f32 to vector<8x32xf32>
    %278 = arith.mulf %276, %277 : vector<8x32xf32>
    %279 = vector.extract_strided_slice %197 {offsets = [48, 0], sizes = [8, 32], strides = [1, 1]} : vector<128x32xf32> to vector<8x32xf32>
    %cst_80 = arith.constant 7.500000e-01 : f32
    %280 = vector.broadcast %cst_80 : f32 to vector<8x32xf32>
    %281 = arith.mulf %279, %280 : vector<8x32xf32>
    %282 = arith.addf %278, %281 : vector<8x32xf32>
    %283 = vector.extract_strided_slice %197 {offsets = [48, 0], sizes = [8, 32], strides = [1, 1]} : vector<128x32xf32> to vector<8x32xf32>
    %cst_81 = arith.constant 7.500000e-01 : f32
    %284 = vector.broadcast %cst_81 : f32 to vector<8x32xf32>
    %285 = arith.mulf %283, %284 : vector<8x32xf32>
    %286 = vector.extract_strided_slice %197 {offsets = [56, 0], sizes = [8, 32], strides = [1, 1]} : vector<128x32xf32> to vector<8x32xf32>
    %cst_82 = arith.constant 2.500000e-01 : f32
    %287 = vector.broadcast %cst_82 : f32 to vector<8x32xf32>
    %288 = arith.mulf %286, %287 : vector<8x32xf32>
    %289 = arith.addf %285, %288 : vector<8x32xf32>
    %290 = vector.extract_strided_slice %197 {offsets = [48, 0], sizes = [8, 32], strides = [1, 1]} : vector<128x32xf32> to vector<8x32xf32>
    %cst_83 = arith.constant 2.500000e-01 : f32
    %291 = vector.broadcast %cst_83 : f32 to vector<8x32xf32>
    %292 = arith.mulf %290, %291 : vector<8x32xf32>
    %293 = vector.extract_strided_slice %197 {offsets = [56, 0], sizes = [8, 32], strides = [1, 1]} : vector<128x32xf32> to vector<8x32xf32>
    %cst_84 = arith.constant 7.500000e-01 : f32
    %294 = vector.broadcast %cst_84 : f32 to vector<8x32xf32>
    %295 = arith.mulf %293, %294 : vector<8x32xf32>
    %296 = arith.addf %292, %295 : vector<8x32xf32>
    %297 = vector.extract_strided_slice %197 {offsets = [56, 0], sizes = [8, 32], strides = [1, 1]} : vector<128x32xf32> to vector<8x32xf32>
    %cst_85 = arith.constant 7.500000e-01 : f32
    %298 = vector.broadcast %cst_85 : f32 to vector<8x32xf32>
    %299 = arith.mulf %297, %298 : vector<8x32xf32>
    %300 = vector.extract_strided_slice %197 {offsets = [64, 0], sizes = [8, 32], strides = [1, 1]} : vector<128x32xf32> to vector<8x32xf32>
    %cst_86 = arith.constant 2.500000e-01 : f32
    %301 = vector.broadcast %cst_86 : f32 to vector<8x32xf32>
    %302 = arith.mulf %300, %301 : vector<8x32xf32>
    %303 = arith.addf %299, %302 : vector<8x32xf32>
    %304 = vector.extract_strided_slice %197 {offsets = [56, 0], sizes = [8, 32], strides = [1, 1]} : vector<128x32xf32> to vector<8x32xf32>
    %cst_87 = arith.constant 2.500000e-01 : f32
    %305 = vector.broadcast %cst_87 : f32 to vector<8x32xf32>
    %306 = arith.mulf %304, %305 : vector<8x32xf32>
    %307 = vector.extract_strided_slice %197 {offsets = [64, 0], sizes = [8, 32], strides = [1, 1]} : vector<128x32xf32> to vector<8x32xf32>
    %cst_88 = arith.constant 7.500000e-01 : f32
    %308 = vector.broadcast %cst_88 : f32 to vector<8x32xf32>
    %309 = arith.mulf %307, %308 : vector<8x32xf32>
    %310 = arith.addf %306, %309 : vector<8x32xf32>
    %311 = vector.extract_strided_slice %197 {offsets = [64, 0], sizes = [8, 32], strides = [1, 1]} : vector<128x32xf32> to vector<8x32xf32>
    %cst_89 = arith.constant 7.500000e-01 : f32
    %312 = vector.broadcast %cst_89 : f32 to vector<8x32xf32>
    %313 = arith.mulf %311, %312 : vector<8x32xf32>
    %314 = vector.extract_strided_slice %197 {offsets = [72, 0], sizes = [8, 32], strides = [1, 1]} : vector<128x32xf32> to vector<8x32xf32>
    %cst_90 = arith.constant 2.500000e-01 : f32
    %315 = vector.broadcast %cst_90 : f32 to vector<8x32xf32>
    %316 = arith.mulf %314, %315 : vector<8x32xf32>
    %317 = arith.addf %313, %316 : vector<8x32xf32>
    %318 = vector.extract_strided_slice %197 {offsets = [64, 0], sizes = [8, 32], strides = [1, 1]} : vector<128x32xf32> to vector<8x32xf32>
    %cst_91 = arith.constant 2.500000e-01 : f32
    %319 = vector.broadcast %cst_91 : f32 to vector<8x32xf32>
    %320 = arith.mulf %318, %319 : vector<8x32xf32>
    %321 = vector.extract_strided_slice %197 {offsets = [72, 0], sizes = [8, 32], strides = [1, 1]} : vector<128x32xf32> to vector<8x32xf32>
    %cst_92 = arith.constant 7.500000e-01 : f32
    %322 = vector.broadcast %cst_92 : f32 to vector<8x32xf32>
    %323 = arith.mulf %321, %322 : vector<8x32xf32>
    %324 = arith.addf %320, %323 : vector<8x32xf32>
    %325 = vector.extract_strided_slice %197 {offsets = [72, 0], sizes = [8, 32], strides = [1, 1]} : vector<128x32xf32> to vector<8x32xf32>
    %cst_93 = arith.constant 7.500000e-01 : f32
    %326 = vector.broadcast %cst_93 : f32 to vector<8x32xf32>
    %327 = arith.mulf %325, %326 : vector<8x32xf32>
    %328 = vector.extract_strided_slice %197 {offsets = [80, 0], sizes = [8, 32], strides = [1, 1]} : vector<128x32xf32> to vector<8x32xf32>
    %cst_94 = arith.constant 2.500000e-01 : f32
    %329 = vector.broadcast %cst_94 : f32 to vector<8x32xf32>
    %330 = arith.mulf %328, %329 : vector<8x32xf32>
    %331 = arith.addf %327, %330 : vector<8x32xf32>
    %332 = vector.extract_strided_slice %197 {offsets = [72, 0], sizes = [8, 32], strides = [1, 1]} : vector<128x32xf32> to vector<8x32xf32>
    %cst_95 = arith.constant 2.500000e-01 : f32
    %333 = vector.broadcast %cst_95 : f32 to vector<8x32xf32>
    %334 = arith.mulf %332, %333 : vector<8x32xf32>
    %335 = vector.extract_strided_slice %197 {offsets = [80, 0], sizes = [8, 32], strides = [1, 1]} : vector<128x32xf32> to vector<8x32xf32>
    %cst_96 = arith.constant 7.500000e-01 : f32
    %336 = vector.broadcast %cst_96 : f32 to vector<8x32xf32>
    %337 = arith.mulf %335, %336 : vector<8x32xf32>
    %338 = arith.addf %334, %337 : vector<8x32xf32>
    %339 = vector.extract_strided_slice %197 {offsets = [80, 0], sizes = [8, 32], strides = [1, 1]} : vector<128x32xf32> to vector<8x32xf32>
    %cst_97 = arith.constant 7.500000e-01 : f32
    %340 = vector.broadcast %cst_97 : f32 to vector<8x32xf32>
    %341 = arith.mulf %339, %340 : vector<8x32xf32>
    %342 = vector.extract_strided_slice %197 {offsets = [88, 0], sizes = [8, 32], strides = [1, 1]} : vector<128x32xf32> to vector<8x32xf32>
    %cst_98 = arith.constant 2.500000e-01 : f32
    %343 = vector.broadcast %cst_98 : f32 to vector<8x32xf32>
    %344 = arith.mulf %342, %343 : vector<8x32xf32>
    %345 = arith.addf %341, %344 : vector<8x32xf32>
    %346 = vector.extract_strided_slice %197 {offsets = [80, 0], sizes = [8, 32], strides = [1, 1]} : vector<128x32xf32> to vector<8x32xf32>
    %cst_99 = arith.constant 2.500000e-01 : f32
    %347 = vector.broadcast %cst_99 : f32 to vector<8x32xf32>
    %348 = arith.mulf %346, %347 : vector<8x32xf32>
    %349 = vector.extract_strided_slice %197 {offsets = [88, 0], sizes = [8, 32], strides = [1, 1]} : vector<128x32xf32> to vector<8x32xf32>
    %cst_100 = arith.constant 7.500000e-01 : f32
    %350 = vector.broadcast %cst_100 : f32 to vector<8x32xf32>
    %351 = arith.mulf %349, %350 : vector<8x32xf32>
    %352 = arith.addf %348, %351 : vector<8x32xf32>
    %353 = vector.extract_strided_slice %197 {offsets = [88, 0], sizes = [8, 32], strides = [1, 1]} : vector<128x32xf32> to vector<8x32xf32>
    %cst_101 = arith.constant 7.500000e-01 : f32
    %354 = vector.broadcast %cst_101 : f32 to vector<8x32xf32>
    %355 = arith.mulf %353, %354 : vector<8x32xf32>
    %356 = vector.extract_strided_slice %197 {offsets = [96, 0], sizes = [8, 32], strides = [1, 1]} : vector<128x32xf32> to vector<8x32xf32>
    %cst_102 = arith.constant 2.500000e-01 : f32
    %357 = vector.broadcast %cst_102 : f32 to vector<8x32xf32>
    %358 = arith.mulf %356, %357 : vector<8x32xf32>
    %359 = arith.addf %355, %358 : vector<8x32xf32>
    %360 = vector.extract_strided_slice %197 {offsets = [88, 0], sizes = [8, 32], strides = [1, 1]} : vector<128x32xf32> to vector<8x32xf32>
    %cst_103 = arith.constant 2.500000e-01 : f32
    %361 = vector.broadcast %cst_103 : f32 to vector<8x32xf32>
    %362 = arith.mulf %360, %361 : vector<8x32xf32>
    %363 = vector.extract_strided_slice %197 {offsets = [96, 0], sizes = [8, 32], strides = [1, 1]} : vector<128x32xf32> to vector<8x32xf32>
    %cst_104 = arith.constant 7.500000e-01 : f32
    %364 = vector.broadcast %cst_104 : f32 to vector<8x32xf32>
    %365 = arith.mulf %363, %364 : vector<8x32xf32>
    %366 = arith.addf %362, %365 : vector<8x32xf32>
    %367 = vector.extract_strided_slice %197 {offsets = [96, 0], sizes = [8, 32], strides = [1, 1]} : vector<128x32xf32> to vector<8x32xf32>
    %cst_105 = arith.constant 7.500000e-01 : f32
    %368 = vector.broadcast %cst_105 : f32 to vector<8x32xf32>
    %369 = arith.mulf %367, %368 : vector<8x32xf32>
    %370 = vector.extract_strided_slice %197 {offsets = [104, 0], sizes = [8, 32], strides = [1, 1]} : vector<128x32xf32> to vector<8x32xf32>
    %cst_106 = arith.constant 2.500000e-01 : f32
    %371 = vector.broadcast %cst_106 : f32 to vector<8x32xf32>
    %372 = arith.mulf %370, %371 : vector<8x32xf32>
    %373 = arith.addf %369, %372 : vector<8x32xf32>
    %374 = vector.extract_strided_slice %197 {offsets = [96, 0], sizes = [8, 32], strides = [1, 1]} : vector<128x32xf32> to vector<8x32xf32>
    %cst_107 = arith.constant 2.500000e-01 : f32
    %375 = vector.broadcast %cst_107 : f32 to vector<8x32xf32>
    %376 = arith.mulf %374, %375 : vector<8x32xf32>
    %377 = vector.extract_strided_slice %197 {offsets = [104, 0], sizes = [8, 32], strides = [1, 1]} : vector<128x32xf32> to vector<8x32xf32>
    %cst_108 = arith.constant 7.500000e-01 : f32
    %378 = vector.broadcast %cst_108 : f32 to vector<8x32xf32>
    %379 = arith.mulf %377, %378 : vector<8x32xf32>
    %380 = arith.addf %376, %379 : vector<8x32xf32>
    %381 = vector.extract_strided_slice %197 {offsets = [104, 0], sizes = [8, 32], strides = [1, 1]} : vector<128x32xf32> to vector<8x32xf32>
    %cst_109 = arith.constant 7.500000e-01 : f32
    %382 = vector.broadcast %cst_109 : f32 to vector<8x32xf32>
    %383 = arith.mulf %381, %382 : vector<8x32xf32>
    %384 = vector.extract_strided_slice %197 {offsets = [112, 0], sizes = [8, 32], strides = [1, 1]} : vector<128x32xf32> to vector<8x32xf32>
    %cst_110 = arith.constant 2.500000e-01 : f32
    %385 = vector.broadcast %cst_110 : f32 to vector<8x32xf32>
    %386 = arith.mulf %384, %385 : vector<8x32xf32>
    %387 = arith.addf %383, %386 : vector<8x32xf32>
    %388 = vector.extract_strided_slice %197 {offsets = [104, 0], sizes = [8, 32], strides = [1, 1]} : vector<128x32xf32> to vector<8x32xf32>
    %cst_111 = arith.constant 2.500000e-01 : f32
    %389 = vector.broadcast %cst_111 : f32 to vector<8x32xf32>
    %390 = arith.mulf %388, %389 : vector<8x32xf32>
    %391 = vector.extract_strided_slice %197 {offsets = [112, 0], sizes = [8, 32], strides = [1, 1]} : vector<128x32xf32> to vector<8x32xf32>
    %cst_112 = arith.constant 7.500000e-01 : f32
    %392 = vector.broadcast %cst_112 : f32 to vector<8x32xf32>
    %393 = arith.mulf %391, %392 : vector<8x32xf32>
    %394 = arith.addf %390, %393 : vector<8x32xf32>
    %395 = vector.extract_strided_slice %197 {offsets = [112, 0], sizes = [8, 32], strides = [1, 1]} : vector<128x32xf32> to vector<8x32xf32>
    %cst_113 = arith.constant 7.500000e-01 : f32
    %396 = vector.broadcast %cst_113 : f32 to vector<8x32xf32>
    %397 = arith.mulf %395, %396 : vector<8x32xf32>
    %398 = vector.extract_strided_slice %197 {offsets = [120, 0], sizes = [8, 32], strides = [1, 1]} : vector<128x32xf32> to vector<8x32xf32>
    %cst_114 = arith.constant 2.500000e-01 : f32
    %399 = vector.broadcast %cst_114 : f32 to vector<8x32xf32>
    %400 = arith.mulf %398, %399 : vector<8x32xf32>
    %401 = arith.addf %397, %400 : vector<8x32xf32>
    %402 = vector.extract_strided_slice %197 {offsets = [112, 0], sizes = [8, 32], strides = [1, 1]} : vector<128x32xf32> to vector<8x32xf32>
    %cst_115 = arith.constant 2.500000e-01 : f32
    %403 = vector.broadcast %cst_115 : f32 to vector<8x32xf32>
    %404 = arith.mulf %402, %403 : vector<8x32xf32>
    %405 = vector.extract_strided_slice %197 {offsets = [120, 0], sizes = [8, 32], strides = [1, 1]} : vector<128x32xf32> to vector<8x32xf32>
    %cst_116 = arith.constant 7.500000e-01 : f32
    %406 = vector.broadcast %cst_116 : f32 to vector<8x32xf32>
    %407 = arith.mulf %405, %406 : vector<8x32xf32>
    %408 = arith.addf %404, %407 : vector<8x32xf32>
    %409 = vector.extract_strided_slice %197 {offsets = [120, 0], sizes = [8, 32], strides = [1, 1]} : vector<128x32xf32> to vector<8x32xf32>
    %410 = tpu.concatenate %198, %205, %212, %219, %226, %233, %240, %247, %254, %261, %268, %275, %282, %289, %296, %303 in 1 : vector<8x32xf32>, vector<8x32xf32>, vector<8x32xf32>, vector<8x32xf32>, vector<8x32xf32>, vector<8x32xf32>, vector<8x32xf32>, vector<8x32xf32>, vector<8x32xf32>, vector<8x32xf32>, vector<8x32xf32>, vector<8x32xf32>, vector<8x32xf32>, vector<8x32xf32>, vector<8x32xf32>, vector<8x32xf32> -> vector<8x512xf32>
    %411 = tpu.concatenate %310, %317, %324, %331, %338, %345, %352, %359, %366, %373, %380, %387, %394, %401, %408, %409 in 1 : vector<8x32xf32>, vector<8x32xf32>, vector<8x32xf32>, vector<8x32xf32>, vector<8x32xf32>, vector<8x32xf32>, vector<8x32xf32>, vector<8x32xf32>, vector<8x32xf32>, vector<8x32xf32>, vector<8x32xf32>, vector<8x32xf32>, vector<8x32xf32>, vector<8x32xf32>, vector<8x32xf32>, vector<8x32xf32> -> vector<8x512xf32>
    %412 = tpu.concatenate %410, %411 in 1 : vector<8x512xf32>, vector<8x512xf32> -> vector<8x1024xf32>
    %cst_117 = arith.constant 0.000000e+00 : f32
    %413 = vector.broadcast %cst_117 : f32 to vector<8x33xf32>
    %414 = tpu.concatenate %413, %412, %413 in 1 : vector<8x33xf32>, vector<8x1024xf32>, vector<8x33xf32> -> vector<8x1090xf32>
    %c0_118 = arith.constant 0 : index
    %c0_119 = arith.constant 0 : index
    %415 = vector.load %arg10[%c0_118, %c0_119] : memref<2x1024xf32, #tpu.memory_space<vmem>>, vector<1x1024xf32>
    %c1_120 = arith.constant 1 : index
    %c0_121 = arith.constant 0 : index
    %416 = vector.load %arg10[%c1_120, %c0_121] : memref<2x1024xf32, #tpu.memory_space<vmem>>, vector<1x1024xf32>
    %417 = vector.extract_strided_slice %414 {offsets = [0, 0], sizes = [8, 1024], strides = [1, 1]} : vector<8x1090xf32> to vector<8x1024xf32>
    %418 = vector.broadcast %415 : vector<1x1024xf32> to vector<8x1024xf32>
    %419 = arith.mulf %417, %418 : vector<8x1024xf32>
    %420 = vector.extract_strided_slice %414 {offsets = [0, 1], sizes = [8, 1024], strides = [1, 1]} : vector<8x1090xf32> to vector<8x1024xf32>
    %421 = vector.extract_strided_slice %414 {offsets = [0, 2], sizes = [8, 1024], strides = [1, 1]} : vector<8x1090xf32> to vector<8x1024xf32>
    %422 = vector.broadcast %416 : vector<1x1024xf32> to vector<8x1024xf32>
    %423 = arith.mulf %421, %422 : vector<8x1024xf32>
    %424 = vector.extract_strided_slice %414 {offsets = [0, 32], sizes = [8, 1024], strides = [1, 1]} : vector<8x1090xf32> to vector<8x1024xf32>
    %425 = vector.broadcast %415 : vector<1x1024xf32> to vector<8x1024xf32>
    %426 = arith.mulf %424, %425 : vector<8x1024xf32>
    %427 = vector.extract_strided_slice %414 {offsets = [0, 33], sizes = [8, 1024], strides = [1, 1]} : vector<8x1090xf32> to vector<8x1024xf32>
    %428 = vector.extract_strided_slice %414 {offsets = [0, 34], sizes = [8, 1024], strides = [1, 1]} : vector<8x1090xf32> to vector<8x1024xf32>
    %429 = vector.broadcast %416 : vector<1x1024xf32> to vector<8x1024xf32>
    %430 = arith.mulf %428, %429 : vector<8x1024xf32>
    %431 = vector.extract_strided_slice %414 {offsets = [0, 64], sizes = [8, 1024], strides = [1, 1]} : vector<8x1090xf32> to vector<8x1024xf32>
    %432 = vector.broadcast %415 : vector<1x1024xf32> to vector<8x1024xf32>
    %433 = arith.mulf %431, %432 : vector<8x1024xf32>
    %434 = vector.extract_strided_slice %414 {offsets = [0, 65], sizes = [8, 1024], strides = [1, 1]} : vector<8x1090xf32> to vector<8x1024xf32>
    %435 = vector.extract_strided_slice %414 {offsets = [0, 66], sizes = [8, 1024], strides = [1, 1]} : vector<8x1090xf32> to vector<8x1024xf32>
    %436 = vector.broadcast %416 : vector<1x1024xf32> to vector<8x1024xf32>
    %437 = arith.mulf %435, %436 : vector<8x1024xf32>
    %cst_122 = arith.constant 1.000000e+00 : f32
    %438 = vector.broadcast %cst_122 : f32 to vector<1x1024xf32>
    %439 = tpu.concatenate %419, %420, %423, %426, %427, %430, %433, %434, %437, %438 in 0 : vector<8x1024xf32>, vector<8x1024xf32>, vector<8x1024xf32>, vector<8x1024xf32>, vector<8x1024xf32>, vector<8x1024xf32>, vector<8x1024xf32>, vector<8x1024xf32>, vector<8x1024xf32>, vector<1x1024xf32> -> vector<73x1024xf32>
    %c0_123 = arith.constant 0 : index
    %c0_124 = arith.constant 0 : index
    %440 = vector.load %arg5[%c0_123, %c0_124] : memref<2x73xf32, #tpu.memory_space<vmem>>, vector<2x73xf32>
    %cst_125 = arith.constant dense<0.000000e+00> : vector<2x1024xf32>
    %441 = tpu.matmul %440, %439, %cst_125 {dimension_numbers = #tpu.dot_dimension_numbers<[1], [0], [0], [1], [0, 0, 1, 1], [], []>} : vector<2x73xf32>, vector<73x1024xf32>, vector<2x1024xf32> -> vector<2x1024xf32>
    %cst_126 = arith.constant 0.000000e+00 : f32
    %442 = vector.broadcast %cst_126 : f32 to vector<2x1024xf32>
    %443 = arith.maximumf %441, %442 : vector<2x1024xf32>
    %444 = arith.negf %443 : vector<2x1024xf32>
    %445 = math.exp %444 : vector<2x1024xf32>
    %cst_127 = arith.constant 1.000000e+00 : f32
    %446 = vector.broadcast %cst_127 : f32 to vector<2x1024xf32>
    %447 = arith.addf %446, %445 : vector<2x1024xf32>
    %448 = arith.divf %446, %447 : vector<2x1024xf32>
    %c0_128 = arith.constant 0 : index
    %c0_129 = arith.constant 0 : index
    %c0_130 = arith.constant 0 : index
    %449 = vector.load %arg11[%c0_128, %c0_129, %c0_130] : memref<1x2x1024xf32, #tpu.memory_space<vmem>>, vector<1x2x1024xf32>
    %450 = vector.shape_cast %449 : vector<1x2x1024xf32> to vector<2x1024xf32>
    %451 = vector.shape_cast %448 : vector<2x1024xf32> to vector<1x2x1024xf32>
    tpu.vector_store %arg11[%c0_128, %c0_129, %c0_130], %451 {strides = array<i32>} : memref<1x2x1024xf32, #tpu.memory_space<vmem>>, vector<1x2x1024xf32>,
    return
  }
  func.func @transform_0(%arg0: i32) -> (i32, i32, i32) {
    %c0_i32 = arith.constant 0 : i32
    %c0_i32_0 = arith.constant 0 : i32
    %c0_i32_1 = arith.constant 0 : i32
    return %arg0, %c0_i32, %c0_i32_0 : i32, i32, i32
  }
  func.func @transform_1(%arg0: i32) -> (i32, i32, i32) {
    %c0_i32 = arith.constant 0 : i32
    %c0_i32_0 = arith.constant 0 : i32
    %c0_i32_1 = arith.constant 0 : i32
    return %arg0, %c0_i32, %c0_i32_0 : i32, i32, i32
  }
  func.func @transform_2(%arg0: i32) -> (i32, i32) {
    %c0_i32 = arith.constant 0 : i32
    %c0_i32_0 = arith.constant 0 : i32
    %c0_i32_1 = arith.constant 0 : i32
    return %c0_i32, %c0_i32_0 : i32, i32
  }
  func.func @transform_3(%arg0: i32) -> (i32, i32) {
    %c0_i32 = arith.constant 0 : i32
    %c0_i32_0 = arith.constant 0 : i32
    %c0_i32_1 = arith.constant 0 : i32
    return %c0_i32, %c0_i32_0 : i32, i32
  }
  func.func @transform_4(%arg0: i32) -> (i32, i32) {
    %c0_i32 = arith.constant 0 : i32
    %c0_i32_0 = arith.constant 0 : i32
    %c0_i32_1 = arith.constant 0 : i32
    return %c0_i32, %c0_i32_0 : i32, i32
  }
  func.func @transform_5(%arg0: i32) -> (i32, i32) {
    %c0_i32 = arith.constant 0 : i32
    %c0_i32_0 = arith.constant 0 : i32
    %c0_i32_1 = arith.constant 0 : i32
    return %c0_i32, %c0_i32_0 : i32, i32
  }
  func.func @transform_6(%arg0: i32) -> (i32, i32) {
    %c0_i32 = arith.constant 0 : i32
    %c0_i32_0 = arith.constant 0 : i32
    %c0_i32_1 = arith.constant 0 : i32
    return %c0_i32, %c0_i32_0 : i32, i32
  }
  func.func @transform_7(%arg0: i32) -> (i32, i32) {
    %c0_i32 = arith.constant 0 : i32
    %c0_i32_0 = arith.constant 0 : i32
    %c0_i32_1 = arith.constant 0 : i32
    return %c0_i32, %c0_i32_0 : i32, i32
  }
  func.func @transform_8(%arg0: i32) -> (i32, i32) {
    %c0_i32 = arith.constant 0 : i32
    %c0_i32_0 = arith.constant 0 : i32
    %c0_i32_1 = arith.constant 0 : i32
    return %c0_i32, %c0_i32_0 : i32, i32
  }
  func.func @transform_9(%arg0: i32) -> (i32, i32) {
    %c0_i32 = arith.constant 0 : i32
    %c0_i32_0 = arith.constant 0 : i32
    %c0_i32_1 = arith.constant 0 : i32
    return %c0_i32, %c0_i32_0 : i32, i32
  }
  func.func @transform_10(%arg0: i32) -> (i32, i32, i32) {
    %c0_i32 = arith.constant 0 : i32
    %c0_i32_0 = arith.constant 0 : i32
    %c0_i32_1 = arith.constant 0 : i32
    return %arg0, %c0_i32, %c0_i32_0 : i32, i32, i32
  }
}

</mosaic_0001>

<llo_original>
// kernel: tpu_custom_call.1
$region0: #{tpu_custom_call.1}
  #allocation0 [shape = 'u32[]', space=smem, size = 0x4, offset = 0x4, fixed_abs, tag = 'smem constant byte address 0x4 - core index']
  #allocation1 [shape = 'u32[144,128]{1,0:T(1,128)}', space=vmem, size = 0x12000, scoped, tag = 'internal scratch']
  %s0 = inlined_call_operand.hbm [shape: f32[2,4,256], index: 0, kind: input, shape index: {}]
  %s1 = inlined_call_operand.hbm [shape: f32[2,4,64], index: 1, kind: input, shape index: {}]
  %s2 = inlined_call_operand.hbm [shape: f32[8,37], index: 2, kind: input, shape index: {}]
  %s3 = inlined_call_operand.hbm [shape: f32[8,37], index: 3, kind: input, shape index: {}]
  %s4 = inlined_call_operand.vmem [shape: f32[2,73], index: 4, kind: input, shape index: {}]
  %s5 = inlined_call_operand.hbm [shape: f32[8,16], index: 5, kind: input, shape index: {}]
  %s6 = inlined_call_operand.vmem [shape: f32[16,32], index: 6, kind: input, shape index: {}]
  %s7 = inlined_call_operand.hbm [shape: f32[2,256], index: 7, kind: input, shape index: {}]
  %s8 = inlined_call_operand.hbm [shape: f32[2,64], index: 8, kind: input, shape index: {}]
  %s9 = inlined_call_operand.vmem [shape: f32[2,1024], index: 9, kind: input, shape index: {}]
  %s10 = inlined_call_operand.hbm [shape: f32[2,2,1024], index: 10, kind: output, shape index: {}]
  %s11 = sld [smem:[#allocation0]]
  $region101: #{tpu_custom_call.1} parent=0
    _
  %s13 = ssub.s32 1, %s11
  %s14 = scalar_select 0, %s13, %s11
  $region1: #{tpu_custom_call.1} parent=0
    #allocation2 [shape = 'u8[8192]{0}', space=vmem, size = 0x2000, scoped, tag = 'input window, operand 0']
    #allocation3 [shape = 's32[2]{0}', space=sflag, size = 0x8, scoped, tag = 'scoped memory for tpu_custom_call.1']
    #allocation4 [shape = 's32[2]{0}', space=sflag, size = 0x8, scoped, tag = 'scoped memory for tpu_custom_call.1']
    #allocation5 [shape = 'u8[4096]{0}', space=vmem, size = 0x1000, scoped, tag = 'input window, operand 1']
    #allocation6 [shape = 's32[2]{0}', space=sflag, size = 0x8, scoped, tag = 'scoped memory for tpu_custom_call.1']
    #allocation7 [shape = 'u8[4096]{0}', space=vmem, size = 0x1000, scoped, tag = 'input window, operand 2, single buffered']
    #allocation8 [shape = 'u8[4096]{0}', space=vmem, size = 0x1000, scoped, tag = 'input window, operand 3, single buffered']
    #allocation9 [shape = 's32[1]{0}', space=sflag, size = 0x4, scoped, tag = 'scoped memory for tpu_custom_call.1']
    #allocation10 [shape = 'u8[4096]{0}', space=vmem, size = 0x1000, scoped, tag = 'input window, operand 5, single buffered']
    #allocation11 [shape = 'u8[2048]{0}', space=vmem, size = 0x800, scoped, tag = 'input window, operand 7, single buffered']
    #allocation12 [shape = 's32[1]{0}', space=sflag, size = 0x4, scoped, tag = 'scoped memory for tpu_custom_call.1']
    #allocation13 [shape = 'u8[1024]{0}', space=vmem, size = 0x400, scoped, tag = 'input window, operand 8, single buffered']
    #allocation14 [shape = 'u8[16384]{0}', space=vmem, size = 0x4000, scoped, tag = 'output window, operand 0']
    %15 = vsyncpa [#allocation3], 0
    %s16 = scalar_lea.sflag [#allocation3], 1
    %17 = vsyncpa %s16, 0
    %18 = vsyncpa [#allocation6], 0
    %s19 = scalar_lea.sflag [#allocation6], 1
    %20 = vsyncpa %s19, 0
    %21 = vsyncpa [#allocation9], 0
    %22 = vsyncpa [#allocation12], 0
    %23 = vsyncpa [#allocation4], 0
    %s24 = scalar_lea.sflag [#allocation4], 1
    %25 = vsyncpa %s24, 0
    loop: start=0, step=1, limit=4
    $region2: #{tpu_custom_call.1} parent=1 // loop_pre_header
      _
    $region3: #{tpu_custom_call.1} parent=1 // loop_header
      %s27 = sphi 0, %s31
      %p28 = scmp.ge.s32.totalorder %s27, 4
      %s37 = sphi 0, %s39
      %s40 = sphi 0, %s37
      %s41 = sphi 0, %s40
      %s57 = sphi 0, %s41
      %s63 = sphi 0, %s65
      %s66 = sphi 0, %s63
      %s67 = sphi 0, %s66
      %s83 = sphi 0, %s67
      %s87 = sphi 0, %s87
      %s89 = sphi 0, %s87
      %s90 = sphi 0, %s89
      %s104 = sphi 0, %s90
      %s108 = sphi 0, %s108
      %s110 = sphi 0, %s108
      %s111 = sphi 0, %s110
      %s125 = sphi 0, %s111
      %s129 = sphi 0, %s129
      %s131 = sphi 0, %s129
      %s132 = sphi 0, %s131
      %s146 = sphi 0, %s132
      %s150 = sphi 0, %s150
      %s152 = sphi 0, %s150
      %s153 = sphi 0, %s152
      %s167 = sphi 0, %s153
      %s171 = sphi 0, %s171
      %s173 = sphi 0, %s171
      %s174 = sphi 0, %s173
      %s188 = sphi 0, %s174
      %s192 = sphi 0, %s192
      %s194 = sphi 0, %s192
      %s195 = sphi 0, %s194
      %s209 = sphi 0, %s195
      %s213 = sphi 0, %s213
      %s215 = sphi 0, %s213
      %s216 = sphi 0, %s215
      %s230 = sphi 0, %s216
      %s234 = sphi 0, %s234
      %s236 = sphi 0, %s234
      %s237 = sphi 0, %s236
      %s251 = sphi 0, %s237
      %s257 = sphi 0, %s259
      %s260 = sphi 0, %s257
      %s261 = sphi 0, %s260
      %s277 = sphi 0, %s261
    $region4: #{tpu_custom_call.1} parent=1 // loop_header_branch
      %30 = sbr.rel (%p28) target = $region8
    $region5: #{tpu_custom_call.1} parent=1 // loop_body
      %s32 = ssub.s32 %s27, 1
      %s33 = ssub.s32 %s27, 2
      %s34 = sadd.s32 %s27, 1
      %s35 = ssub.s32 %s27, %s34
      %p36 = scmp.eq.s32.totalorder %s35, 0
      %s38 = sadd.s32 %s37, 1
      %s39 = scalar_select %p36, %s37, %s38
      %p42 = pneg %p36
      %p43 = scmp.eq.s32.totalorder %s27, 1
      %p44 = por %p42, %p43
      %p45 = scmp.ne.s32.totalorder %s37, %s40
      %p46 = scmp.eq.s32.totalorder %s27, 0
      %p47 = por %p45, %p46
      %p48 = scmp.ne.s32.totalorder %s37, %s40
      %p49 = scmp.eq.s32.totalorder %s32, 1
      %p50 = por %p48, %p49
      %p51 = scmp.ne.s32.totalorder %s40, %s41
      %p52 = scmp.eq.s32.totalorder %s32, 0
      %p53 = por %p51, %p52
      %p54 = scmp.ne.s32.totalorder %s40, %s41
      %p55 = scmp.eq.s32.totalorder %s33, 1
      %p56 = por %p54, %p55
      %p58 = scmp.ne.s32.totalorder %s41, %s57
      %p59 = scmp.eq.s32.totalorder %s33, 0
      %p60 = por %p58, %p59
      %s61 = ssub.s32 %s27, %s34
      %p62 = scmp.eq.s32.totalorder %s61, 0
      %s64 = sadd.s32 %s63, 1
      %s65 = scalar_select %p62, %s63, %s64
      %p68 = pneg %p62
      %p69 = scmp.eq.s32.totalorder %s27, 1
      %p70 = por %p68, %p69
      %p71 = scmp.ne.s32.totalorder %s63, %s66
      %p72 = scmp.eq.s32.totalorder %s27, 0
      %p73 = por %p71, %p72
      %p74 = scmp.ne.s32.totalorder %s63, %s66
      %p75 = scmp.eq.s32.totalorder %s32, 1
      %p76 = por %p74, %p75
      %p77 = scmp.ne.s32.totalorder %s66, %s67
      %p78 = scmp.eq.s32.totalorder %s32, 0
      %p79 = por %p77, %p78
      %p80 = scmp.ne.s32.totalorder %s66, %s67
      %p81 = scmp.eq.s32.totalorder %s33, 1
      %p82 = por %p80, %p81
      %p84 = scmp.ne.s32.totalorder %s67, %s83
      %p85 = scmp.eq.s32.totalorder %s33, 0
      %p86 = por %p84, %p85
      %s88 = sadd.s32 %s87, 1
      %p91 = scmp.eq.s32.totalorder %s27, 1
      %p92 = scmp.ne.s32.totalorder %s87, %s89
      %p93 = scmp.eq.s32.totalorder %s27, 0
      %p94 = por %p92, %p93
      %p95 = scmp.ne.s32.totalorder %s87, %s89
      %p96 = scmp.eq.s32.totalorder %s32, 1
      %p97 = por %p95, %p96
      %p98 = scmp.ne.s32.totalorder %s89, %s90
      %p99 = scmp.eq.s32.totalorder %s32, 0
      %p100 = por %p98, %p99
      %p101 = scmp.ne.s32.totalorder %s89, %s90
      %p102 = scmp.eq.s32.totalorder %s33, 1
      %p103 = por %p101, %p102
      %p105 = scmp.ne.s32.totalorder %s90, %s104
      %p106 = scmp.eq.s32.totalorder %s33, 0
      %p107 = por %p105, %p106
      %s109 = sadd.s32 %s108, 1
      %p112 = scmp.eq.s32.totalorder %s27, 1
      %p113 = scmp.ne.s32.totalorder %s108, %s110
      %p114 = scmp.eq.s32.totalorder %s27, 0
      %p115 = por %p113, %p114
      %p116 = scmp.ne.s32.totalorder %s108, %s110
      %p117 = scmp.eq.s32.totalorder %s32, 1
      %p118 = por %p116, %p117
      %p119 = scmp.ne.s32.totalorder %s110, %s111
      %p120 = scmp.eq.s32.totalorder %s32, 0
      %p121 = por %p119, %p120
      %p122 = scmp.ne.s32.totalorder %s110, %s111
      %p123 = scmp.eq.s32.totalorder %s33, 1
      %p124 = por %p122, %p123
      %p126 = scmp.ne.s32.totalorder %s111, %s125
      %p127 = scmp.eq.s32.totalorder %s33, 0
      %p128 = por %p126, %p127
      %s130 = sadd.s32 %s129, 1
      %p133 = scmp.eq.s32.totalorder %s27, 1
      %p134 = scmp.ne.s32.totalorder %s129, %s131
      %p135 = scmp.eq.s32.totalorder %s27, 0
      %p136 = por %p134, %p135
      %p137 = scmp.ne.s32.totalorder %s129, %s131
      %p138 = scmp.eq.s32.totalorder %s32, 1
      %p139 = por %p137, %p138
      %p140 = scmp.ne.s32.totalorder %s131, %s132
      %p141 = scmp.eq.s32.totalorder %s32, 0
      %p142 = por %p140, %p141
      %p143 = scmp.ne.s32.totalorder %s131, %s132
      %p144 = scmp.eq.s32.totalorder %s33, 1
      %p145 = por %p143, %p144
      %p147 = scmp.ne.s32.totalorder %s132, %s146
      %p148 = scmp.eq.s32.totalorder %s33, 0
      %p149 = por %p147, %p148
      %s151 = sadd.s32 %s150, 1
      %p154 = scmp.eq.s32.totalorder %s27, 1
      %p155 = scmp.ne.s32.totalorder %s150, %s152
      %p156 = scmp.eq.s32.totalorder %s27, 0
      %p157 = por %p155, %p156
      %p158 = scmp.ne.s32.totalorder %s150, %s152
      %p159 = scmp.eq.s32.totalorder %s32, 1
      %p160 = por %p158, %p159
      %p161 = scmp.ne.s32.totalorder %s152, %s153
      %p162 = scmp.eq.s32.totalorder %s32, 0
      %p163 = por %p161, %p162
      %p164 = scmp.ne.s32.totalorder %s152, %s153
      %p165 = scmp.eq.s32.totalorder %s33, 1
      %p166 = por %p164, %p165
      %p168 = scmp.ne.s32.totalorder %s153, %s167
      %p169 = scmp.eq.s32.totalorder %s33, 0
      %p170 = por %p168, %p169
      %s172 = sadd.s32 %s171, 1
      %p175 = scmp.eq.s32.totalorder %s27, 1
      %p176 = scmp.ne.s32.totalorder %s171, %s173
      %p177 = scmp.eq.s32.totalorder %s27, 0
      %p178 = por %p176, %p177
      %p179 = scmp.ne.s32.totalorder %s171, %s173
      %p180 = scmp.eq.s32.totalorder %s32, 1
      %p181 = por %p179, %p180
      %p182 = scmp.ne.s32.totalorder %s173, %s174
      %p183 = scmp.eq.s32.totalorder %s32, 0
      %p184 = por %p182, %p183
      %p185 = scmp.ne.s32.totalorder %s173, %s174
      %p186 = scmp.eq.s32.totalorder %s33, 1
      %p187 = por %p185, %p186
      %p189 = scmp.ne.s32.totalorder %s174, %s188
      %p190 = scmp.eq.s32.totalorder %s33, 0
      %p191 = por %p189, %p190
      %s193 = sadd.s32 %s192, 1
      %p196 = scmp.eq.s32.totalorder %s27, 1
      %p197 = scmp.ne.s32.totalorder %s192, %s194
      %p198 = scmp.eq.s32.totalorder %s27, 0
      %p199 = por %p197, %p198
      %p200 = scmp.ne.s32.totalorder %s192, %s194
      %p201 = scmp.eq.s32.totalorder %s32, 1
      %p202 = por %p200, %p201
      %p203 = scmp.ne.s32.totalorder %s194, %s195
      %p204 = scmp.eq.s32.totalorder %s32, 0
      %p205 = por %p203, %p204
      %p206 = scmp.ne.s32.totalorder %s194, %s195
      %p207 = scmp.eq.s32.totalorder %s33, 1
      %p208 = por %p206, %p207
      %p210 = scmp.ne.s32.totalorder %s195, %s209
      %p211 = scmp.eq.s32.totalorder %s33, 0
      %p212 = por %p210, %p211
      %s214 = sadd.s32 %s213, 1
      %p217 = scmp.eq.s32.totalorder %s27, 1
      %p218 = scmp.ne.s32.totalorder %s213, %s215
      %p219 = scmp.eq.s32.totalorder %s27, 0
      %p220 = por %p218, %p219
      %p221 = scmp.ne.s32.totalorder %s213, %s215
      %p222 = scmp.eq.s32.totalorder %s32, 1
      %p223 = por %p221, %p222
      %p224 = scmp.ne.s32.totalorder %s215, %s216
      %p225 = scmp.eq.s32.totalorder %s32, 0
      %p226 = por %p224, %p225
      %p227 = scmp.ne.s32.totalorder %s215, %s216
      %p228 = scmp.eq.s32.totalorder %s33, 1
      %p229 = por %p227, %p228
      %p231 = scmp.ne.s32.totalorder %s216, %s230
      %p232 = scmp.eq.s32.totalorder %s33, 0
      %p233 = por %p231, %p232
      %s235 = sadd.s32 %s234, 1
      %p238 = scmp.eq.s32.totalorder %s27, 1
      %p239 = scmp.ne.s32.totalorder %s234, %s236
      %p240 = scmp.eq.s32.totalorder %s27, 0
      %p241 = por %p239, %p240
      %p242 = scmp.ne.s32.totalorder %s234, %s236
      %p243 = scmp.eq.s32.totalorder %s32, 1
      %p244 = por %p242, %p243
      %p245 = scmp.ne.s32.totalorder %s236, %s237
      %p246 = scmp.eq.s32.totalorder %s32, 0
      %p247 = por %p245, %p246
      %p248 = scmp.ne.s32.totalorder %s236, %s237
      %p249 = scmp.eq.s32.totalorder %s33, 1
      %p250 = por %p248, %p249
      %p252 = scmp.ne.s32.totalorder %s237, %s251
      %p253 = scmp.eq.s32.totalorder %s33, 0
      %p254 = por %p252, %p253
      %s255 = ssub.s32 %s27, %s34
      %p256 = scmp.eq.s32.totalorder %s255, 0
      %s258 = sadd.s32 %s257, 1
      %s259 = scalar_select %p256, %s257, %s258
      %p262 = pneg %p256
      %p263 = scmp.eq.s32.totalorder %s27, 1
      %p264 = por %p262, %p263
      %p265 = scmp.ne.s32.totalorder %s257, %s260
      %p266 = scmp.eq.s32.totalorder %s27, 0
      %p267 = por %p265, %p266
      %p268 = scmp.ne.s32.totalorder %s257, %s260
      %p269 = scmp.eq.s32.totalorder %s32, 1
      %p270 = por %p268, %p269
      %p271 = scmp.ne.s32.totalorder %s260, %s261
      %p272 = scmp.eq.s32.totalorder %s32, 0
      %p273 = por %p271, %p272
      %p274 = scmp.ne.s32.totalorder %s260, %s261
      %p275 = scmp.eq.s32.totalorder %s33, 1
      %p276 = por %p274, %p275
      %p278 = scmp.ne.s32.totalorder %s261, %s277
      %p279 = scmp.eq.s32.totalorder %s33, 0
      %p280 = por %p278, %p279
      %p281 = scmp.le.s32.totalorder 1, %s27
      %p282 = scmp.lt.s32.totalorder %s27, 3
      %p283 = pnand %p281, %p282
      %p284 = pneg %p283
      // Predicated region
      $region9: #{tpu_custom_call.1} parent=5 // pred_check
        _
      $region10: #{tpu_custom_call.1} parent=5 // pred_check_branch
        %286 = sbr.rel (%p283) target = $region12
      $region11: #{tpu_custom_call.1} parent=5 // pred_region
        %s287 = ssub.s32 %s27, 1
        // Predicated region
        $region13: #{tpu_custom_call.1} parent=11 // pred_check
          %p288 = pneg %p100
        $region14: #{tpu_custom_call.1} parent=11 // pred_check_branch
          %290 = sbr.rel (%p288) target = $region16
        $region15: #{tpu_custom_call.1} parent=11 // pred_region
          %s292 = ssub.s32 128, 128
          %293 = vsyncadd [#allocation6], %s292
          %s295 = sshll.u32 [#allocation7], 4
          %s296 = int_to_ptr.vmem [resolvable:$true] %s295
          %298 = dma.hbm_to_vmem [thread:$0]  %s2, 128, %s296, [#allocation6]
        $region16: #{tpu_custom_call.1} parent=11 // pred_fallthru
          _
        // Predicated region
        $region17: #{tpu_custom_call.1} parent=11 // pred_check
          %p299 = pneg %p121
        $region18: #{tpu_custom_call.1} parent=11 // pred_check_branch
          %301 = sbr.rel (%p299) target = $region20
        $region19: #{tpu_custom_call.1} parent=11 // pred_region
          %s303 = ssub.s32 128, 128
          %304 = vsyncadd [#allocation9], %s303
          %s306 = sshll.u32 [#allocation8], 4
          %s307 = int_to_ptr.vmem [resolvable:$true] %s306
          %309 = dma.hbm_to_vmem [thread:$0]  %s3, 128, %s307, [#allocation9]
        $region20: #{tpu_custom_call.1} parent=11 // pred_fallthru
          _
        // Predicated region
        $region21: #{tpu_custom_call.1} parent=11 // pred_check
          %p310 = pneg %p142
        $region22: #{tpu_custom_call.1} parent=11 // pred_check_branch
          %312 = sbr.rel (%p310) target = $region24
        $region23: #{tpu_custom_call.1} parent=11 // pred_region
          _
        $region24: #{tpu_custom_call.1} parent=11 // pred_fallthru
          _
        // Predicated region
        $region25: #{tpu_custom_call.1} parent=11 // pred_check
          %p313 = pneg %p163
        $region26: #{tpu_custom_call.1} parent=11 // pred_check_branch
          %315 = sbr.rel (%p313) target = $region28
        $region27: #{tpu_custom_call.1} parent=11 // pred_region
          %s317 = ssub.s32 128, 128
          %318 = vsyncadd [#allocation9], %s317
          %s320 = sshll.u32 [#allocation10], 4
          %s321 = int_to_ptr.vmem [resolvable:$true] %s320
          %323 = dma.hbm_to_vmem [thread:$0]  %s5, 128, %s321, [#allocation9]
        $region28: #{tpu_custom_call.1} parent=11 // pred_fallthru
          _
        // Predicated region
        $region29: #{tpu_custom_call.1} parent=11 // pred_check
          %p324 = pneg %p184
        $region30: #{tpu_custom_call.1} parent=11 // pred_check_branch
          %326 = sbr.rel (%p324) target = $region32
        $region31: #{tpu_custom_call.1} parent=11 // pred_region
          _
        $region32: #{tpu_custom_call.1} parent=11 // pred_fallthru
          _
        // Predicated region
        $region33: #{tpu_custom_call.1} parent=11 // pred_check
          %p327 = pneg %p205
        $region34: #{tpu_custom_call.1} parent=11 // pred_check_branch
          %329 = sbr.rel (%p327) target = $region36
        $region35: #{tpu_custom_call.1} parent=11 // pred_region
          %s331 = ssub.s32 64, 64
          %332 = vsyncadd [#allocation12], %s331
          %s334 = sshll.u32 [#allocation11], 4
          %s335 = int_to_ptr.vmem [resolvable:$true] %s334
          %337 = dma.hbm_to_vmem [thread:$0]  %s7, 64, %s335, [#allocation12]
        $region36: #{tpu_custom_call.1} parent=11 // pred_fallthru
          _
        // Predicated region
        $region37: #{tpu_custom_call.1} parent=11 // pred_check
          %p338 = pneg %p226
        $region38: #{tpu_custom_call.1} parent=11 // pred_check_branch
          %340 = sbr.rel (%p338) target = $region40
        $region39: #{tpu_custom_call.1} parent=11 // pred_region
          %s342 = ssub.s32 32, 32
          %343 = vsyncadd [#allocation12], %s342
          %s345 = sshll.u32 [#allocation13], 4
          %s346 = int_to_ptr.vmem [resolvable:$true] %s345
          %348 = dma.hbm_to_vmem [thread:$0]  %s8, 32, %s346, [#allocation12]
        $region40: #{tpu_custom_call.1} parent=11 // pred_fallthru
          _
        // Predicated region
        $region41: #{tpu_custom_call.1} parent=11 // pred_check
          %p349 = pneg %p247
        $region42: #{tpu_custom_call.1} parent=11 // pred_check_branch
          %351 = sbr.rel (%p349) target = $region44
        $region43: #{tpu_custom_call.1} parent=11 // pred_region
          _
        $region44: #{tpu_custom_call.1} parent=11 // pred_fallthru
          _
      $region12: #{tpu_custom_call.1} parent=5 // pred_fallthru
        _
      %p352 = scmp.lt.s32.totalorder %s27, 2
      // Predicated region
      $region45: #{tpu_custom_call.1} parent=5 // pred_check
        %p353 = pneg %p352
      $region46: #{tpu_custom_call.1} parent=5 // pred_check_branch
        %355 = sbr.rel (%p353) target = $region48
      $region47: #{tpu_custom_call.1} parent=5 // pred_region
        // Predicated region
        $region49: #{tpu_custom_call.1} parent=47 // pred_check
          %p356 = pneg %p47
        $region50: #{tpu_custom_call.1} parent=47 // pred_check_branch
          %358 = sbr.rel (%p356) target = $region52
        $region51: #{tpu_custom_call.1} parent=47 // pred_region
          %s359 = sand.u32 %s37, 1
          %s360 = scalar_lea.sflag [#allocation3], %s359
          %s361 = sand.u32 %s37, 1
          %s362 = smul.addr %s361, 8
          %s363 = scalar_lea.vmem [#allocation2], %s362
          %s365 = ssub.s32 128, 128
          %366 = vsyncadd %s360, %s365
          %s367 = smul.addr %s27, 2
          %s368 = smul.addr %s367, 64
          %s369 = scalar_lea.hbm %s0, %s368
          %s371 = sshll.u32 %s363, 4
          %s372 = int_to_ptr.vmem [resolvable:$true] %s371
          %374 = dma.hbm_to_vmem [thread:$0]  %s369, 128, %s372, %s360
        $region52: #{tpu_custom_call.1} parent=47 // pred_fallthru
          _
        // Predicated region
        $region53: #{tpu_custom_call.1} parent=47 // pred_check
          %p375 = pneg %p73
        $region54: #{tpu_custom_call.1} parent=47 // pred_check_branch
          %377 = sbr.rel (%p375) target = $region56
        $region55: #{tpu_custom_call.1} parent=47 // pred_region
          %s378 = sand.u32 %s27, 1
          %s379 = scalar_lea.sflag [#allocation6], %s378
          %s380 = sand.u32 %s63, 1
          %s381 = smul.addr %s380, 4
          %s382 = scalar_lea.vmem [#allocation5], %s381
          %s384 = ssub.s32 64, 64
          %385 = vsyncadd %s379, %s384
          %s386 = smul.addr %s27, 64
          %s387 = scalar_lea.hbm %s1, %s386
          %s389 = sshll.u32 %s382, 4
          %s390 = int_to_ptr.vmem [resolvable:$true] %s389
          %392 = dma.hbm_to_vmem [thread:$0]  %s387, 64, %s390, %s379
        $region56: #{tpu_custom_call.1} parent=47 // pred_fallthru
          _
      $region48: #{tpu_custom_call.1} parent=5 // pred_fallthru
        _
      %p393 = scmp.le.s32.totalorder 1, %s27
      %p394 = scmp.lt.s32.totalorder %s27, 3
      %p395 = pnand %p393, %p394
      %p396 = pneg %p395
      // Predicated region
      $region57: #{tpu_custom_call.1} parent=5 // pred_check
        _
      $region58: #{tpu_custom_call.1} parent=5 // pred_check_branch
        %398 = sbr.rel (%p395) target = $region60
      $region59: #{tpu_custom_call.1} parent=5 // pred_region
        %s399 = ssub.s32 %s27, 1
        %s400 = sand.u32 %s40, 1
        %s401 = scalar_lea.sflag [#allocation3], %s400
        %s402 = sand.u32 %s40, 1
        %s403 = smul.addr %s402, 8
        %s404 = scalar_lea.vmem [#allocation2], %s403
        // Predicated region
        $region61: #{tpu_custom_call.1} parent=59 // pred_check
          %p405 = pneg %p53
        $region62: #{tpu_custom_call.1} parent=59 // pred_check_branch
          %407 = sbr.rel (%p405) target = $region64
        $region63: #{tpu_custom_call.1} parent=59 // pred_region
          %408 = dma.done %s401, 128
        $region64: #{tpu_custom_call.1} parent=59 // pred_fallthru
          _
        %s409 = sand.u32 %s32, 1
        %s410 = scalar_lea.sflag [#allocation6], %s409
        %s411 = sand.u32 %s66, 1
        %s412 = smul.addr %s411, 4
        %s413 = scalar_lea.vmem [#allocation5], %s412
        // Predicated region
        $region65: #{tpu_custom_call.1} parent=59 // pred_check
          %p414 = pneg %p79
        $region66: #{tpu_custom_call.1} parent=59 // pred_check_branch
          %416 = sbr.rel (%p414) target = $region68
        $region67: #{tpu_custom_call.1} parent=59 // pred_region
          %417 = dma.done %s410, 64
        $region68: #{tpu_custom_call.1} parent=59 // pred_fallthru
          _
        // Predicated region
        $region69: #{tpu_custom_call.1} parent=59 // pred_check
          %p418 = pneg %p100
        $region70: #{tpu_custom_call.1} parent=59 // pred_check_branch
          %420 = sbr.rel (%p418) target = $region72
        $region71: #{tpu_custom_call.1} parent=59 // pred_region
          %421 = dma.done [#allocation6], 128
        $region72: #{tpu_custom_call.1} parent=59 // pred_fallthru
          _
        // Predicated region
        $region73: #{tpu_custom_call.1} parent=59 // pred_check
          %p422 = pneg %p121
        $region74: #{tpu_custom_call.1} parent=59 // pred_check_branch
          %424 = sbr.rel (%p422) target = $region76
        $region75: #{tpu_custom_call.1} parent=59 // pred_region
          %425 = dma.done [#allocation9], 128
        $region76: #{tpu_custom_call.1} parent=59 // pred_fallthru
          _
        // Predicated region
        $region77: #{tpu_custom_call.1} parent=59 // pred_check
          %p426 = pneg %p163
        $region78: #{tpu_custom_call.1} parent=59 // pred_check_branch
          %428 = sbr.rel (%p426) target = $region80
        $region79: #{tpu_custom_call.1} parent=59 // pred_region
          %429 = dma.done [#allocation9], 128
        $region80: #{tpu_custom_call.1} parent=59 // pred_fallthru
          _
        // Predicated region
        $region81: #{tpu_custom_call.1} parent=59 // pred_check
          %p430 = pneg %p205
        $region82: #{tpu_custom_call.1} parent=59 // pred_check_branch
          %432 = sbr.rel (%p430) target = $region84
        $region83: #{tpu_custom_call.1} parent=59 // pred_region
          %433 = dma.done [#allocation12], 64
        $region84: #{tpu_custom_call.1} parent=59 // pred_fallthru
          _
        // Predicated region
        $region85: #{tpu_custom_call.1} parent=59 // pred_check
          %p434 = pneg %p226
        $region86: #{tpu_custom_call.1} parent=59 // pred_check_branch
          %436 = sbr.rel (%p434) target = $region88
        $region87: #{tpu_custom_call.1} parent=59 // pred_region
          %437 = dma.done [#allocation12], 32
        $region88: #{tpu_custom_call.1} parent=59 // pred_fallthru
          _
        %s438 = sand.u32 %s40, 1
        %s439 = scalar_lea.sflag [#allocation3], %s438
        %s440 = sand.u32 %s40, 1
        %s441 = smul.addr %s440, 8
        %s442 = scalar_lea.vmem [#allocation2], %s441
        %p443 = pneg %p53
        %p444 = pneg %p50
        %s445 = sand.u32 %s32, 1
        %s446 = scalar_lea.sflag [#allocation6], %s445
        %s447 = sand.u32 %s66, 1
        %s448 = smul.addr %s447, 4
        %s449 = scalar_lea.vmem [#allocation5], %s448
        %p450 = pneg %p79
        %p451 = pneg %p76
        %p452 = pneg %p100
        %p453 = pneg %p97
        %p454 = pneg %p121
        %p455 = pneg %p118
        %p456 = pneg %p142
        %p457 = pneg %p139
        %p458 = pneg %p163
        %p459 = pneg %p160
        %p460 = pneg %p184
        %p461 = pneg %p181
        %p462 = pneg %p205
        %p463 = pneg %p202
        %p464 = pneg %p226
        %p465 = pneg %p223
        %p466 = pneg %p247
        %p467 = pneg %p244
        %p468 = pneg %p273
        %p469 = pneg %p270
        %s470 = sand.u32 %s260, 1
        %s471 = scalar_lea.sflag [#allocation4], %s470
        %s472 = sand.u32 %s260, 1
        %s473 = smul.addr %s472, 16
        %s474 = scalar_lea.vmem [#allocation14], %s473
        %v475 = vld [vmem:[%s404] sm:$0xff]
        %v477 = vcombine.high %v475, %v475
        %478 = vrot.lane.b32.xlu0 %v475, 17
        %v479 = vpop.permute.xlu0 %478
        %480 = vrot.lane.b32.xlu0 %v477, 17
        %v481 = vpop.permute.xlu0 %480
        %vm482 = vcmask 138240
        %v483 = vsel %vm482, %v479, %v481
        %v487 = vsel %vm482, 0.0, %v479
        %v488 = vsel %vm482, %v481, 0.0
        %v489 = vld [vmem:[#allocation11] ss:$2 sm:$0x3]
        %s490 = scalar_lea.vmem [#allocation11], 1
        %v491 = vld [vmem:[%s490] ss:$2 sm:$0x3]
        %v493 = vlaneseq
        %v494 = vshrl.u32 %v493, 7
        %v495 = vsub.s32 0, %v494
        %v496 = vrot.slane %v489, %v495
        %v497 = vlaneseq
        %v498 = vshrl.u32 %v497, 7
        %v499 = vsub.s32 1, %v498
        %v500 = vrot.slane %v489, %v499
        %v503 = vmul.f32 %v487, %v496
        %v504 = vmul.f32 %v483, %v500
        %v506 = vlaneseq
        %v507 = vshrl.u32 %v506, 7
        %v508 = vsub.s32 0, %v507
        %v509 = vrot.slane %v491, %v508
        %v510 = vlaneseq
        %v511 = vshrl.u32 %v510, 7
        %v512 = vsub.s32 1, %v511
        %v513 = vrot.slane %v491, %v512
        %514 = vrot.lane.b32.xlu0 %v509, 2
        %v515 = vpop.permute.xlu0 %514
        %516 = vrot.lane.b32.xlu0 %v513, 2
        %v517 = vpop.permute.xlu0 %516
        %vm518 = vcmask 15360
        %v519 = vsel %vm518, %v515, %v517
        %v523 = vmul.f32 %v487, %v515
        %v524 = vmul.f32 %v483, %v519
        %v525 = vmul.f32 %v488, %v517
        %526 = vrot.lane.b32.xlu0 %v496, 16
        %v527 = vpop.permute.xlu0 %526
        %528 = vrot.lane.b32.xlu0 %v500, 16
        %v529 = vpop.permute.xlu0 %528
        %vm530 = vcmask 130048
        %v531 = vsel %vm530, %v527, %v529
        %v535 = vmul.f32 %v487, %v527
        %v536 = vmul.f32 %v483, %v531
        %v537 = vmul.f32 %v488, %v529
        %538 = vrot.lane.b32.xlu0 %v509, 18
        %v539 = vpop.permute.xlu0 %538
        %540 = vrot.lane.b32.xlu0 %v513, 18
        %v541 = vpop.permute.xlu0 %540
        %vm542 = vcmask 146432
        %v543 = vsel %vm542, %v539, %v541
        %v547 = vmul.f32 %v487, %v539
        %v548 = vmul.f32 %v483, %v543
        %v549 = vmul.f32 %v488, %v541
        %550 = vrot.lane.b32.xlu0 %v496, 32
        %v551 = vpop.permute.xlu0 %550
        %552 = vrot.lane.b32.xlu0 %v500, 32
        %v553 = vpop.permute.xlu0 %552
        %vm554 = vcmask 261120
        %v555 = vsel %vm554, %v551, %v553
        %v559 = vmul.f32 %v487, %v551
        %v560 = vmul.f32 %v483, %v555
        %v561 = vmul.f32 %v488, %v553
        %562 = vrot.lane.b32.xlu0 %v509, 34
        %v563 = vpop.permute.xlu0 %562
        %564 = vrot.lane.b32.xlu0 %v513, 34
        %v565 = vpop.permute.xlu0 %564
        %vm566 = vcmask 277504
        %v567 = vsel %vm566, %v563, %v565
        %v571 = vmul.f32 %v487, %v563
        %v572 = vmul.f32 %v483, %v567
        %v573 = vmul.f32 %v488, %v565
        %v576 = vrot.slane %v487, 4
        %v577 = vrot.slane %v483, 4
        %v578 = vrot.slane %v488, 4
        %579 = vrot.lane.b32.xlu0 %v576, 127
        %v580 = vpop.permute.xlu0 %579
        %581 = vrot.lane.b32.xlu0 %v577, 127
        %v582 = vpop.permute.xlu0 %581
        %583 = vrot.lane.b32.xlu0 %v578, 127
        %v584 = vpop.permute.xlu0 %583
        %vm585 = vcmask 1039360
        %v586 = vsel %vm585, %v580, %v582
        %v587 = vsel %vm585, %v582, %v584
        %593 = vrot.lane.b32.xlu0 %v523, 126
        %v594 = vpop.permute.xlu0 %593
        %595 = vrot.lane.b32.xlu0 %v524, 126
        %v596 = vpop.permute.xlu0 %595
        %597 = vrot.lane.b32.xlu0 %v525, 126
        %v598 = vpop.permute.xlu0 %597
        %vm599 = vcmask 1031168
        %v600 = vsel %vm599, %v594, %v596
        %v601 = vsel %vm599, %v596, %v598
        %v607 = vrot.slane %v535, 4
        %v608 = vrot.slane %v536, 4
        %v609 = vrot.slane %v537, 4
        %610 = vrot.lane.b32.xlu0 %v607, 112
        %v611 = vpop.permute.xlu0 %610
        %612 = vrot.lane.b32.xlu0 %v608, 112
        %v613 = vpop.permute.xlu0 %612
        %614 = vrot.lane.b32.xlu0 %v609, 112
        %v615 = vpop.permute.xlu0 %614
        %vm616 = vcmask 916480
        %v617 = vsel %vm616, %v611, %v613
        %v618 = vsel %vm616, %v613, %v615
        %621 = vrot.lane.b32.xlu0 %v487, 111
        %v622 = vpop.permute.xlu0 %621
        %623 = vrot.lane.b32.xlu0 %v483, 111
        %v624 = vpop.permute.xlu0 %623
        %625 = vrot.lane.b32.xlu0 %v488, 111
        %v626 = vpop.permute.xlu0 %625
        %vm627 = vcmask 908288
        %v628 = vsel %vm627, %v622, %v624
        %v629 = vsel %vm627, %v624, %v626
        %v635 = vrot.slane %v547, 4
        %v636 = vrot.slane %v548, 4
        %v637 = vrot.slane %v549, 4
        %638 = vrot.lane.b32.xlu0 %v635, 110
        %v639 = vpop.permute.xlu0 %638
        %640 = vrot.lane.b32.xlu0 %v636, 110
        %v641 = vpop.permute.xlu0 %640
        %642 = vrot.lane.b32.xlu0 %v637, 110
        %v643 = vpop.permute.xlu0 %642
        %vm644 = vcmask 900096
        %v645 = vsel %vm644, %v639, %v641
        %v646 = vsel %vm644, %v641, %v643
        %652 = vrot.lane.b32.xlu0 %v559, 96
        %v653 = vpop.permute.xlu0 %652
        %654 = vrot.lane.b32.xlu0 %v560, 96
        %v655 = vpop.permute.xlu0 %654
        %656 = vrot.lane.b32.xlu0 %v561, 96
        %v657 = vpop.permute.xlu0 %656
        %vm658 = vcmask 785408
        %v659 = vsel %vm658, %v653, %v655
        %v660 = vsel %vm658, %v655, %v657
        %663 = vrot.lane.b32.xlu0 %v576, 95
        %v664 = vpop.permute.xlu0 %663
        %665 = vrot.lane.b32.xlu0 %v577, 95
        %v666 = vpop.permute.xlu0 %665
        %667 = vrot.lane.b32.xlu0 %v578, 95
        %v668 = vpop.permute.xlu0 %667
        %vm669 = vcmask 777216
        %v670 = vsel %vm669, %v664, %v666
        %v671 = vsel %vm669, %v666, %v668
        %677 = vrot.lane.b32.xlu0 %v571, 94
        %v678 = vpop.permute.xlu0 %677
        %679 = vrot.lane.b32.xlu0 %v572, 94
        %v680 = vpop.permute.xlu0 %679
        %681 = vrot.lane.b32.xlu0 %v573, 94
        %v682 = vpop.permute.xlu0 %681
        %vm683 = vcmask 769024
        %v684 = vsel %vm683, %v678, %v680
        %v685 = vsel %vm683, %v680, %v682
        %vm688 = vcmask 1043456
        %v689 = vsel %vm688, %v503, %v586
        %v690 = vsel %vm688, %v504, %v587
        %v691 = vsel %vm688, %v600, %v617
        %v692 = vsel %vm688, %v601, %v618
        %v693 = vsel %vm688, %v628, %v645
        %v694 = vsel %vm688, %v629, %v646
        %v695 = vsel %vm688, %v659, %v670
        %v696 = vsel %vm688, %v660, %v671
        %v697 = vsel %vm688, %v684, 1.0
        %v698 = vsel %vm688, %v685, 1.0
        %v699 = vld [vmem:[#allocation7] sm:$0xff]
        %vm700 = vcmask 302080
        %v702 = vsel %vm700, %v699, 0
        %vm704 = vcmask 1044480
        %v706 = vsel %vm704, %v697, 0
        %v709 = vsel %vm704, %v698, 0
        %711 = vmatprep.subr.mxu0 %v690
        %712 = vmatpush1.msra.mxu0 %v689
        %713 = vmatprep.subr.mxu0 %v692
        %714 = vmatpush1.msra.mxu0 %v691
        %715 = vmatprep.subr.mxu0 %v694
        %716 = vmatpush1.msra.mxu0 %v693
        %717 = vmatprep.subr.mxu0 %v696
        %718 = vmatpush1.msra.mxu0 %v695
        %719 = vmatprep.subr.mxu0 %v709
        %720 = vmatpush1.msra.mxu0 %v706
        %721 = vmatprep.subr.mxu0 0.0
        %722 = vmatpush1.msra.mxu0 0.0
        %723 = vmatprep.subr.mxu0 0.0
        %724 = vmatpush1.msra.mxu0 0.0
        %725 = vmatprep.subr.mxu0 0.0
        %726 = vmatpush1.msra.mxu0 0.0
        %727 = vmatprep.subr.mxu0 0.0
        %728 = vmatpush1.msra.mxu0 0.0
        %729 = vmatprep.subr.mxu0 0.0
        %730 = vmatpush1.msra.mxu0 0.0
        %731 = vmatprep.subr.mxu0 0.0
        %732 = vmatpush1.msra.mxu0 0.0
        %733 = vmatprep.subr.mxu0 0.0
        %734 = vmatpush1.msra.mxu0 0.0
        %735 = vmatprep.subr.mxu0 0.0
        %736 = vmatpush1.msra.mxu0 0.0
        %737 = vmatprep.subr.mxu0 0.0
        %738 = vmatpush1.msra.mxu0 0.0
        %739 = vmatprep.subr.mxu0 0.0
        %740 = vmatpush1.msra.mxu0 0.0
        %741 = vmatprep.subr.mxu0 0.0
        %742 = vmatpush1.msra.mxu0 0.0
        %743 = vmatprep.subr.mxu0 0.0
        %744 = vmatpush1.msra.mxu0 0.0
        %745 = vmatprep.subr.mxu0 0.0
        %746 = vmatpush1.msra.mxu0 0.0
        %747 = vmatprep.subr.mxu0 0.0
        %748 = vmatpush1.msra.mxu0 0.0
        %749 = vmatprep.subr.mxu0 0.0
        %750 = vmatpush1.msra.mxu0 0.0
        %751 = vmatprep.subr.mxu0 0.0
        %752 = vmatpush1.msra.mxu0 0.0
        %753 = vmatprep.subr.mxu0 0.0
        %754 = vmatpush1.msra.mxu0 0.0
        %755 = vmatprep.subr.mxu0 0.0
        %756 = vmatpush1.msra.mxu0 0.0
        %757 = vmatprep.subr.mxu0 0.0
        %758 = vmatpush1.msra.mxu0 0.0
        %759 = vmatprep.subr.mxu0 0.0
        %760 = vmatpush1.msra.mxu0 0.0
        %761 = vmatprep.subr.mxu0 0.0
        %762 = vmatpush1.msra.mxu0 0.0
        %763 = vmatprep.subr.mxu0 0.0
        %764 = vmatpush1.msra.mxu0 0.0
        %765 = vmatprep.subr.mxu0 0.0
        %766 = vmatpush1.msra.mxu0 0.0
        %767 = vmatprep.subr.mxu0 0.0
        %768 = vmatpush1.msra.mxu0 0.0
        %769 = vmatprep.subr.mxu0 0.0
        %770 = vmatpush1.msra.mxu0 0.0
        %771 = vmatprep.subr.mxu0 0.0
        %772 = vmatpush1.msra.mxu0 0.0
        %773 = vmatprep.subr.mxu0 0.0
        %774 = vmatpush1.msra.mxu0 0.0
        %775 = vmatprep.mubr.f32.mxu0 0.0
        %776 = vmatmul.mubr.f32.gmra.mrb[0].mxu0 %v702
        %v777 = vpop.f32.mrb[0].mxu0
        %v778 = vadd.f32 0.0, %v777
        %v779 = vpop.f32.mrb[0].mxu0
        %v780 = vadd.f32 0.0, %v779
        %781 = vdwg.mxu0
        %v782 = vmax.f32 %v778, 0.0
        %v783 = vmax.f32 %v780, 0.0
        %v784 = vld [vmem:[%s413] sm:$0xf]
        %786 = vrot.lane.b32.xlu0 %v784, 9
        %v787 = vpop.permute.xlu0 %786
        %vm789 = vcmask 72704
        %v790 = vsel %vm789, 0.0, %v787
        %vm791 = vcmask 596992
        %v792 = vsel %vm791, %v790, 0.0
        %v793 = vld [vmem:[#allocation13] sm:$0x1]
        %v794 = vld [vmem:[#allocation13 + $0x1] sm:$0x1]
        %v795 = vlaneseq
        %v796 = vshrl.u32 %v795, 7
        %v797 = vsub.s32 0, %v796
        %v798 = vrot.slane %v793, %v797
        %v799 = vmul.f32 %v792, %v798
        %v800 = vlaneseq
        %v801 = vshrl.u32 %v800, 7
        %v802 = vsub.s32 0, %v801
        %v803 = vrot.slane %v794, %v802
        %805 = vrot.lane.b32.xlu0 %v803, 2
        %v806 = vpop.permute.xlu0 %805
        %v808 = vmul.f32 %v792, %v806
        %810 = vrot.lane.b32.xlu0 %v798, 8
        %v811 = vpop.permute.xlu0 %810
        %v813 = vmul.f32 %v792, %v811
        %814 = vrot.lane.b32.xlu0 %v803, 10
        %v815 = vpop.permute.xlu0 %814
        %v817 = vmul.f32 %v792, %v815
        %818 = vrot.lane.b32.xlu0 %v798, 16
        %v819 = vpop.permute.xlu0 %818
        %v821 = vmul.f32 %v792, %v819
        %822 = vrot.lane.b32.xlu0 %v803, 18
        %v823 = vpop.permute.xlu0 %822
        %v825 = vmul.f32 %v792, %v823
        %v827 = vrot.slane %v792, 4
        %828 = vrot.lane.b32.xlu0 %v827, 127
        %v829 = vpop.permute.xlu0 %828
        %832 = vrot.lane.b32.xlu0 %v808, 126
        %v833 = vpop.permute.xlu0 %832
        %v836 = vrot.slane %v813, 4
        %837 = vrot.lane.b32.xlu0 %v836, 120
        %v838 = vpop.permute.xlu0 %837
        %840 = vrot.lane.b32.xlu0 %v792, 119
        %v841 = vpop.permute.xlu0 %840
        %v844 = vrot.slane %v817, 4
        %845 = vrot.lane.b32.xlu0 %v844, 118
        %v846 = vpop.permute.xlu0 %845
        %849 = vrot.lane.b32.xlu0 %v821, 112
        %v850 = vpop.permute.xlu0 %849
        %852 = vrot.lane.b32.xlu0 %v827, 111
        %v853 = vpop.permute.xlu0 %852
        %856 = vrot.lane.b32.xlu0 %v825, 110
        %v857 = vpop.permute.xlu0 %856
        %v859 = vsel %vm688, %v799, %v829
        %v860 = vsel %vm688, %v833, %v838
        %v861 = vsel %vm688, %v841, %v846
        %v862 = vsel %vm688, %v850, %v853
        %v863 = vsel %vm688, %v857, 1.0
        %v864 = vld [vmem:[#allocation8] sm:$0xff]
        %v866 = vsel %vm700, %v864, 0
        %v869 = vsel %vm704, %v863, 0
        %871 = vmatprep.subr.mxu0 0.0
        %872 = vmatpush1.msra.mxu0 %v859
        %873 = vmatprep.subr.mxu0 0.0
        %874 = vmatpush1.msra.mxu0 %v860
        %875 = vmatprep.subr.mxu0 0.0
        %876 = vmatpush1.msra.mxu0 %v861
        %877 = vmatprep.subr.mxu0 0.0
        %878 = vmatpush1.msra.mxu0 %v862
        %879 = vmatprep.subr.mxu0 0.0
        %880 = vmatpush1.msra.mxu0 %v869
        %881 = vmatprep.subr.mxu0 0.0
        %882 = vmatpush1.msra.mxu0 0.0
        %883 = vmatprep.subr.mxu0 0.0
        %884 = vmatpush1.msra.mxu0 0.0
        %885 = vmatprep.subr.mxu0 0.0
        %886 = vmatpush1.msra.mxu0 0.0
        %887 = vmatprep.subr.mxu0 0.0
        %888 = vmatpush1.msra.mxu0 0.0
        %889 = vmatprep.subr.mxu0 0.0
        %890 = vmatpush1.msra.mxu0 0.0
        %891 = vmatprep.subr.mxu0 0.0
        %892 = vmatpush1.msra.mxu0 0.0
        %893 = vmatprep.subr.mxu0 0.0
        %894 = vmatpush1.msra.mxu0 0.0
        %895 = vmatprep.subr.mxu0 0.0
        %896 = vmatpush1.msra.mxu0 0.0
        %897 = vmatprep.subr.mxu0 0.0
        %898 = vmatpush1.msra.mxu0 0.0
        %899 = vmatprep.subr.mxu0 0.0
        %900 = vmatpush1.msra.mxu0 0.0
        %901 = vmatprep.subr.mxu0 0.0
        %902 = vmatpush1.msra.mxu0 0.0
        %903 = vmatprep.subr.mxu0 0.0
        %904 = vmatpush1.msra.mxu0 0.0
        %905 = vmatprep.subr.mxu0 0.0
        %906 = vmatpush1.msra.mxu0 0.0
        %907 = vmatprep.subr.mxu0 0.0
        %908 = vmatpush1.msra.mxu0 0.0
        %909 = vmatprep.subr.mxu0 0.0
        %910 = vmatpush1.msra.mxu0 0.0
        %911 = vmatprep.subr.mxu0 0.0
        %912 = vmatpush1.msra.mxu0 0.0
        %913 = vmatprep.subr.mxu0 0.0
        %914 = vmatpush1.msra.mxu0 0.0
        %915 = vmatprep.subr.mxu0 0.0
        %916 = vmatpush1.msra.mxu0 0.0
        %917 = vmatprep.subr.mxu0 0.0
        %918 = vmatpush1.msra.mxu0 0.0
        %919 = vmatprep.subr.mxu0 0.0
        %920 = vmatpush1.msra.mxu0 0.0
        %921 = vmatprep.subr.mxu0 0.0
        %922 = vmatpush1.msra.mxu0 0.0
        %923 = vmatprep.subr.mxu0 0.0
        %924 = vmatpush1.msra.mxu0 0.0
        %925 = vmatprep.subr.mxu0 0.0
        %926 = vmatpush1.msra.mxu0 0.0
        %927 = vmatprep.subr.mxu0 0.0
        %928 = vmatpush1.msra.mxu0 0.0
        %929 = vmatprep.subr.mxu0 0.0
        %930 = vmatpush1.msra.mxu0 0.0
        %931 = vmatprep.subr.mxu0 0.0
        %932 = vmatpush1.msra.mxu0 0.0
        %933 = vmatprep.subr.mxu0 0.0
        %934 = vmatpush1.msra.mxu0 0.0
        %935 = vmatprep.mubr.f32.mxu0 0.0
        %936 = vmatmul.mubr.f32.gmra.mrb[0].mxu0 %v866
        %v937 = vpop.f32.mrb[0].mxu0
        %v938 = vadd.f32 0.0, %v937
        %v939 = vpop.f32.mrb[0].mxu0
        %940 = vdwg.mxu0
        %v941 = vmax.f32 %v938, 0.0
        %943 = vrot.lane.b32.xlu0 %v941, 120
        %v944 = vpop.permute.xlu0 %943
        %945 = vrot.lane.b32.xlu0 %v941, 112
        %v946 = vpop.permute.xlu0 %945
        %947 = vrot.lane.b32.xlu0 %v941, 104
        %v948 = vpop.permute.xlu0 %947
        %949 = vrot.lane.b32.xlu0 %v941, 96
        %v950 = vpop.permute.xlu0 %949
        %951 = vrot.lane.b32.xlu0 %v941, 88
        %v952 = vpop.permute.xlu0 %951
        %953 = vrot.lane.b32.xlu0 %v941, 80
        %v954 = vpop.permute.xlu0 %953
        %955 = vrot.lane.b32.xlu0 %v941, 72
        %v956 = vpop.permute.xlu0 %955
        %v957 = vld [vmem:[#allocation10] sm:$0xff]
        %vm958 = vcmask 64512
        %v959 = vsel %vm958, %v941, 0
        %v961 = vsel %vm958, %v944, 0
        %v963 = vsel %vm958, %v946, 0
        %v965 = vsel %vm958, %v948, 0
        %v967 = vsel %vm958, %v950, 0
        %v969 = vsel %vm958, %v952, 0
        %v971 = vsel %vm958, %v954, 0
        %v973 = vsel %vm958, %v956, 0
        %975 = vmatprep.subr.mxu0 0.0
        %976 = vmatpush1.msra.mxu0 %v957
        %977 = vmatprep.subr.mxu0 0.0
        %978 = vmatpush1.msra.mxu0 0.0
        %979 = vmatprep.subr.mxu0 0.0
        %980 = vmatpush1.msra.mxu0 0.0
        %981 = vmatprep.subr.mxu0 0.0
        %982 = vmatpush1.msra.mxu0 0.0
        %983 = vmatprep.subr.mxu0 0.0
        %984 = vmatpush1.msra.mxu0 0.0
        %985 = vmatprep.subr.mxu0 0.0
        %986 = vmatpush1.msra.mxu0 0.0
        %987 = vmatprep.subr.mxu0 0.0
        %988 = vmatpush1.msra.mxu0 0.0
        %989 = vmatprep.subr.mxu0 0.0
        %990 = vmatpush1.msra.mxu0 0.0
        %991 = vmatprep.subr.mxu0 0.0
        %992 = vmatpush1.msra.mxu0 0.0
        %993 = vmatprep.subr.mxu0 0.0
        %994 = vmatpush1.msra.mxu0 0.0
        %995 = vmatprep.subr.mxu0 0.0
        %996 = vmatpush1.msra.mxu0 0.0
        %997 = vmatprep.subr.mxu0 0.0
        %998 = vmatpush1.msra.mxu0 0.0
        %999 = vmatprep.subr.mxu0 0.0
        %1000 = vmatpush1.msra.mxu0 0.0
        %1001 = vmatprep.subr.mxu0 0.0
        %1002 = vmatpush1.msra.mxu0 0.0
        %1003 = vmatprep.subr.mxu0 0.0
        %1004 = vmatpush1.msra.mxu0 0.0
        %1005 = vmatprep.subr.mxu0 0.0
        %1006 = vmatpush1.msra.mxu0 0.0
        %1007 = vmatprep.subr.mxu0 0.0
        %1008 = vmatpush1.msra.mxu0 0.0
        %1009 = vmatprep.subr.mxu0 0.0
        %1010 = vmatpush1.msra.mxu0 0.0
        %1011 = vmatprep.subr.mxu0 0.0
        %1012 = vmatpush1.msra.mxu0 0.0
        %1013 = vmatprep.subr.mxu0 0.0
        %1014 = vmatpush1.msra.mxu0 0.0
        %1015 = vmatprep.subr.mxu0 0.0
        %1016 = vmatpush1.msra.mxu0 0.0
        %1017 = vmatprep.subr.mxu0 0.0
        %1018 = vmatpush1.msra.mxu0 0.0
        %1019 = vmatprep.subr.mxu0 0.0
        %1020 = vmatpush1.msra.mxu0 0.0
        %1021 = vmatprep.subr.mxu0 0.0
        %1022 = vmatpush1.msra.mxu0 0.0
        %1023 = vmatprep.subr.mxu0 0.0
        %1024 = vmatpush1.msra.mxu0 0.0
        %1025 = vmatprep.subr.mxu0 0.0
        %1026 = vmatpush1.msra.mxu0 0.0
        %1027 = vmatprep.subr.mxu0 0.0
        %1028 = vmatpush1.msra.mxu0 0.0
        %1029 = vmatprep.subr.mxu0 0.0
        %1030 = vmatpush1.msra.mxu0 0.0
        %1031 = vmatprep.subr.mxu0 0.0
        %1032 = vmatpush1.msra.mxu0 0.0
        %1033 = vmatprep.subr.mxu0 0.0
        %1034 = vmatpush1.msra.mxu0 0.0
        %1035 = vmatprep.subr.mxu0 0.0
        %1036 = vmatpush1.msra.mxu0 0.0
        %1037 = vmatprep.subr.mxu0 0.0
        %1038 = vmatpush1.msra.mxu0 0.0
        %1039 = vmatprep.mubr.f32.mxu0 0.0
        %1040 = vmatmul.mubr.f32.gmra.mrb[0].mxu0 %v959
        %v1041 = vpop.f32.mrb[0].mxu0
        %v1042 = vadd.f32 0.0, %v1041
        %v1043 = vpop.f32.mrb[0].mxu0
        %1044 = vmatprep.mubr.f32.mxu0 0.0
        %1045 = vmatmul.mubr.f32.gmra.mrb[0].mxu0 %v961
        %v1046 = vpop.f32.mrb[0].mxu0
        %v1047 = vadd.f32 0.0, %v1046
        %v1048 = vpop.f32.mrb[0].mxu0
        %1049 = vmatprep.mubr.f32.mxu0 0.0
        %1050 = vmatmul.mubr.f32.gmra.mrb[0].mxu0 %v963
        %v1051 = vpop.f32.mrb[0].mxu0
        %v1052 = vadd.f32 0.0, %v1051
        %v1053 = vpop.f32.mrb[0].mxu0
        %1054 = vmatprep.mubr.f32.mxu0 0.0
        %1055 = vmatmul.mubr.f32.gmra.mrb[0].mxu0 %v965
        %v1056 = vpop.f32.mrb[0].mxu0
        %v1057 = vadd.f32 0.0, %v1056
        %v1058 = vpop.f32.mrb[0].mxu0
        %1059 = vmatprep.mubr.f32.mxu0 0.0
        %1060 = vmatmul.mubr.f32.gmra.mrb[0].mxu0 %v967
        %v1061 = vpop.f32.mrb[0].mxu0
        %v1062 = vadd.f32 0.0, %v1061
        %v1063 = vpop.f32.mrb[0].mxu0
        %1064 = vmatprep.mubr.f32.mxu0 0.0
        %1065 = vmatmul.mubr.f32.gmra.mrb[0].mxu0 %v969
        %v1066 = vpop.f32.mrb[0].mxu0
        %v1067 = vadd.f32 0.0, %v1066
        %v1068 = vpop.f32.mrb[0].mxu0
        %1069 = vmatprep.mubr.f32.mxu0 0.0
        %1070 = vmatmul.mubr.f32.gmra.mrb[0].mxu0 %v971
        %v1071 = vpop.f32.mrb[0].mxu0
        %v1072 = vadd.f32 0.0, %v1071
        %v1073 = vpop.f32.mrb[0].mxu0
        %1074 = vmatprep.mubr.f32.mxu0 0.0
        %1075 = vmatmul.mubr.f32.gmra.mrb[0].mxu0 %v973
        %v1076 = vpop.f32.mrb[0].mxu0
        %v1077 = vadd.f32 0.0, %v1076
        %v1078 = vpop.f32.mrb[0].mxu0
        %1079 = vdwg.mxu0
        %v1080 = vmul.f32 %v1042, 0.75
        %v1081 = vmul.f32 %v1047, 0.25
        %v1082 = vadd.f32 %v1080, %v1081
        %v1083 = vmul.f32 %v1042, 0.25
        %v1084 = vmul.f32 %v1047, 0.75
        %v1085 = vadd.f32 %v1083, %v1084
        %v1086 = vmul.f32 %v1052, 0.25
        %v1087 = vadd.f32 %v1084, %v1086
        %v1088 = vmul.f32 %v1052, 0.75
        %v1089 = vadd.f32 %v1081, %v1088
        %v1090 = vmul.f32 %v1057, 0.25
        %v1091 = vadd.f32 %v1088, %v1090
        %v1092 = vmul.f32 %v1057, 0.75
        %v1093 = vadd.f32 %v1086, %v1092
        %v1094 = vmul.f32 %v1062, 0.25
        %v1095 = vadd.f32 %v1092, %v1094
        %v1096 = vmul.f32 %v1062, 0.75
        %v1097 = vadd.f32 %v1090, %v1096
        %v1098 = vmul.f32 %v1067, 0.25
        %v1099 = vadd.f32 %v1096, %v1098
        %v1100 = vmul.f32 %v1067, 0.75
        %v1101 = vadd.f32 %v1094, %v1100
        %v1102 = vmul.f32 %v1072, 0.25
        %v1103 = vadd.f32 %v1100, %v1102
        %v1104 = vmul.f32 %v1072, 0.75
        %v1105 = vadd.f32 %v1098, %v1104
        %v1106 = vmul.f32 %v1077, 0.25
        %v1107 = vadd.f32 %v1104, %v1106
        %v1108 = vmul.f32 %v1077, 0.75
        %v1109 = vadd.f32 %v1102, %v1108
        %1111 = vrot.lane.b32.xlu0 %v1082, 16
        %v1112 = vpop.permute.xlu0 %1111
        %1115 = vrot.lane.b32.xlu0 %v1085, 32
        %v1116 = vpop.permute.xlu0 %1115
        %1119 = vrot.lane.b32.xlu0 %v1087, 48
        %v1120 = vpop.permute.xlu0 %1119
        %1123 = vrot.lane.b32.xlu0 %v1089, 64
        %v1124 = vpop.permute.xlu0 %1123
        %1127 = vrot.lane.b32.xlu0 %v1091, 80
        %v1128 = vpop.permute.xlu0 %1127
        %1131 = vrot.lane.b32.xlu0 %v1093, 96
        %v1132 = vpop.permute.xlu0 %1131
        %1135 = vrot.lane.b32.xlu0 %v1095, 112
        %v1136 = vpop.permute.xlu0 %1135
        %1139 = vrot.lane.b32.xlu0 %v1099, 16
        %v1140 = vpop.permute.xlu0 %1139
        %1143 = vrot.lane.b32.xlu0 %v1101, 32
        %v1144 = vpop.permute.xlu0 %1143
        %1147 = vrot.lane.b32.xlu0 %v1103, 48
        %v1148 = vpop.permute.xlu0 %1147
        %1151 = vrot.lane.b32.xlu0 %v1105, 64
        %v1152 = vpop.permute.xlu0 %1151
        %1155 = vrot.lane.b32.xlu0 %v1107, 80
        %v1156 = vpop.permute.xlu0 %1155
        %1159 = vrot.lane.b32.xlu0 %v1109, 96
        %v1160 = vpop.permute.xlu0 %1159
        %1163 = vrot.lane.b32.xlu0 %v1077, 112
        %v1164 = vpop.permute.xlu0 %1163
        %v1166 = vsel %vm530, %v1042, %v1112
        %v1167 = vsel %vm554, %v1166, %v1116
        %vm1168 = vcmask 392192
        %v1169 = vsel %vm1168, %v1167, %v1120
        %vm1170 = vcmask 523264
        %v1171 = vsel %vm1170, %v1169, %v1124
        %vm1172 = vcmask 654336
        %v1173 = vsel %vm1172, %v1171, %v1128
        %v1174 = vsel %vm658, %v1173, %v1132
        %v1175 = vsel %vm616, %v1174, %v1136
        %v1176 = vsel %vm530, %v1097, %v1140
        %v1177 = vsel %vm554, %v1176, %v1144
        %v1178 = vsel %vm1168, %v1177, %v1148
        %v1179 = vsel %vm1170, %v1178, %v1152
        %v1180 = vsel %vm1172, %v1179, %v1156
        %v1181 = vsel %vm658, %v1180, %v1160
        %v1182 = vsel %vm616, %v1181, %v1164
        %v1183 = vadd.f32 %v782, %v1175
        %v1184 = vadd.f32 %v783, %v1182
        %1186 = vrot.lane.b32.xlu0 %v1183, 112
        %v1187 = vpop.permute.xlu0 %1186
        %1188 = vrot.lane.b32.xlu0 %v1183, 96
        %v1189 = vpop.permute.xlu0 %1188
        %1190 = vrot.lane.b32.xlu0 %v1183, 80
        %v1191 = vpop.permute.xlu0 %1190
        %1192 = vrot.lane.b32.xlu0 %v1183, 64
        %v1193 = vpop.permute.xlu0 %1192
        %1194 = vrot.lane.b32.xlu0 %v1183, 48
        %v1195 = vpop.permute.xlu0 %1194
        %1196 = vrot.lane.b32.xlu0 %v1183, 32
        %v1197 = vpop.permute.xlu0 %1196
        %1198 = vrot.lane.b32.xlu0 %v1183, 16
        %v1199 = vpop.permute.xlu0 %1198
        %1201 = vrot.lane.b32.xlu0 %v1184, 112
        %v1202 = vpop.permute.xlu0 %1201
        %1203 = vrot.lane.b32.xlu0 %v1184, 96
        %v1204 = vpop.permute.xlu0 %1203
        %1205 = vrot.lane.b32.xlu0 %v1184, 80
        %v1206 = vpop.permute.xlu0 %1205
        %1207 = vrot.lane.b32.xlu0 %v1184, 64
        %v1208 = vpop.permute.xlu0 %1207
        %1209 = vrot.lane.b32.xlu0 %v1184, 48
        %v1210 = vpop.permute.xlu0 %1209
        %1211 = vrot.lane.b32.xlu0 %v1184, 32
        %v1212 = vpop.permute.xlu0 %1211
        %1213 = vrot.lane.b32.xlu0 %v1184, 16
        %v1214 = vpop.permute.xlu0 %1213
        %v1215 = vld [vmem:[%s6] sm:$0xff]
        %v1216 = vld [vmem:[%s6 + $0x8] sm:$0xff]
        %v1217 = vsel %vm530, %v1183, 0
        %v1219 = vsel %vm530, %v1187, 0
        %v1221 = vsel %vm530, %v1189, 0
        %v1223 = vsel %vm530, %v1191, 0
        %v1225 = vsel %vm530, %v1193, 0
        %v1227 = vsel %vm530, %v1195, 0
        %v1229 = vsel %vm530, %v1197, 0
        %v1231 = vsel %vm530, %v1199, 0
        %v1233 = vsel %vm530, %v1184, 0
        %v1235 = vsel %vm530, %v1202, 0
        %v1237 = vsel %vm530, %v1204, 0
        %v1239 = vsel %vm530, %v1206, 0
        %v1241 = vsel %vm530, %v1208, 0
        %v1243 = vsel %vm530, %v1210, 0
        %v1245 = vsel %vm530, %v1212, 0
        %v1247 = vsel %vm530, %v1214, 0
        %1249 = vmatprep.subr.mxu0 0.0
        %1250 = vmatpush1.msra.mxu0 %v1215
        %1251 = vmatprep.subr.mxu0 0.0
        %1252 = vmatpush1.msra.mxu0 %v1216
        %1253 = vmatprep.subr.mxu0 0.0
        %1254 = vmatpush1.msra.mxu0 0.0
        %1255 = vmatprep.subr.mxu0 0.0
        %1256 = vmatpush1.msra.mxu0 0.0
        %1257 = vmatprep.subr.mxu0 0.0
        %1258 = vmatpush1.msra.mxu0 0.0
        %1259 = vmatprep.subr.mxu0 0.0
        %1260 = vmatpush1.msra.mxu0 0.0
        %1261 = vmatprep.subr.mxu0 0.0
        %1262 = vmatpush1.msra.mxu0 0.0
        %1263 = vmatprep.subr.mxu0 0.0
        %1264 = vmatpush1.msra.mxu0 0.0
        %1265 = vmatprep.subr.mxu0 0.0
        %1266 = vmatpush1.msra.mxu0 0.0
        %1267 = vmatprep.subr.mxu0 0.0
        %1268 = vmatpush1.msra.mxu0 0.0
        %1269 = vmatprep.subr.mxu0 0.0
        %1270 = vmatpush1.msra.mxu0 0.0
        %1271 = vmatprep.subr.mxu0 0.0
        %1272 = vmatpush1.msra.mxu0 0.0
        %1273 = vmatprep.subr.mxu0 0.0
        %1274 = vmatpush1.msra.mxu0 0.0
        %1275 = vmatprep.subr.mxu0 0.0
        %1276 = vmatpush1.msra.mxu0 0.0
        %1277 = vmatprep.subr.mxu0 0.0
        %1278 = vmatpush1.msra.mxu0 0.0
        %1279 = vmatprep.subr.mxu0 0.0
        %1280 = vmatpush1.msra.mxu0 0.0
        %1281 = vmatprep.subr.mxu0 0.0
        %1282 = vmatpush1.msra.mxu0 0.0
        %1283 = vmatprep.subr.mxu0 0.0
        %1284 = vmatpush1.msra.mxu0 0.0
        %1285 = vmatprep.subr.mxu0 0.0
        %1286 = vmatpush1.msra.mxu0 0.0
        %1287 = vmatprep.subr.mxu0 0.0
        %1288 = vmatpush1.msra.mxu0 0.0
        %1289 = vmatprep.subr.mxu0 0.0
        %1290 = vmatpush1.msra.mxu0 0.0
        %1291 = vmatprep.subr.mxu0 0.0
        %1292 = vmatpush1.msra.mxu0 0.0
        %1293 = vmatprep.subr.mxu0 0.0
        %1294 = vmatpush1.msra.mxu0 0.0
        %1295 = vmatprep.subr.mxu0 0.0
        %1296 = vmatpush1.msra.mxu0 0.0
        %1297 = vmatprep.subr.mxu0 0.0
        %1298 = vmatpush1.msra.mxu0 0.0
        %1299 = vmatprep.subr.mxu0 0.0
        %1300 = vmatpush1.msra.mxu0 0.0
        %1301 = vmatprep.subr.mxu0 0.0
        %1302 = vmatpush1.msra.mxu0 0.0
        %1303 = vmatprep.subr.mxu0 0.0
        %1304 = vmatpush1.msra.mxu0 0.0
        %1305 = vmatprep.subr.mxu0 0.0
        %1306 = vmatpush1.msra.mxu0 0.0
        %1307 = vmatprep.subr.mxu0 0.0
        %1308 = vmatpush1.msra.mxu0 0.0
        %1309 = vmatprep.subr.mxu0 0.0
        %1310 = vmatpush1.msra.mxu0 0.0
        %1311 = vmatprep.subr.mxu0 0.0
        %1312 = vmatpush1.msra.mxu0 0.0
        %1313 = vmatprep.mubr.f32.mxu0 0.0
        %1314 = vmatmul.mubr.f32.gmra.mrb[0].mxu0 %v1217
        %v1315 = vpop.f32.mrb[0].mxu0
        %v1316 = vadd.f32 0.0, %v1315
        %v1317 = vpop.f32.mrb[0].mxu0
        %1318 = vmatprep.mubr.f32.mxu0 0.0
        %1319 = vmatmul.mubr.f32.gmra.mrb[0].mxu0 %v1219
        %v1320 = vpop.f32.mrb[0].mxu0
        %v1321 = vadd.f32 0.0, %v1320
        %v1322 = vpop.f32.mrb[0].mxu0
        %1323 = vmatprep.mubr.f32.mxu0 0.0
        %1324 = vmatmul.mubr.f32.gmra.mrb[0].mxu0 %v1221
        %v1325 = vpop.f32.mrb[0].mxu0
        %v1326 = vadd.f32 0.0, %v1325
        %v1327 = vpop.f32.mrb[0].mxu0
        %1328 = vmatprep.mubr.f32.mxu0 0.0
        %1329 = vmatmul.mubr.f32.gmra.mrb[0].mxu0 %v1223
        %v1330 = vpop.f32.mrb[0].mxu0
        %v1331 = vadd.f32 0.0, %v1330
        %v1332 = vpop.f32.mrb[0].mxu0
        %1333 = vmatprep.mubr.f32.mxu0 0.0
        %1334 = vmatmul.mubr.f32.gmra.mrb[0].mxu0 %v1225
        %v1335 = vpop.f32.mrb[0].mxu0
        %v1336 = vadd.f32 0.0, %v1335
        %v1337 = vpop.f32.mrb[0].mxu0
        %1338 = vmatprep.mubr.f32.mxu0 0.0
        %1339 = vmatmul.mubr.f32.gmra.mrb[0].mxu0 %v1227
        %v1340 = vpop.f32.mrb[0].mxu0
        %v1341 = vadd.f32 0.0, %v1340
        %v1342 = vpop.f32.mrb[0].mxu0
        %1343 = vmatprep.mubr.f32.mxu0 0.0
        %1344 = vmatmul.mubr.f32.gmra.mrb[0].mxu0 %v1229
        %v1345 = vpop.f32.mrb[0].mxu0
        %v1346 = vadd.f32 0.0, %v1345
        %v1347 = vpop.f32.mrb[0].mxu0
        %1348 = vmatprep.mubr.f32.mxu0 0.0
        %1349 = vmatmul.mubr.f32.gmra.mrb[0].mxu0 %v1231
        %v1350 = vpop.f32.mrb[0].mxu0
        %v1351 = vadd.f32 0.0, %v1350
        %v1352 = vpop.f32.mrb[0].mxu0
        %1353 = vmatprep.mubr.f32.mxu0 0.0
        %1354 = vmatmul.mubr.f32.gmra.mrb[0].mxu0 %v1233
        %v1355 = vpop.f32.mrb[0].mxu0
        %v1356 = vadd.f32 0.0, %v1355
        %v1357 = vpop.f32.mrb[0].mxu0
        %1358 = vmatprep.mubr.f32.mxu0 0.0
        %1359 = vmatmul.mubr.f32.gmra.mrb[0].mxu0 %v1235
        %v1360 = vpop.f32.mrb[0].mxu0
        %v1361 = vadd.f32 0.0, %v1360
        %v1362 = vpop.f32.mrb[0].mxu0
        %1363 = vmatprep.mubr.f32.mxu0 0.0
        %1364 = vmatmul.mubr.f32.gmra.mrb[0].mxu0 %v1237
        %v1365 = vpop.f32.mrb[0].mxu0
        %v1366 = vadd.f32 0.0, %v1365
        %v1367 = vpop.f32.mrb[0].mxu0
        %1368 = vmatprep.mubr.f32.mxu0 0.0
        %1369 = vmatmul.mubr.f32.gmra.mrb[0].mxu0 %v1239
        %v1370 = vpop.f32.mrb[0].mxu0
        %v1371 = vadd.f32 0.0, %v1370
        %v1372 = vpop.f32.mrb[0].mxu0
        %1373 = vmatprep.mubr.f32.mxu0 0.0
        %1374 = vmatmul.mubr.f32.gmra.mrb[0].mxu0 %v1241
        %v1375 = vpop.f32.mrb[0].mxu0
        %v1376 = vadd.f32 0.0, %v1375
        %v1377 = vpop.f32.mrb[0].mxu0
        %1378 = vmatprep.mubr.f32.mxu0 0.0
        %1379 = vmatmul.mubr.f32.gmra.mrb[0].mxu0 %v1243
        %v1380 = vpop.f32.mrb[0].mxu0
        %v1381 = vadd.f32 0.0, %v1380
        %v1382 = vpop.f32.mrb[0].mxu0
        %1383 = vmatprep.mubr.f32.mxu0 0.0
        %1384 = vmatmul.mubr.f32.gmra.mrb[0].mxu0 %v1245
        %v1385 = vpop.f32.mrb[0].mxu0
        %v1386 = vadd.f32 0.0, %v1385
        %v1387 = vpop.f32.mrb[0].mxu0
        %1388 = vmatprep.mubr.f32.mxu0 0.0
        %1389 = vmatmul.mubr.f32.gmra.mrb[0].mxu0 %v1247
        %v1390 = vpop.f32.mrb[0].mxu0
        %v1391 = vadd.f32 0.0, %v1390
        %v1392 = vpop.f32.mrb[0].mxu0
        %1393 = vdwg.mxu0
        %v1394 = vmul.f32 %v1316, 0.75
        %v1395 = vmul.f32 %v1321, 0.25
        %v1396 = vadd.f32 %v1394, %v1395
        %v1397 = vmul.f32 %v1316, 0.25
        %v1398 = vmul.f32 %v1321, 0.75
        %v1399 = vadd.f32 %v1397, %v1398
        %v1400 = vmul.f32 %v1326, 0.25
        %v1401 = vadd.f32 %v1398, %v1400
        %v1402 = vmul.f32 %v1326, 0.75
        %v1403 = vadd.f32 %v1395, %v1402
        %v1404 = vmul.f32 %v1331, 0.25
        %v1405 = vadd.f32 %v1402, %v1404
        %v1406 = vmul.f32 %v1331, 0.75
        %v1407 = vadd.f32 %v1400, %v1406
        %v1408 = vmul.f32 %v1336, 0.25
        %v1409 = vadd.f32 %v1406, %v1408
        %v1410 = vmul.f32 %v1336, 0.75
        %v1411 = vadd.f32 %v1404, %v1410
        %v1412 = vmul.f32 %v1341, 0.25
        %v1413 = vadd.f32 %v1410, %v1412
        %v1414 = vmul.f32 %v1341, 0.75
        %v1415 = vadd.f32 %v1408, %v1414
        %v1416 = vmul.f32 %v1346, 0.25
        %v1417 = vadd.f32 %v1414, %v1416
        %v1418 = vmul.f32 %v1346, 0.75
        %v1419 = vadd.f32 %v1412, %v1418
        %v1420 = vmul.f32 %v1351, 0.25
        %v1421 = vadd.f32 %v1418, %v1420
        %v1422 = vmul.f32 %v1351, 0.75
        %v1423 = vadd.f32 %v1416, %v1422
        %v1424 = vmul.f32 %v1356, 0.25
        %v1425 = vadd.f32 %v1422, %v1424
        %v1426 = vmul.f32 %v1356, 0.75
        %v1427 = vadd.f32 %v1420, %v1426
        %v1428 = vmul.f32 %v1361, 0.25
        %v1429 = vadd.f32 %v1426, %v1428
        %v1430 = vmul.f32 %v1361, 0.75
        %v1431 = vadd.f32 %v1424, %v1430
        %v1432 = vmul.f32 %v1366, 0.25
        %v1433 = vadd.f32 %v1430, %v1432
        %v1434 = vmul.f32 %v1366, 0.75
        %v1435 = vadd.f32 %v1428, %v1434
        %v1436 = vmul.f32 %v1371, 0.25
        %v1437 = vadd.f32 %v1434, %v1436
        %v1438 = vmul.f32 %v1371, 0.75
        %v1439 = vadd.f32 %v1432, %v1438
        %v1440 = vmul.f32 %v1376, 0.25
        %v1441 = vadd.f32 %v1438, %v1440
        %v1442 = vmul.f32 %v1376, 0.75
        %v1443 = vadd.f32 %v1436, %v1442
        %v1444 = vmul.f32 %v1381, 0.25
        %v1445 = vadd.f32 %v1442, %v1444
        %v1446 = vmul.f32 %v1381, 0.75
        %v1447 = vadd.f32 %v1440, %v1446
        %v1448 = vmul.f32 %v1386, 0.25
        %v1449 = vadd.f32 %v1446, %v1448
        %v1450 = vmul.f32 %v1386, 0.75
        %v1451 = vadd.f32 %v1444, %v1450
        %v1452 = vmul.f32 %v1391, 0.25
        %v1453 = vadd.f32 %v1450, %v1452
        %v1454 = vmul.f32 %v1391, 0.75
        %v1455 = vadd.f32 %v1448, %v1454
        %1457 = vrot.lane.b32.xlu0 %v1396, 32
        %v1458 = vpop.permute.xlu0 %1457
        %1461 = vrot.lane.b32.xlu0 %v1399, 64
        %v1462 = vpop.permute.xlu0 %1461
        %1465 = vrot.lane.b32.xlu0 %v1401, 96
        %v1466 = vpop.permute.xlu0 %1465
        %1469 = vrot.lane.b32.xlu0 %v1405, 32
        %v1470 = vpop.permute.xlu0 %1469
        %1473 = vrot.lane.b32.xlu0 %v1407, 64
        %v1474 = vpop.permute.xlu0 %1473
        %1477 = vrot.lane.b32.xlu0 %v1409, 96
        %v1478 = vpop.permute.xlu0 %1477
        %1481 = vrot.lane.b32.xlu0 %v1413, 32
        %v1482 = vpop.permute.xlu0 %1481
        %1485 = vrot.lane.b32.xlu0 %v1415, 64
        %v1486 = vpop.permute.xlu0 %1485
        %1489 = vrot.lane.b32.xlu0 %v1417, 96
        %v1490 = vpop.permute.xlu0 %1489
        %1493 = vrot.lane.b32.xlu0 %v1421, 32
        %v1494 = vpop.permute.xlu0 %1493
        %1497 = vrot.lane.b32.xlu0 %v1423, 64
        %v1498 = vpop.permute.xlu0 %1497
        %1501 = vrot.lane.b32.xlu0 %v1425, 96
        %v1502 = vpop.permute.xlu0 %1501
        %v1504 = vsel %vm554, %v1316, %v1458
        %v1505 = vsel %vm1170, %v1504, %v1462
        %v1506 = vsel %vm658, %v1505, %v1466
        %v1507 = vsel %vm554, %v1403, %v1470
        %v1508 = vsel %vm1170, %v1507, %v1474
        %v1509 = vsel %vm658, %v1508, %v1478
        %v1510 = vsel %vm554, %v1411, %v1482
        %v1511 = vsel %vm1170, %v1510, %v1486
        %v1512 = vsel %vm658, %v1511, %v1490
        %v1513 = vsel %vm554, %v1419, %v1494
        %v1514 = vsel %vm1170, %v1513, %v1498
        %v1515 = vsel %vm658, %v1514, %v1502
        %1517 = vrot.lane.b32.xlu0 %v1429, 32
        %v1518 = vpop.permute.xlu0 %1517
        %1521 = vrot.lane.b32.xlu0 %v1431, 64
        %v1522 = vpop.permute.xlu0 %1521
        %1525 = vrot.lane.b32.xlu0 %v1433, 96
        %v1526 = vpop.permute.xlu0 %1525
        %1529 = vrot.lane.b32.xlu0 %v1437, 32
        %v1530 = vpop.permute.xlu0 %1529
        %1533 = vrot.lane.b32.xlu0 %v1439, 64
        %v1534 = vpop.permute.xlu0 %1533
        %1537 = vrot.lane.b32.xlu0 %v1441, 96
        %v1538 = vpop.permute.xlu0 %1537
        %1541 = vrot.lane.b32.xlu0 %v1445, 32
        %v1542 = vpop.permute.xlu0 %1541
        %1545 = vrot.lane.b32.xlu0 %v1447, 64
        %v1546 = vpop.permute.xlu0 %1545
        %1549 = vrot.lane.b32.xlu0 %v1449, 96
        %v1550 = vpop.permute.xlu0 %1549
        %1553 = vrot.lane.b32.xlu0 %v1453, 32
        %v1554 = vpop.permute.xlu0 %1553
        %1557 = vrot.lane.b32.xlu0 %v1455, 64
        %v1558 = vpop.permute.xlu0 %1557
        %1561 = vrot.lane.b32.xlu0 %v1391, 96
        %v1562 = vpop.permute.xlu0 %1561
        %v1564 = vsel %vm554, %v1427, %v1518
        %v1565 = vsel %vm1170, %v1564, %v1522
        %v1566 = vsel %vm658, %v1565, %v1526
        %v1567 = vsel %vm554, %v1435, %v1530
        %v1568 = vsel %vm1170, %v1567, %v1534
        %v1569 = vsel %vm658, %v1568, %v1538
        %v1570 = vsel %vm554, %v1443, %v1542
        %v1571 = vsel %vm1170, %v1570, %v1546
        %v1572 = vsel %vm658, %v1571, %v1550
        %v1573 = vsel %vm554, %v1451, %v1554
        %v1574 = vsel %vm1170, %v1573, %v1558
        %v1575 = vsel %vm658, %v1574, %v1562
        %1584 = vrot.lane.b32.xlu0 %v1506, 33
        %v1585 = vpop.permute.xlu0 %1584
        %1586 = vrot.lane.b32.xlu0 %v1509, 33
        %v1587 = vpop.permute.xlu0 %1586
        %1588 = vrot.lane.b32.xlu0 %v1512, 33
        %v1589 = vpop.permute.xlu0 %1588
        %1590 = vrot.lane.b32.xlu0 %v1515, 33
        %v1591 = vpop.permute.xlu0 %1590
        %1592 = vrot.lane.b32.xlu0 %v1566, 33
        %v1593 = vpop.permute.xlu0 %1592
        %1594 = vrot.lane.b32.xlu0 %v1569, 33
        %v1595 = vpop.permute.xlu0 %1594
        %1596 = vrot.lane.b32.xlu0 %v1572, 33
        %v1597 = vpop.permute.xlu0 %1596
        %1598 = vrot.lane.b32.xlu0 %v1575, 33
        %v1599 = vpop.permute.xlu0 %1598
        %vm1600 = vcmask 269312
        %v1601 = vsel %vm1600, %v1585, %v1587
        %v1602 = vsel %vm1600, %v1587, %v1589
        %v1603 = vsel %vm1600, %v1589, %v1591
        %v1604 = vsel %vm1600, %v1591, %v1593
        %v1605 = vsel %vm1600, %v1593, %v1595
        %v1606 = vsel %vm1600, %v1595, %v1597
        %v1607 = vsel %vm1600, %v1597, %v1599
        %v1617 = vsel %vm1600, 0.0, %v1585
        %v1618 = vsel %vm1600, %v1599, 0.0
        %v1619 = vld [vmem:[%s9] ss:$2 sm:$0xff]
        %s1620 = scalar_lea.vmem %s9, 1
        %v1621 = vld [vmem:[%s1620] ss:$2 sm:$0xff]
        %v1623 = vlaneseq
        %v1624 = vshrl.u32 %v1623, 7
        %v1625 = vsub.s32 0, %v1624
        %v1626 = vrot.slane %v1619, %v1625
        %v1627 = vlaneseq
        %v1628 = vshrl.u32 %v1627, 7
        %v1629 = vsub.s32 1, %v1628
        %v1630 = vrot.slane %v1619, %v1629
        %v1631 = vlaneseq
        %v1632 = vshrl.u32 %v1631, 7
        %v1633 = vsub.s32 2, %v1632
        %v1634 = vrot.slane %v1619, %v1633
        %v1635 = vlaneseq
        %v1636 = vshrl.u32 %v1635, 7
        %v1637 = vsub.s32 3, %v1636
        %v1638 = vrot.slane %v1619, %v1637
        %v1639 = vlaneseq
        %v1640 = vshrl.u32 %v1639, 7
        %v1641 = vsub.s32 4, %v1640
        %v1642 = vrot.slane %v1619, %v1641
        %v1643 = vlaneseq
        %v1644 = vshrl.u32 %v1643, 7
        %v1645 = vsub.s32 5, %v1644
        %v1646 = vrot.slane %v1619, %v1645
        %v1647 = vlaneseq
        %v1648 = vshrl.u32 %v1647, 7
        %v1649 = vsub.s32 6, %v1648
        %v1650 = vrot.slane %v1619, %v1649
        %v1651 = vlaneseq
        %v1652 = vshrl.u32 %v1651, 7
        %v1653 = vsub.s32 7, %v1652
        %v1654 = vrot.slane %v1619, %v1653
        %v1663 = vmul.f32 %v1617, %v1626
        %v1664 = vmul.f32 %v1601, %v1630
        %v1665 = vmul.f32 %v1602, %v1634
        %v1666 = vmul.f32 %v1603, %v1638
        %v1667 = vmul.f32 %v1604, %v1642
        %v1668 = vmul.f32 %v1605, %v1646
        %v1669 = vmul.f32 %v1606, %v1650
        %v1670 = vmul.f32 %v1607, %v1654
        %v1672 = vlaneseq
        %v1673 = vshrl.u32 %v1672, 7
        %v1674 = vsub.s32 0, %v1673
        %v1675 = vrot.slane %v1621, %v1674
        %v1676 = vlaneseq
        %v1677 = vshrl.u32 %v1676, 7
        %v1678 = vsub.s32 1, %v1677
        %v1679 = vrot.slane %v1621, %v1678
        %v1680 = vlaneseq
        %v1681 = vshrl.u32 %v1680, 7
        %v1682 = vsub.s32 2, %v1681
        %v1683 = vrot.slane %v1621, %v1682
        %v1684 = vlaneseq
        %v1685 = vshrl.u32 %v1684, 7
        %v1686 = vsub.s32 3, %v1685
        %v1687 = vrot.slane %v1621, %v1686
        %v1688 = vlaneseq
        %v1689 = vshrl.u32 %v1688, 7
        %v1690 = vsub.s32 4, %v1689
        %v1691 = vrot.slane %v1621, %v1690
        %v1692 = vlaneseq
        %v1693 = vshrl.u32 %v1692, 7
        %v1694 = vsub.s32 5, %v1693
        %v1695 = vrot.slane %v1621, %v1694
        %v1696 = vlaneseq
        %v1697 = vshrl.u32 %v1696, 7
        %v1698 = vsub.s32 6, %v1697
        %v1699 = vrot.slane %v1621, %v1698
        %v1700 = vlaneseq
        %v1701 = vshrl.u32 %v1700, 7
        %v1702 = vsub.s32 7, %v1701
        %v1703 = vrot.slane %v1621, %v1702
        %1704 = vrot.lane.b32.xlu0 %v1675, 2
        %v1705 = vpop.permute.xlu0 %1704
        %1706 = vrot.lane.b32.xlu0 %v1679, 2
        %v1707 = vpop.permute.xlu0 %1706
        %1708 = vrot.lane.b32.xlu0 %v1683, 2
        %v1709 = vpop.permute.xlu0 %1708
        %1710 = vrot.lane.b32.xlu0 %v1687, 2
        %v1711 = vpop.permute.xlu0 %1710
        %1712 = vrot.lane.b32.xlu0 %v1691, 2
        %v1713 = vpop.permute.xlu0 %1712
        %1714 = vrot.lane.b32.xlu0 %v1695, 2
        %v1715 = vpop.permute.xlu0 %1714
        %1716 = vrot.lane.b32.xlu0 %v1699, 2
        %v1717 = vpop.permute.xlu0 %1716
        %1718 = vrot.lane.b32.xlu0 %v1703, 2
        %v1719 = vpop.permute.xlu0 %1718
        %v1720 = vsel %vm518, %v1705, %v1707
        %v1721 = vsel %vm518, %v1707, %v1709
        %v1722 = vsel %vm518, %v1709, %v1711
        %v1723 = vsel %vm518, %v1711, %v1713
        %v1724 = vsel %vm518, %v1713, %v1715
        %v1725 = vsel %vm518, %v1715, %v1717
        %v1726 = vsel %vm518, %v1717, %v1719
        %v1736 = vmul.f32 %v1617, %v1705
        %v1737 = vmul.f32 %v1601, %v1720
        %v1738 = vmul.f32 %v1602, %v1721
        %v1739 = vmul.f32 %v1603, %v1722
        %v1740 = vmul.f32 %v1604, %v1723
        %v1741 = vmul.f32 %v1605, %v1724
        %v1742 = vmul.f32 %v1606, %v1725
        %v1743 = vmul.f32 %v1607, %v1726
        %v1744 = vmul.f32 %v1618, %v1719
        %1745 = vrot.lane.b32.xlu0 %v1626, 32
        %v1746 = vpop.permute.xlu0 %1745
        %1747 = vrot.lane.b32.xlu0 %v1630, 32
        %v1748 = vpop.permute.xlu0 %1747
        %1749 = vrot.lane.b32.xlu0 %v1634, 32
        %v1750 = vpop.permute.xlu0 %1749
        %1751 = vrot.lane.b32.xlu0 %v1638, 32
        %v1752 = vpop.permute.xlu0 %1751
        %1753 = vrot.lane.b32.xlu0 %v1642, 32
        %v1754 = vpop.permute.xlu0 %1753
        %1755 = vrot.lane.b32.xlu0 %v1646, 32
        %v1756 = vpop.permute.xlu0 %1755
        %1757 = vrot.lane.b32.xlu0 %v1650, 32
        %v1758 = vpop.permute.xlu0 %1757
        %1759 = vrot.lane.b32.xlu0 %v1654, 32
        %v1760 = vpop.permute.xlu0 %1759
        %v1761 = vsel %vm554, %v1746, %v1748
        %v1762 = vsel %vm554, %v1748, %v1750
        %v1763 = vsel %vm554, %v1750, %v1752
        %v1764 = vsel %vm554, %v1752, %v1754
        %v1765 = vsel %vm554, %v1754, %v1756
        %v1766 = vsel %vm554, %v1756, %v1758
        %v1767 = vsel %vm554, %v1758, %v1760
        %v1777 = vmul.f32 %v1617, %v1746
        %v1778 = vmul.f32 %v1601, %v1761
        %v1779 = vmul.f32 %v1602, %v1762
        %v1780 = vmul.f32 %v1603, %v1763
        %v1781 = vmul.f32 %v1604, %v1764
        %v1782 = vmul.f32 %v1605, %v1765
        %v1783 = vmul.f32 %v1606, %v1766
        %v1784 = vmul.f32 %v1607, %v1767
        %v1785 = vmul.f32 %v1618, %v1760
        %1786 = vrot.lane.b32.xlu0 %v1675, 34
        %v1787 = vpop.permute.xlu0 %1786
        %1788 = vrot.lane.b32.xlu0 %v1679, 34
        %v1789 = vpop.permute.xlu0 %1788
        %1790 = vrot.lane.b32.xlu0 %v1683, 34
        %v1791 = vpop.permute.xlu0 %1790
        %1792 = vrot.lane.b32.xlu0 %v1687, 34
        %v1793 = vpop.permute.xlu0 %1792
        %1794 = vrot.lane.b32.xlu0 %v1691, 34
        %v1795 = vpop.permute.xlu0 %1794
        %1796 = vrot.lane.b32.xlu0 %v1695, 34
        %v1797 = vpop.permute.xlu0 %1796
        %1798 = vrot.lane.b32.xlu0 %v1699, 34
        %v1799 = vpop.permute.xlu0 %1798
        %1800 = vrot.lane.b32.xlu0 %v1703, 34
        %v1801 = vpop.permute.xlu0 %1800
        %v1802 = vsel %vm566, %v1787, %v1789
        %v1803 = vsel %vm566, %v1789, %v1791
        %v1804 = vsel %vm566, %v1791, %v1793
        %v1805 = vsel %vm566, %v1793, %v1795
        %v1806 = vsel %vm566, %v1795, %v1797
        %v1807 = vsel %vm566, %v1797, %v1799
        %v1808 = vsel %vm566, %v1799, %v1801
        %v1818 = vmul.f32 %v1617, %v1787
        %v1819 = vmul.f32 %v1601, %v1802
        %v1820 = vmul.f32 %v1602, %v1803
        %v1821 = vmul.f32 %v1603, %v1804
        %v1822 = vmul.f32 %v1604, %v1805
        %v1823 = vmul.f32 %v1605, %v1806
        %v1824 = vmul.f32 %v1606, %v1807
        %v1825 = vmul.f32 %v1607, %v1808
        %v1826 = vmul.f32 %v1618, %v1801
        %1827 = vrot.lane.b32.xlu0 %v1626, 64
        %v1828 = vpop.permute.xlu0 %1827
        %1829 = vrot.lane.b32.xlu0 %v1630, 64
        %v1830 = vpop.permute.xlu0 %1829
        %1831 = vrot.lane.b32.xlu0 %v1634, 64
        %v1832 = vpop.permute.xlu0 %1831
        %1833 = vrot.lane.b32.xlu0 %v1638, 64
        %v1834 = vpop.permute.xlu0 %1833
        %1835 = vrot.lane.b32.xlu0 %v1642, 64
        %v1836 = vpop.permute.xlu0 %1835
        %1837 = vrot.lane.b32.xlu0 %v1646, 64
        %v1838 = vpop.permute.xlu0 %1837
        %1839 = vrot.lane.b32.xlu0 %v1650, 64
        %v1840 = vpop.permute.xlu0 %1839
        %1841 = vrot.lane.b32.xlu0 %v1654, 64
        %v1842 = vpop.permute.xlu0 %1841
        %v1843 = vsel %vm1170, %v1828, %v1830
        %v1844 = vsel %vm1170, %v1830, %v1832
        %v1845 = vsel %vm1170, %v1832, %v1834
        %v1846 = vsel %vm1170, %v1834, %v1836
        %v1847 = vsel %vm1170, %v1836, %v1838
        %v1848 = vsel %vm1170, %v1838, %v1840
        %v1849 = vsel %vm1170, %v1840, %v1842
        %v1859 = vmul.f32 %v1617, %v1828
        %v1860 = vmul.f32 %v1601, %v1843
        %v1861 = vmul.f32 %v1602, %v1844
        %v1862 = vmul.f32 %v1603, %v1845
        %v1863 = vmul.f32 %v1604, %v1846
        %v1864 = vmul.f32 %v1605, %v1847
        %v1865 = vmul.f32 %v1606, %v1848
        %v1866 = vmul.f32 %v1607, %v1849
        %v1867 = vmul.f32 %v1618, %v1842
        %1868 = vrot.lane.b32.xlu0 %v1675, 66
        %v1869 = vpop.permute.xlu0 %1868
        %1870 = vrot.lane.b32.xlu0 %v1679, 66
        %v1871 = vpop.permute.xlu0 %1870
        %1872 = vrot.lane.b32.xlu0 %v1683, 66
        %v1873 = vpop.permute.xlu0 %1872
        %1874 = vrot.lane.b32.xlu0 %v1687, 66
        %v1875 = vpop.permute.xlu0 %1874
        %1876 = vrot.lane.b32.xlu0 %v1691, 66
        %v1877 = vpop.permute.xlu0 %1876
        %1878 = vrot.lane.b32.xlu0 %v1695, 66
        %v1879 = vpop.permute.xlu0 %1878
        %1880 = vrot.lane.b32.xlu0 %v1699, 66
        %v1881 = vpop.permute.xlu0 %1880
        %1882 = vrot.lane.b32.xlu0 %v1703, 66
        %v1883 = vpop.permute.xlu0 %1882
        %vm1884 = vcmask 539648
        %v1885 = vsel %vm1884, %v1869, %v1871
        %v1886 = vsel %vm1884, %v1871, %v1873
        %v1887 = vsel %vm1884, %v1873, %v1875
        %v1888 = vsel %vm1884, %v1875, %v1877
        %v1889 = vsel %vm1884, %v1877, %v1879
        %v1890 = vsel %vm1884, %v1879, %v1881
        %v1891 = vsel %vm1884, %v1881, %v1883
        %v1901 = vmul.f32 %v1617, %v1869
        %v1902 = vmul.f32 %v1601, %v1885
        %v1903 = vmul.f32 %v1602, %v1886
        %v1904 = vmul.f32 %v1603, %v1887
        %v1905 = vmul.f32 %v1604, %v1888
        %v1906 = vmul.f32 %v1605, %v1889
        %v1907 = vmul.f32 %v1606, %v1890
        %v1908 = vmul.f32 %v1607, %v1891
        %v1909 = vmul.f32 %v1618, %v1883
        %1912 = vrot.lane.b32.xlu0 %v1617, 127
        %v1913 = vpop.permute.xlu0 %1912
        %1914 = vrot.lane.b32.xlu0 %v1601, 127
        %v1915 = vpop.permute.xlu0 %1914
        %1916 = vrot.lane.b32.xlu0 %v1602, 127
        %v1917 = vpop.permute.xlu0 %1916
        %1918 = vrot.lane.b32.xlu0 %v1603, 127
        %v1919 = vpop.permute.xlu0 %1918
        %1920 = vrot.lane.b32.xlu0 %v1604, 127
        %v1921 = vpop.permute.xlu0 %1920
        %1922 = vrot.lane.b32.xlu0 %v1605, 127
        %v1923 = vpop.permute.xlu0 %1922
        %1924 = vrot.lane.b32.xlu0 %v1606, 127
        %v1925 = vpop.permute.xlu0 %1924
        %1926 = vrot.lane.b32.xlu0 %v1607, 127
        %v1927 = vpop.permute.xlu0 %1926
        %1928 = vrot.lane.b32.xlu0 %v1618, 127
        %v1929 = vpop.permute.xlu0 %1928
        %v1930 = vsel %vm585, %v1913, %v1915
        %v1931 = vsel %vm585, %v1915, %v1917
        %v1932 = vsel %vm585, %v1917, %v1919
        %v1933 = vsel %vm585, %v1919, %v1921
        %v1934 = vsel %vm585, %v1921, %v1923
        %v1935 = vsel %vm585, %v1923, %v1925
        %v1936 = vsel %vm585, %v1925, %v1927
        %v1937 = vsel %vm585, %v1927, %v1929
        %1955 = vrot.lane.b32.xlu0 %v1736, 126
        %v1956 = vpop.permute.xlu0 %1955
        %1957 = vrot.lane.b32.xlu0 %v1737, 126
        %v1958 = vpop.permute.xlu0 %1957
        %1959 = vrot.lane.b32.xlu0 %v1738, 126
        %v1960 = vpop.permute.xlu0 %1959
        %1961 = vrot.lane.b32.xlu0 %v1739, 126
        %v1962 = vpop.permute.xlu0 %1961
        %1963 = vrot.lane.b32.xlu0 %v1740, 126
        %v1964 = vpop.permute.xlu0 %1963
        %1965 = vrot.lane.b32.xlu0 %v1741, 126
        %v1966 = vpop.permute.xlu0 %1965
        %1967 = vrot.lane.b32.xlu0 %v1742, 126
        %v1968 = vpop.permute.xlu0 %1967
        %1969 = vrot.lane.b32.xlu0 %v1743, 126
        %v1970 = vpop.permute.xlu0 %1969
        %1971 = vrot.lane.b32.xlu0 %v1744, 126
        %v1972 = vpop.permute.xlu0 %1971
        %v1973 = vsel %vm599, %v1956, %v1958
        %v1974 = vsel %vm599, %v1958, %v1960
        %v1975 = vsel %vm599, %v1960, %v1962
        %v1976 = vsel %vm599, %v1962, %v1964
        %v1977 = vsel %vm599, %v1964, %v1966
        %v1978 = vsel %vm599, %v1966, %v1968
        %v1979 = vsel %vm599, %v1968, %v1970
        %v1980 = vsel %vm599, %v1970, %v1972
        %1998 = vrot.lane.b32.xlu0 %v1777, 96
        %v1999 = vpop.permute.xlu0 %1998
        %2000 = vrot.lane.b32.xlu0 %v1778, 96
        %v2001 = vpop.permute.xlu0 %2000
        %2002 = vrot.lane.b32.xlu0 %v1779, 96
        %v2003 = vpop.permute.xlu0 %2002
        %2004 = vrot.lane.b32.xlu0 %v1780, 96
        %v2005 = vpop.permute.xlu0 %2004
        %2006 = vrot.lane.b32.xlu0 %v1781, 96
        %v2007 = vpop.permute.xlu0 %2006
        %2008 = vrot.lane.b32.xlu0 %v1782, 96
        %v2009 = vpop.permute.xlu0 %2008
        %2010 = vrot.lane.b32.xlu0 %v1783, 96
        %v2011 = vpop.permute.xlu0 %2010
        %2012 = vrot.lane.b32.xlu0 %v1784, 96
        %v2013 = vpop.permute.xlu0 %2012
        %2014 = vrot.lane.b32.xlu0 %v1785, 96
        %v2015 = vpop.permute.xlu0 %2014
        %v2016 = vsel %vm658, %v1999, %v2001
        %v2017 = vsel %vm658, %v2001, %v2003
        %v2018 = vsel %vm658, %v2003, %v2005
        %v2019 = vsel %vm658, %v2005, %v2007
        %v2020 = vsel %vm658, %v2007, %v2009
        %v2021 = vsel %vm658, %v2009, %v2011
        %v2022 = vsel %vm658, %v2011, %v2013
        %v2023 = vsel %vm658, %v2013, %v2015
        %2032 = vrot.lane.b32.xlu0 %v1617, 95
        %v2033 = vpop.permute.xlu0 %2032
        %2034 = vrot.lane.b32.xlu0 %v1601, 95
        %v2035 = vpop.permute.xlu0 %2034
        %2036 = vrot.lane.b32.xlu0 %v1602, 95
        %v2037 = vpop.permute.xlu0 %2036
        %2038 = vrot.lane.b32.xlu0 %v1603, 95
        %v2039 = vpop.permute.xlu0 %2038
        %2040 = vrot.lane.b32.xlu0 %v1604, 95
        %v2041 = vpop.permute.xlu0 %2040
        %2042 = vrot.lane.b32.xlu0 %v1605, 95
        %v2043 = vpop.permute.xlu0 %2042
        %2044 = vrot.lane.b32.xlu0 %v1606, 95
        %v2045 = vpop.permute.xlu0 %2044
        %2046 = vrot.lane.b32.xlu0 %v1607, 95
        %v2047 = vpop.permute.xlu0 %2046
        %2048 = vrot.lane.b32.xlu0 %v1618, 95
        %v2049 = vpop.permute.xlu0 %2048
        %v2050 = vsel %vm669, %v2033, %v2035
        %v2051 = vsel %vm669, %v2035, %v2037
        %v2052 = vsel %vm669, %v2037, %v2039
        %v2053 = vsel %vm669, %v2039, %v2041
        %v2054 = vsel %vm669, %v2041, %v2043
        %v2055 = vsel %vm669, %v2043, %v2045
        %v2056 = vsel %vm669, %v2045, %v2047
        %v2057 = vsel %vm669, %v2047, %v2049
        %2075 = vrot.lane.b32.xlu0 %v1818, 94
        %v2076 = vpop.permute.xlu0 %2075
        %2077 = vrot.lane.b32.xlu0 %v1819, 94
        %v2078 = vpop.permute.xlu0 %2077
        %2079 = vrot.lane.b32.xlu0 %v1820, 94
        %v2080 = vpop.permute.xlu0 %2079
        %2081 = vrot.lane.b32.xlu0 %v1821, 94
        %v2082 = vpop.permute.xlu0 %2081
        %2083 = vrot.lane.b32.xlu0 %v1822, 94
        %v2084 = vpop.permute.xlu0 %2083
        %2085 = vrot.lane.b32.xlu0 %v1823, 94
        %v2086 = vpop.permute.xlu0 %2085
        %2087 = vrot.lane.b32.xlu0 %v1824, 94
        %v2088 = vpop.permute.xlu0 %2087
        %2089 = vrot.lane.b32.xlu0 %v1825, 94
        %v2090 = vpop.permute.xlu0 %2089
        %2091 = vrot.lane.b32.xlu0 %v1826, 94
        %v2092 = vpop.permute.xlu0 %2091
        %v2093 = vsel %vm683, %v2076, %v2078
        %v2094 = vsel %vm683, %v2078, %v2080
        %v2095 = vsel %vm683, %v2080, %v2082
        %v2096 = vsel %vm683, %v2082, %v2084
        %v2097 = vsel %vm683, %v2084, %v2086
        %v2098 = vsel %vm683, %v2086, %v2088
        %v2099 = vsel %vm683, %v2088, %v2090
        %v2100 = vsel %vm683, %v2090, %v2092
        %2118 = vrot.lane.b32.xlu0 %v1859, 64
        %v2119 = vpop.permute.xlu0 %2118
        %2120 = vrot.lane.b32.xlu0 %v1860, 64
        %v2121 = vpop.permute.xlu0 %2120
        %2122 = vrot.lane.b32.xlu0 %v1861, 64
        %v2123 = vpop.permute.xlu0 %2122
        %2124 = vrot.lane.b32.xlu0 %v1862, 64
        %v2125 = vpop.permute.xlu0 %2124
        %2126 = vrot.lane.b32.xlu0 %v1863, 64
        %v2127 = vpop.permute.xlu0 %2126
        %2128 = vrot.lane.b32.xlu0 %v1864, 64
        %v2129 = vpop.permute.xlu0 %2128
        %2130 = vrot.lane.b32.xlu0 %v1865, 64
        %v2131 = vpop.permute.xlu0 %2130
        %2132 = vrot.lane.b32.xlu0 %v1866, 64
        %v2133 = vpop.permute.xlu0 %2132
        %2134 = vrot.lane.b32.xlu0 %v1867, 64
        %v2135 = vpop.permute.xlu0 %2134
        %v2136 = vsel %vm1170, %v2119, %v2121
        %v2137 = vsel %vm1170, %v2121, %v2123
        %v2138 = vsel %vm1170, %v2123, %v2125
        %v2139 = vsel %vm1170, %v2125, %v2127
        %v2140 = vsel %vm1170, %v2127, %v2129
        %v2141 = vsel %vm1170, %v2129, %v2131
        %v2142 = vsel %vm1170, %v2131, %v2133
        %v2143 = vsel %vm1170, %v2133, %v2135
        %2152 = vrot.lane.b32.xlu0 %v1617, 63
        %v2153 = vpop.permute.xlu0 %2152
        %2154 = vrot.lane.b32.xlu0 %v1601, 63
        %v2155 = vpop.permute.xlu0 %2154
        %2156 = vrot.lane.b32.xlu0 %v1602, 63
        %v2157 = vpop.permute.xlu0 %2156
        %2158 = vrot.lane.b32.xlu0 %v1603, 63
        %v2159 = vpop.permute.xlu0 %2158
        %2160 = vrot.lane.b32.xlu0 %v1604, 63
        %v2161 = vpop.permute.xlu0 %2160
        %2162 = vrot.lane.b32.xlu0 %v1605, 63
        %v2163 = vpop.permute.xlu0 %2162
        %2164 = vrot.lane.b32.xlu0 %v1606, 63
        %v2165 = vpop.permute.xlu0 %2164
        %2166 = vrot.lane.b32.xlu0 %v1607, 63
        %v2167 = vpop.permute.xlu0 %2166
        %2168 = vrot.lane.b32.xlu0 %v1618, 63
        %v2169 = vpop.permute.xlu0 %2168
        %vm2170 = vcmask 515072
        %v2171 = vsel %vm2170, %v2153, %v2155
        %v2172 = vsel %vm2170, %v2155, %v2157
        %v2173 = vsel %vm2170, %v2157, %v2159
        %v2174 = vsel %vm2170, %v2159, %v2161
        %v2175 = vsel %vm2170, %v2161, %v2163
        %v2176 = vsel %vm2170, %v2163, %v2165
        %v2177 = vsel %vm2170, %v2165, %v2167
        %v2178 = vsel %vm2170, %v2167, %v2169
        %2196 = vrot.lane.b32.xlu0 %v1901, 62
        %v2197 = vpop.permute.xlu0 %2196
        %2198 = vrot.lane.b32.xlu0 %v1902, 62
        %v2199 = vpop.permute.xlu0 %2198
        %2200 = vrot.lane.b32.xlu0 %v1903, 62
        %v2201 = vpop.permute.xlu0 %2200
        %2202 = vrot.lane.b32.xlu0 %v1904, 62
        %v2203 = vpop.permute.xlu0 %2202
        %2204 = vrot.lane.b32.xlu0 %v1905, 62
        %v2205 = vpop.permute.xlu0 %2204
        %2206 = vrot.lane.b32.xlu0 %v1906, 62
        %v2207 = vpop.permute.xlu0 %2206
        %2208 = vrot.lane.b32.xlu0 %v1907, 62
        %v2209 = vpop.permute.xlu0 %2208
        %2210 = vrot.lane.b32.xlu0 %v1908, 62
        %v2211 = vpop.permute.xlu0 %2210
        %2212 = vrot.lane.b32.xlu0 %v1909, 62
        %v2213 = vpop.permute.xlu0 %2212
        %vm2214 = vcmask 506880
        %v2215 = vsel %vm2214, %v2197, %v2199
        %v2216 = vsel %vm2214, %v2199, %v2201
        %v2217 = vsel %vm2214, %v2201, %v2203
        %v2218 = vsel %vm2214, %v2203, %v2205
        %v2219 = vsel %vm2214, %v2205, %v2207
        %v2220 = vsel %vm2214, %v2207, %v2209
        %v2221 = vsel %vm2214, %v2209, %v2211
        %v2222 = vsel %vm2214, %v2211, %v2213
        %v2231 = vld [vmem:[%s4] sm:$0x3]
        %v2233 = vsel %vm791, %v2231, 0
        %vm2235 = vcmask 1040384
        %v2237 = vsel %vm2235, 1.0, 0
        %2239 = vmatprep.subr.mxu0 %v1664
        %2240 = vmatpush1.msra.mxu0 %v1663
        %2241 = vmatprep.subr.mxu0 %v1931
        %2242 = vmatpush1.msra.mxu0 %v1930
        %2243 = vmatprep.subr.mxu0 %v1974
        %2244 = vmatpush1.msra.mxu0 %v1973
        %2245 = vmatprep.subr.mxu0 %v2017
        %2246 = vmatpush1.msra.mxu0 %v2016
        %2247 = vmatprep.subr.mxu0 %v2051
        %2248 = vmatpush1.msra.mxu0 %v2050
        %2249 = vmatprep.subr.mxu0 %v2094
        %2250 = vmatpush1.msra.mxu0 %v2093
        %2251 = vmatprep.subr.mxu0 %v2137
        %2252 = vmatpush1.msra.mxu0 %v2136
        %2253 = vmatprep.subr.mxu0 %v2172
        %2254 = vmatpush1.msra.mxu0 %v2171
        %2255 = vmatprep.subr.mxu0 %v2216
        %2256 = vmatpush1.msra.mxu0 %v2215
        %2257 = vmatprep.subr.mxu0 %v2237
        %2258 = vmatpush1.msra.mxu0 %v2237
        %2259 = vmatprep.subr.mxu0 0.0
        %2260 = vmatpush1.msra.mxu0 0.0
        %2261 = vmatprep.subr.mxu0 0.0
        %2262 = vmatpush1.msra.mxu0 0.0
        %2263 = vmatprep.subr.mxu0 0.0
        %2264 = vmatpush1.msra.mxu0 0.0
        %2265 = vmatprep.subr.mxu0 0.0
        %2266 = vmatpush1.msra.mxu0 0.0
        %2267 = vmatprep.subr.mxu0 0.0
        %2268 = vmatpush1.msra.mxu0 0.0
        %2269 = vmatprep.subr.mxu0 0.0
        %2270 = vmatpush1.msra.mxu0 0.0
        %2271 = vmatprep.subr.mxu0 0.0
        %2272 = vmatpush1.msra.mxu0 0.0
        %2273 = vmatprep.subr.mxu0 0.0
        %2274 = vmatpush1.msra.mxu0 0.0
        %2275 = vmatprep.subr.mxu0 0.0
        %2276 = vmatpush1.msra.mxu0 0.0
        %2277 = vmatprep.subr.mxu0 0.0
        %2278 = vmatpush1.msra.mxu0 0.0
        %2279 = vmatprep.subr.mxu0 0.0
        %2280 = vmatpush1.msra.mxu0 0.0
        %2281 = vmatprep.subr.mxu0 0.0
        %2282 = vmatpush1.msra.mxu0 0.0
        %2283 = vmatprep.subr.mxu0 0.0
        %2284 = vmatpush1.msra.mxu0 0.0
        %2285 = vmatprep.subr.mxu0 0.0
        %2286 = vmatpush1.msra.mxu0 0.0
        %2287 = vmatprep.subr.mxu0 0.0
        %2288 = vmatpush1.msra.mxu0 0.0
        %2289 = vmatprep.subr.mxu0 0.0
        %2290 = vmatpush1.msra.mxu0 0.0
        %2291 = vmatprep.subr.mxu0 0.0
        %2292 = vmatpush1.msra.mxu0 0.0
        %2293 = vmatprep.subr.mxu0 0.0
        %2294 = vmatpush1.msra.mxu0 0.0
        %2295 = vmatprep.subr.mxu0 0.0
        %2296 = vmatpush1.msra.mxu0 0.0
        %2297 = vmatprep.subr.mxu0 0.0
        %2298 = vmatpush1.msra.mxu0 0.0
        %2299 = vmatprep.subr.mxu0 0.0
        %2300 = vmatpush1.msra.mxu0 0.0
        %2301 = vmatprep.subr.mxu0 0.0
        %2302 = vmatpush1.msra.mxu0 0.0
        %2303 = vmatprep.mubr.f32.mxu0 0.0
        %2304 = vmatmul.mubr.f32.gmra.mrb[0].mxu0 %v2233
        %v2305 = vpop.f32.mrb[0].mxu0
        %v2306 = vadd.f32 0.0, %v2305
        %v2307 = vpop.f32.mrb[0].mxu0
        %v2308 = vadd.f32 0.0, %v2307
        %2309 = vdwg.mxu0
        %2310 = vmatprep.subr.mxu0 %v1666
        %2311 = vmatpush1.msra.mxu0 %v1665
        %2312 = vmatprep.subr.mxu0 %v1933
        %2313 = vmatpush1.msra.mxu0 %v1932
        %2314 = vmatprep.subr.mxu0 %v1976
        %2315 = vmatpush1.msra.mxu0 %v1975
        %2316 = vmatprep.subr.mxu0 %v2019
        %2317 = vmatpush1.msra.mxu0 %v2018
        %2318 = vmatprep.subr.mxu0 %v2053
        %2319 = vmatpush1.msra.mxu0 %v2052
        %2320 = vmatprep.subr.mxu0 %v2096
        %2321 = vmatpush1.msra.mxu0 %v2095
        %2322 = vmatprep.subr.mxu0 %v2139
        %2323 = vmatpush1.msra.mxu0 %v2138
        %2324 = vmatprep.subr.mxu0 %v2174
        %2325 = vmatpush1.msra.mxu0 %v2173
        %2326 = vmatprep.subr.mxu0 %v2218
        %2327 = vmatpush1.msra.mxu0 %v2217
        %2328 = vmatprep.subr.mxu0 %v2237
        %2329 = vmatpush1.msra.mxu0 %v2237
        %2330 = vmatprep.subr.mxu0 0.0
        %2331 = vmatpush1.msra.mxu0 0.0
        %2332 = vmatprep.subr.mxu0 0.0
        %2333 = vmatpush1.msra.mxu0 0.0
        %2334 = vmatprep.subr.mxu0 0.0
        %2335 = vmatpush1.msra.mxu0 0.0
        %2336 = vmatprep.subr.mxu0 0.0
        %2337 = vmatpush1.msra.mxu0 0.0
        %2338 = vmatprep.subr.mxu0 0.0
        %2339 = vmatpush1.msra.mxu0 0.0
        %2340 = vmatprep.subr.mxu0 0.0
        %2341 = vmatpush1.msra.mxu0 0.0
        %2342 = vmatprep.subr.mxu0 0.0
        %2343 = vmatpush1.msra.mxu0 0.0
        %2344 = vmatprep.subr.mxu0 0.0
        %2345 = vmatpush1.msra.mxu0 0.0
        %2346 = vmatprep.subr.mxu0 0.0
        %2347 = vmatpush1.msra.mxu0 0.0
        %2348 = vmatprep.subr.mxu0 0.0
        %2349 = vmatpush1.msra.mxu0 0.0
        %2350 = vmatprep.subr.mxu0 0.0
        %2351 = vmatpush1.msra.mxu0 0.0
        %2352 = vmatprep.subr.mxu0 0.0
        %2353 = vmatpush1.msra.mxu0 0.0
        %2354 = vmatprep.subr.mxu0 0.0
        %2355 = vmatpush1.msra.mxu0 0.0
        %2356 = vmatprep.subr.mxu0 0.0
        %2357 = vmatpush1.msra.mxu0 0.0
        %2358 = vmatprep.subr.mxu0 0.0
        %2359 = vmatpush1.msra.mxu0 0.0
        %2360 = vmatprep.subr.mxu0 0.0
        %2361 = vmatpush1.msra.mxu0 0.0
        %2362 = vmatprep.subr.mxu0 0.0
        %2363 = vmatpush1.msra.mxu0 0.0
        %2364 = vmatprep.subr.mxu0 0.0
        %2365 = vmatpush1.msra.mxu0 0.0
        %2366 = vmatprep.subr.mxu0 0.0
        %2367 = vmatpush1.msra.mxu0 0.0
        %2368 = vmatprep.subr.mxu0 0.0
        %2369 = vmatpush1.msra.mxu0 0.0
        %2370 = vmatprep.subr.mxu0 0.0
        %2371 = vmatpush1.msra.mxu0 0.0
        %2372 = vmatprep.subr.mxu0 0.0
        %2373 = vmatpush1.msra.mxu0 0.0
        %2374 = vmatprep.mubr.f32.mxu0 0.0
        %2375 = vmatmul.mubr.f32.gmra.mrb[0].mxu0 %v2233
        %v2376 = vpop.f32.mrb[0].mxu0
        %v2377 = vadd.f32 0.0, %v2376
        %v2378 = vpop.f32.mrb[0].mxu0
        %v2379 = vadd.f32 0.0, %v2378
        %2380 = vdwg.mxu0
        %2381 = vmatprep.subr.mxu0 %v1668
        %2382 = vmatpush1.msra.mxu0 %v1667
        %2383 = vmatprep.subr.mxu0 %v1935
        %2384 = vmatpush1.msra.mxu0 %v1934
        %2385 = vmatprep.subr.mxu0 %v1978
        %2386 = vmatpush1.msra.mxu0 %v1977
        %2387 = vmatprep.subr.mxu0 %v2021
        %2388 = vmatpush1.msra.mxu0 %v2020
        %2389 = vmatprep.subr.mxu0 %v2055
        %2390 = vmatpush1.msra.mxu0 %v2054
        %2391 = vmatprep.subr.mxu0 %v2098
        %2392 = vmatpush1.msra.mxu0 %v2097
        %2393 = vmatprep.subr.mxu0 %v2141
        %2394 = vmatpush1.msra.mxu0 %v2140
        %2395 = vmatprep.subr.mxu0 %v2176
        %2396 = vmatpush1.msra.mxu0 %v2175
        %2397 = vmatprep.subr.mxu0 %v2220
        %2398 = vmatpush1.msra.mxu0 %v2219
        %2399 = vmatprep.subr.mxu0 %v2237
        %2400 = vmatpush1.msra.mxu0 %v2237
        %2401 = vmatprep.subr.mxu0 0.0
        %2402 = vmatpush1.msra.mxu0 0.0
        %2403 = vmatprep.subr.mxu0 0.0
        %2404 = vmatpush1.msra.mxu0 0.0
        %2405 = vmatprep.subr.mxu0 0.0
        %2406 = vmatpush1.msra.mxu0 0.0
        %2407 = vmatprep.subr.mxu0 0.0
        %2408 = vmatpush1.msra.mxu0 0.0
        %2409 = vmatprep.subr.mxu0 0.0
        %2410 = vmatpush1.msra.mxu0 0.0
        %2411 = vmatprep.subr.mxu0 0.0
        %2412 = vmatpush1.msra.mxu0 0.0
        %2413 = vmatprep.subr.mxu0 0.0
        %2414 = vmatpush1.msra.mxu0 0.0
        %2415 = vmatprep.subr.mxu0 0.0
        %2416 = vmatpush1.msra.mxu0 0.0
        %2417 = vmatprep.subr.mxu0 0.0
        %2418 = vmatpush1.msra.mxu0 0.0
        %2419 = vmatprep.subr.mxu0 0.0
        %2420 = vmatpush1.msra.mxu0 0.0
        %2421 = vmatprep.subr.mxu0 0.0
        %2422 = vmatpush1.msra.mxu0 0.0
        %2423 = vmatprep.subr.mxu0 0.0
        %2424 = vmatpush1.msra.mxu0 0.0
        %2425 = vmatprep.subr.mxu0 0.0
        %2426 = vmatpush1.msra.mxu0 0.0
        %2427 = vmatprep.subr.mxu0 0.0
        %2428 = vmatpush1.msra.mxu0 0.0
        %2429 = vmatprep.subr.mxu0 0.0
        %2430 = vmatpush1.msra.mxu0 0.0
        %2431 = vmatprep.subr.mxu0 0.0
        %2432 = vmatpush1.msra.mxu0 0.0
        %2433 = vmatprep.subr.mxu0 0.0
        %2434 = vmatpush1.msra.mxu0 0.0
        %2435 = vmatprep.subr.mxu0 0.0
        %2436 = vmatpush1.msra.mxu0 0.0
        %2437 = vmatprep.subr.mxu0 0.0
        %2438 = vmatpush1.msra.mxu0 0.0
        %2439 = vmatprep.subr.mxu0 0.0
        %2440 = vmatpush1.msra.mxu0 0.0
        %2441 = vmatprep.subr.mxu0 0.0
        %2442 = vmatpush1.msra.mxu0 0.0
        %2443 = vmatprep.subr.mxu0 0.0
        %2444 = vmatpush1.msra.mxu0 0.0
        %2445 = vmatprep.mubr.f32.mxu0 0.0
        %2446 = vmatmul.mubr.f32.gmra.mrb[0].mxu0 %v2233
        %v2447 = vpop.f32.mrb[0].mxu0
        %v2448 = vadd.f32 0.0, %v2447
        %v2449 = vpop.f32.mrb[0].mxu0
        %v2450 = vadd.f32 0.0, %v2449
        %2451 = vdwg.mxu0
        %2452 = vmatprep.subr.mxu0 %v1670
        %2453 = vmatpush1.msra.mxu0 %v1669
        %2454 = vmatprep.subr.mxu0 %v1937
        %2455 = vmatpush1.msra.mxu0 %v1936
        %2456 = vmatprep.subr.mxu0 %v1980
        %2457 = vmatpush1.msra.mxu0 %v1979
        %2458 = vmatprep.subr.mxu0 %v2023
        %2459 = vmatpush1.msra.mxu0 %v2022
        %2460 = vmatprep.subr.mxu0 %v2057
        %2461 = vmatpush1.msra.mxu0 %v2056
        %2462 = vmatprep.subr.mxu0 %v2100
        %2463 = vmatpush1.msra.mxu0 %v2099
        %2464 = vmatprep.subr.mxu0 %v2143
        %2465 = vmatpush1.msra.mxu0 %v2142
        %2466 = vmatprep.subr.mxu0 %v2178
        %2467 = vmatpush1.msra.mxu0 %v2177
        %2468 = vmatprep.subr.mxu0 %v2222
        %2469 = vmatpush1.msra.mxu0 %v2221
        %2470 = vmatprep.subr.mxu0 %v2237
        %2471 = vmatpush1.msra.mxu0 %v2237
        %2472 = vmatprep.subr.mxu0 0.0
        %2473 = vmatpush1.msra.mxu0 0.0
        %2474 = vmatprep.subr.mxu0 0.0
        %2475 = vmatpush1.msra.mxu0 0.0
        %2476 = vmatprep.subr.mxu0 0.0
        %2477 = vmatpush1.msra.mxu0 0.0
        %2478 = vmatprep.subr.mxu0 0.0
        %2479 = vmatpush1.msra.mxu0 0.0
        %2480 = vmatprep.subr.mxu0 0.0
        %2481 = vmatpush1.msra.mxu0 0.0
        %2482 = vmatprep.subr.mxu0 0.0
        %2483 = vmatpush1.msra.mxu0 0.0
        %2484 = vmatprep.subr.mxu0 0.0
        %2485 = vmatpush1.msra.mxu0 0.0
        %2486 = vmatprep.subr.mxu0 0.0
        %2487 = vmatpush1.msra.mxu0 0.0
        %2488 = vmatprep.subr.mxu0 0.0
        %2489 = vmatpush1.msra.mxu0 0.0
        %2490 = vmatprep.subr.mxu0 0.0
        %2491 = vmatpush1.msra.mxu0 0.0
        %2492 = vmatprep.subr.mxu0 0.0
        %2493 = vmatpush1.msra.mxu0 0.0
        %2494 = vmatprep.subr.mxu0 0.0
        %2495 = vmatpush1.msra.mxu0 0.0
        %2496 = vmatprep.subr.mxu0 0.0
        %2497 = vmatpush1.msra.mxu0 0.0
        %2498 = vmatprep.subr.mxu0 0.0
        %2499 = vmatpush1.msra.mxu0 0.0
        %2500 = vmatprep.subr.mxu0 0.0
        %2501 = vmatpush1.msra.mxu0 0.0
        %2502 = vmatprep.subr.mxu0 0.0
        %2503 = vmatpush1.msra.mxu0 0.0
        %2504 = vmatprep.subr.mxu0 0.0
        %2505 = vmatpush1.msra.mxu0 0.0
        %2506 = vmatprep.subr.mxu0 0.0
        %2507 = vmatpush1.msra.mxu0 0.0
        %2508 = vmatprep.subr.mxu0 0.0
        %2509 = vmatpush1.msra.mxu0 0.0
        %2510 = vmatprep.subr.mxu0 0.0
        %2511 = vmatpush1.msra.mxu0 0.0
        %2512 = vmatprep.subr.mxu0 0.0
        %2513 = vmatpush1.msra.mxu0 0.0
        %2514 = vmatprep.subr.mxu0 0.0
        %2515 = vmatpush1.msra.mxu0 0.0
        %2516 = vmatprep.mubr.f32.mxu0 0.0
        %2517 = vmatmul.mubr.f32.gmra.mrb[0].mxu0 %v2233
        %v2518 = vpop.f32.mrb[0].mxu0
        %v2519 = vadd.f32 0.0, %v2518
        %v2520 = vpop.f32.mrb[0].mxu0
        %v2521 = vadd.f32 0.0, %v2520
        %2522 = vdwg.mxu0
        %v2523 = vmax.f32 %v2306, 0.0
        %v2524 = vmax.f32 %v2308, 0.0
        %v2525 = vmax.f32 %v2377, 0.0
        %v2526 = vmax.f32 %v2379, 0.0
        %v2527 = vmax.f32 %v2448, 0.0
        %v2528 = vmax.f32 %v2450, 0.0
        %v2529 = vmax.f32 %v2519, 0.0
        %v2530 = vmax.f32 %v2521, 0.0
        %v2531 = vxor.u32 %v2523, 2147483648
        %v2532 = vxor.u32 %v2524, 2147483648
        %v2533 = vxor.u32 %v2525, 2147483648
        %v2534 = vxor.u32 %v2526, 2147483648
        %v2535 = vxor.u32 %v2527, 2147483648
        %v2536 = vxor.u32 %v2528, 2147483648
        %v2537 = vxor.u32 %v2529, 2147483648
        %v2538 = vxor.u32 %v2530, 2147483648
        %v2539 = vmul.f32 %v2531, 1.442695
        %v2540 = vpow.pop %v2539
        %v2541 = vmul.f32 %v2532, 1.442695
        %v2542 = vpow.pop %v2541
        %v2543 = vmul.f32 %v2533, 1.442695
        %v2544 = vpow.pop %v2543
        %v2545 = vmul.f32 %v2534, 1.442695
        %v2546 = vpow.pop %v2545
        %v2547 = vmul.f32 %v2535, 1.442695
        %v2548 = vpow.pop %v2547
        %v2549 = vmul.f32 %v2536, 1.442695
        %v2550 = vpow.pop %v2549
        %v2551 = vmul.f32 %v2537, 1.442695
        %v2552 = vpow.pop %v2551
        %v2553 = vmul.f32 %v2538, 1.442695
        %v2554 = vpow.pop %v2553
        %v2555 = vadd.f32 %v2540, 1.0
        %v2556 = vadd.f32 %v2542, 1.0
        %v2557 = vadd.f32 %v2544, 1.0
        %v2558 = vadd.f32 %v2546, 1.0
        %v2559 = vadd.f32 %v2548, 1.0
        %v2560 = vadd.f32 %v2550, 1.0
        %v2561 = vadd.f32 %v2552, 1.0
        %v2562 = vadd.f32 %v2554, 1.0
        %v2563 = vrcp.pop %v2555
        %v2564 = vmul.f32 1.0, %v2563
        %v2565 = vrcp.pop %v2556
        %v2566 = vmul.f32 1.0, %v2565
        %v2567 = vrcp.pop %v2557
        %v2568 = vmul.f32 1.0, %v2567
        %v2569 = vrcp.pop %v2558
        %v2570 = vmul.f32 1.0, %v2569
        %v2571 = vrcp.pop %v2559
        %v2572 = vmul.f32 1.0, %v2571
        %v2573 = vrcp.pop %v2560
        %v2574 = vmul.f32 1.0, %v2573
        %v2575 = vrcp.pop %v2561
        %v2576 = vmul.f32 1.0, %v2575
        %v2577 = vrcp.pop %v2562
        %v2578 = vmul.f32 1.0, %v2577
        %v2587 = vcombine.low %v2564, %v2566
        %v2588 = vcombine.low %v2568, %v2570
        %v2590 = vunpack.c.l.s4 1983009808
        %v2591 = vunpack.c.0.s8 %v2590
        %v2592 = vlaneseq
        %v2593 = vshrl.u32 %v2592, 7
        %v2594 = vsub.s32 %v2591, %v2593
        %v2595 = vrot.slane %v2587, %v2594
        %v2597 = vunpack.c.l.s4 1983009808
        %v2598 = vunpack.c.0.s8 %v2597
        %v2599 = vlaneseq
        %v2600 = vshrl.u32 %v2599, 7
        %v2601 = vsub.s32 %v2598, %v2600
        %v2602 = vrot.slane %v2588, %v2601
        %v2603 = vcombine.low %v2595, %v2602
        %v2604 = vcombine.low %v2572, %v2574
        %v2605 = vcombine.low %v2576, %v2578
        %v2607 = vunpack.c.l.s4 1983009808
        %v2608 = vunpack.c.0.s8 %v2607
        %v2609 = vlaneseq
        %v2610 = vshrl.u32 %v2609, 7
        %v2611 = vsub.s32 %v2608, %v2610
        %v2612 = vrot.slane %v2604, %v2611
        %v2614 = vunpack.c.l.s4 1983009808
        %v2615 = vunpack.c.0.s8 %v2614
        %v2616 = vlaneseq
        %v2617 = vshrl.u32 %v2616, 7
        %v2618 = vsub.s32 %v2615, %v2617
        %v2619 = vrot.slane %v2605, %v2618
        %v2620 = vcombine.low %v2612, %v2619
        %2623 = vst [vmem:[%s474] sm:$0xff] %v2603
        %2624 = vst [vmem:[%s474 + $0x8] sm:$0xff] %v2620
        %s2625 = sand.u32 %s260, 1
        %s2626 = scalar_lea.sflag [#allocation4], %s2625
        %s2627 = sand.u32 %s260, 1
        %s2628 = smul.addr %s2627, 16
        %s2629 = scalar_lea.vmem [#allocation14], %s2628
        // Predicated region
        $region89: #{tpu_custom_call.1} parent=59 // pred_check
          %p2630 = pneg %p270
        $region90: #{tpu_custom_call.1} parent=59 // pred_check_branch
          %2632 = sbr.rel (%p2630) target = $region92
        $region91: #{tpu_custom_call.1} parent=59 // pred_region
          %s2634 = ssub.s32 256, 256
          %2635 = vsyncadd %s2626, %s2634
          %s2636 = smul.addr %s32, 8
          %s2637 = smul.addr %s2636, 32
          %s2638 = scalar_lea.hbm %s10, %s2637
          %s2640 = sshll.u32 %s2629, 4
          %s2641 = int_to_ptr.vmem [resolvable:$true] %s2640
          %2643 = dma.vmem_to_hbm [thread:$0]  %s2641, 256, %s2638, %s2626
        $region92: #{tpu_custom_call.1} parent=59 // pred_fallthru
          _
      $region60: #{tpu_custom_call.1} parent=5 // pred_fallthru
        _
      %p2644 = scmp.le.s32.totalorder 2, %s27
      // Predicated region
      $region93: #{tpu_custom_call.1} parent=5 // pred_check
        %p2645 = pneg %p2644
      $region94: #{tpu_custom_call.1} parent=5 // pred_check_branch
        %2647 = sbr.rel (%p2645) target = $region96
      $region95: #{tpu_custom_call.1} parent=5 // pred_region
        %s2648 = ssub.s32 %s27, 2
        // Predicated region
        $region97: #{tpu_custom_call.1} parent=95 // pred_check
          %p2649 = pneg %p276
        $region98: #{tpu_custom_call.1} parent=95 // pred_check_branch
          %2651 = sbr.rel (%p2649) target = $region100
        $region99: #{tpu_custom_call.1} parent=95 // pred_region
          %s2652 = sand.u32 %s261, 1
          %s2653 = scalar_lea.sflag [#allocation4], %s2652
          %s2654 = sand.u32 %s261, 1
          %s2655 = smul.addr %s2654, 16
          %s2656 = scalar_lea.vmem [#allocation14], %s2655
          %2657 = dma.done %s2653, 256
        $region100: #{tpu_custom_call.1} parent=95 // pred_fallthru
          _
      $region96: #{tpu_custom_call.1} parent=5 // pred_fallthru
        _
    $region6: #{tpu_custom_call.1} parent=1 // loop_footer
      %s31 = sadd.s32 1, %s27
    $region7: #{tpu_custom_call.1} parent=1 // loop_footer_branch
      %26 = sbr.rel target = $region3
    $region8: #{tpu_custom_call.1} parent=1 // loop_exit
      _
    %2658 = vsyncpa [#allocation3], 1
    %s2659 = scalar_lea.sflag [#allocation3], 1
    %2660 = vsyncpa %s2659, 1
    %2661 = vsyncpa [#allocation6], 1
    %s2662 = scalar_lea.sflag [#allocation6], 1
    %2663 = vsyncpa %s2662, 1
    %2664 = vsyncpa [#allocation9], 1
    %2665 = vsyncpa [#allocation12], 1
    %2666 = vsyncpa [#allocation4], 1
    %s2667 = scalar_lea.sflag [#allocation4], 1
    %2668 = vsyncpa %s2667, 1

</llo_original>
